<compile_context>
chip_gen: v7x
topology: tpu7x:2x2x1
jax: 0.10.0
libtpu: 0.0.40
codegen_flags: <defaults>
</compile_context>

<pallas_src>
import functools

import jax
import jax.numpy as jnp
from jax import lax
from jax.experimental import pallas as pl
from jax.experimental.pallas import tpu as pltpu


def _round_up(x, m):
    return (x + m - 1) // m * m


def _pick_tile(dim, tmax, granule):
    """Largest legal tile <= tmax for an axis of size `dim`."""
    if dim <= tmax:
        return dim                       # full-dim block is always legal
    best = granule
    for t in range(granule, tmax + 1, granule):
        if dim % t == 0:
            best = t
    return best


# ----------------------------------------------------------------------------
# Tile / VMEM budgets
# ----------------------------------------------------------------------------
_TM, _TN, _TK = 512, 512, 512            # linear tiles (bf16 operands)
_VMEM_LIMIT = 48 * 1024 * 1024           # <= v7x's 64 MiB physical per TC


def _seq_tile():
    """256-wide sequence tiles for the 256x256 MXUs (v6e/v7x), 128 elsewhere."""
    try:
        kind = jax.devices()[0].device_kind.lower()
    except Exception:
        kind = ""
    return 256 if ("v6" in kind or "v7" in kind) else 128


def _linear_geometry(M, K, Nout):
    tm = _pick_tile(M, _TM, 8)
    tk = _pick_tile(K, _TK, 128)
    tn = _pick_tile(Nout, _TN, 128)
    return tm, tk, tn, _round_up(M, tm), _round_up(K, tk), _round_up(Nout, tn)


def _pad2d(a, rows, cols):
    r, c = a.shape
    if (r, c) == (rows, cols):
        return a
    return jnp.pad(a, ((0, rows - r), (0, cols - c)))


# ----------------------------------------------------------------------------
# Fused qkv projection:  q = x @ Wq (scale folded in), k = x @ Wk, v = x @ Wv.
# One pass over x feeds all three MXU matmuls; q/k/v come out in (B*N, C).
# ----------------------------------------------------------------------------
def _qkv_matmul_kernel(x_ref, wq_ref, wk_ref, wv_ref, q_ref, k_ref, v_ref,
                       accq, acck, accv):
    @pl.when(pl.program_id(2) == 0)
    def _():
        accq[...] = jnp.zeros_like(accq)
        acck[...] = jnp.zeros_like(acck)
        accv[...] = jnp.zeros_like(accv)

    x = x_ref[...]
    accq[...] += jnp.dot(x, wq_ref[...], preferred_element_type=jnp.float32)
    acck[...] += jnp.dot(x, wk_ref[...], preferred_element_type=jnp.float32)
    accv[...] += jnp.dot(x, wv_ref[...], preferred_element_type=jnp.float32)

    @pl.when(pl.program_id(2) == pl.num_programs(2) - 1)
    def _():
        q_ref[...] = accq[...].astype(q_ref.dtype)
        k_ref[...] = acck[...].astype(k_ref.dtype)
        v_ref[...] = accv[...].astype(v_ref.dtype)


def pallas_qkv_projection(x2d, wq, wk, wv, *, out_dtype):
    """x2d: (M, C); wq/wk/wv: (Kp, Np) pre-transposed (in, out) and pre-padded."""
    M, C = x2d.shape
    tm, tk, tn, Mp, Kp, Np = _linear_geometry(M, C, C)
    assert wq.shape == (Kp, Np) and wk.shape == (Kp, Np) and wv.shape == (Kp, Np)

    if (Mp, Kp) != (M, C):
        x2d = jnp.pad(x2d, ((0, Mp - M), (0, Kp - C)))

    grid = (Mp // tm, Np // tn, Kp // tk)
    w_spec = pl.BlockSpec((tk, tn), lambda i, j, k: (k, j))
    itemsize = jnp.dtype(x2d.dtype).itemsize
    cost = pl.CostEstimate(
        flops=int(6 * Mp * Kp * Np),
        transcendentals=0,
        bytes_accessed=int(itemsize * (Mp * Kp * (Np // tn)
                                       + 3 * Kp * Np * (Mp // tm)
                                       + 3 * Mp * Np)),
    )

    q2, k2, v2 = pl.pallas_call(
        _qkv_matmul_kernel,
        out_shape=tuple(jax.ShapeDtypeStruct((Mp, Np), out_dtype)
                        for _ in range(3)),
        grid_spec=pltpu.PrefetchScalarGridSpec(
            num_scalar_prefetch=0,
            grid=grid,
            in_specs=[pl.BlockSpec((tm, tk), lambda i, j, k: (i, k)),
                      w_spec, w_spec, w_spec],
            out_specs=tuple(pl.BlockSpec((tm, tn), lambda i, j, k: (i, j))
                            for _ in range(3)),
            scratch_shapes=[pltpu.VMEM((tm, tn), jnp.float32) for _ in range(3)],
        ),
        compiler_params=pltpu.CompilerParams(
            dimension_semantics=("parallel", "parallel", "arbitrary"),
            vmem_limit_bytes=_VMEM_LIMIT,
        ),
        cost_estimate=cost,
    )(x2d, wq, wk, wv)

    if (Mp, Np) != (M, C):
        q2, k2, v2 = q2[:M, :C], k2[:M, :C], v2[:M, :C]
    return q2, k2, v2


# ----------------------------------------------------------------------------
# Output projection:  y = x @ Wp + b
# ----------------------------------------------------------------------------
def _matmul_bias_kernel(x_ref, w_ref, b_ref, o_ref, acc_ref):
    @pl.when(pl.program_id(2) == 0)
    def _():
        acc_ref[...] = jnp.zeros_like(acc_ref)

    acc_ref[...] += jnp.dot(x_ref[...], w_ref[...],
                            preferred_element_type=jnp.float32)

    @pl.when(pl.program_id(2) == pl.num_programs(2) - 1)
    def _():
        o_ref[...] = (acc_ref[...] +
                      b_ref[...].astype(jnp.float32)).astype(o_ref.dtype)


def pallas_linear_bias(x2d, wt, bias_row, *, out_dtype):
    """x2d: (M, C); wt: (Kp, Np) pre-padded; bias_row: (1, Np) fp32."""
    M, C = x2d.shape
    tm, tk, tn, Mp, Kp, Np = _linear_geometry(M, C, C)
    assert wt.shape == (Kp, Np) and bias_row.shape == (1, Np)

    if (Mp, Kp) != (M, C):
        x2d = jnp.pad(x2d, ((0, Mp - M), (0, Kp - C)))

    grid = (Mp // tm, Np // tn, Kp // tk)
    itemsize = jnp.dtype(x2d.dtype).itemsize
    cost = pl.CostEstimate(
        flops=int(2 * Mp * Kp * Np),
        transcendentals=0,
        bytes_accessed=int(itemsize * (Mp * Kp * (Np // tn)
                                       + Kp * Np * (Mp // tm))
                           + 4 * Np
                           + jnp.dtype(out_dtype).itemsize * Mp * Np),
    )

    out = pl.pallas_call(
        _matmul_bias_kernel,
        out_shape=jax.ShapeDtypeStruct((Mp, Np), out_dtype),
        grid_spec=pltpu.PrefetchScalarGridSpec(
            num_scalar_prefetch=0,
            grid=grid,
            in_specs=[pl.BlockSpec((tm, tk), lambda i, j, k: (i, k)),
                      pl.BlockSpec((tk, tn), lambda i, j, k: (k, j)),
                      pl.BlockSpec((1, tn), lambda i, j, k: (0, j))],
            out_specs=pl.BlockSpec((tm, tn), lambda i, j, k: (i, j)),
            scratch_shapes=[pltpu.VMEM((tm, tn), jnp.float32)],
        ),
        compiler_params=pltpu.CompilerParams(
            dimension_semantics=("parallel", "parallel", "arbitrary"),
            vmem_limit_bytes=_VMEM_LIMIT,
        ),
        cost_estimate=cost,
    )(x2d, wt, bias_row)

    if (Mp, Np) != (M, C):
        out = out[:M, :C]
    return out


# ----------------------------------------------------------------------------
# Flash-style multi-head attention on (B, N, C) tensors (heads packed along C).
# Grid (B, Nq_blocks, Nkv_blocks); online softmax over the kv ("arbitrary")
# axis; per-head matmuls via static lane slices; lane-dense C-wide output.
# ----------------------------------------------------------------------------
def _flash_attn_kernel(q_ref, k_ref, v_ref, o_ref, m_ref, l_ref, acc_ref,
                       *, num_heads, head_dim, seq_len, tkv, needs_mask):
    kv_i = pl.program_id(2)

    @pl.when(kv_i == 0)
    def _():
        m_ref[...] = jnp.full_like(m_ref, -jnp.inf)
        l_ref[...] = jnp.zeros_like(l_ref)
        acc_ref[...] = jnp.zeros_like(acc_ref)

    if needs_mask:
        # Padded K rows are zero -> their scores are exactly 0, which is safe
        # to include in the running max; zero their probabilities with a cheap
        # broadcast multiply instead of -inf masking (no NaN corner cases).
        col = kv_i * tkv + lax.broadcasted_iota(jnp.int32, (1, tkv), 1)
        colmask = (col < seq_len).astype(jnp.float32)            # (1, tkv)

    for h in range(num_heads):            # unrolled; heads are static lane slices
        sl = slice(h * head_dim, (h + 1) * head_dim)
        q_h = q_ref[0, :, sl]             # (tq,  Dh)  bf16
        k_h = k_ref[0, :, sl]             # (tkv, Dh)
        v_h = v_ref[0, :, sl]             # (tkv, Dh)

        # q k^T contracting the last dims (attention scale folded into Wq).
        s = lax.dot_general(q_h, k_h, (((1,), (1,)), ((), ())),
                            preferred_element_type=jnp.float32)  # (tq, tkv)

        m_prev = m_ref[:, h:h + 1]                                # (tq, 1)
        m_new = jnp.maximum(m_prev, jnp.max(s, axis=-1, keepdims=True))
        alpha = jnp.exp(m_prev - m_new)
        p = jnp.exp(s - m_new)                                    # fp32
        if needs_mask:
            p = p * colmask
        l_ref[:, h:h + 1] = (alpha * l_ref[:, h:h + 1]
                             + jnp.sum(p, axis=-1, keepdims=True))
        acc_ref[:, sl] = alpha * acc_ref[:, sl] + jnp.dot(
            p.astype(v_h.dtype), v_h, preferred_element_type=jnp.float32)
        m_ref[:, h:h + 1] = m_new

    @pl.when(kv_i == pl.num_programs(2) - 1)
    def _():
        for h in range(num_heads):
            sl = slice(h * head_dim, (h + 1) * head_dim)
            inv_l = pl.reciprocal(l_ref[:, h:h + 1], approx=True)   # EUP slot
            o_ref[0, :, sl] = (acc_ref[:, sl] * inv_l).astype(o_ref.dtype)


def pallas_flash_attention(q, k, v, *, num_heads):
    """q, k, v: (B, N, C) with heads packed along C -> output (B, N, C)."""
    B, N, C = q.shape
    head_dim = C // num_heads
    tile = _seq_tile()
    tq = N if N <= tile else tile
    tkv = tq
    N_pad = _round_up(N, tq)
    if N_pad != N:
        pad = ((0, 0), (0, N_pad - N), (0, 0))
        q, k, v = jnp.pad(q, pad), jnp.pad(k, pad), jnp.pad(v, pad)

    nq = N_pad // tq
    grid = (B, nq, N_pad // tkv)
    q_spec = pl.BlockSpec((1, tq, C), lambda b, qi, ki: (b, qi, 0))
    kv_spec = pl.BlockSpec((1, tkv, C), lambda b, qi, ki: (b, ki, 0))
    o_spec = pl.BlockSpec((1, tq, C), lambda b, qi, ki: (b, qi, 0))

    itemsize = jnp.dtype(q.dtype).itemsize
    cost = pl.CostEstimate(
        flops=int(4 * B * N_pad * N_pad * C),
        transcendentals=int(B * num_heads * N_pad * N_pad),
        # q read once, K/V re-streamed once per q block, output written once.
        bytes_accessed=int(itemsize * B * N_pad * C * (2 * nq + 2)),
    )

    kernel = functools.partial(_flash_attn_kernel,
                               num_heads=num_heads, head_dim=head_dim,
                               seq_len=N, tkv=tkv, needs_mask=(N_pad != N))

    out = pl.pallas_call(
        kernel,
        out_shape=jax.ShapeDtypeStruct((B, N_pad, C), q.dtype),
        grid_spec=pltpu.PrefetchScalarGridSpec(
            num_scalar_prefetch=0,
            grid=grid,
            in_specs=[q_spec, kv_spec, kv_spec],
            out_specs=o_spec,
            scratch_shapes=[
                pltpu.VMEM((tq, num_heads), jnp.float32),   # running max m
                pltpu.VMEM((tq, num_heads), jnp.float32),   # running sum l
                pltpu.VMEM((tq, C), jnp.float32),           # output accumulator
            ],
        ),
        compiler_params=pltpu.CompilerParams(
            dimension_semantics=("parallel", "parallel", "arbitrary"),
            vmem_limit_bytes=_VMEM_LIMIT,
        ),
        cost_estimate=cost,
    )(q, k, v)

    if N_pad != N:
        out = out[:, :N, :]
    return out


# ----------------------------------------------------------------------------
# Full module forward (no XLA permutes: all layout handled inside the kernels)
# ----------------------------------------------------------------------------
def attention_forward(x, params, num_heads):
    B, N, C = x.shape
    assert C % num_heads == 0
    compute_dtype = params["wt_q"].dtype

    x2d = x.reshape(B * N, C).astype(compute_dtype)
    # fused qkv projection: nn.Linear(dim, 3*dim, bias=False), emitted directly
    # as three (B, N, C)-layout tensors with the attention scale folded into Wq.
    q2, k2, v2 = pallas_qkv_projection(x2d, params["wt_q"], params["wt_k"],
                                       params["wt_v"], out_dtype=compute_dtype)
    q = q2.reshape(B, N, C)
    k = k2.reshape(B, N, C)
    v = v2.reshape(B, N, C)

    o = pallas_flash_attention(q, k, v, num_heads=num_heads)     # (B, N, C)

    # output projection: nn.Linear(dim, dim) with bias
    out = pallas_linear_bias(o.reshape(B * N, C), params["wt_proj"],
                             params["b_proj"], out_dtype=x.dtype)
    return out.reshape(B, N, C)


def init_params(key, dim, num_heads, param_dtype=jnp.bfloat16):
    """Torch-style (out, in) weights -> pre-transposed, scale-folded, bf16,
    pre-padded to the linear-kernel tile multiples (paid once, not per call)."""
    head_dim = dim // num_heads
    scale = head_dim ** (-0.5)
    k1, k2, k3 = jax.random.split(key, 3)
    w_qkv = jax.random.normal(k1, (3 * dim, dim), jnp.float32) * 0.02
    w_proj = jax.random.normal(k2, (dim, dim), jnp.float32) * 0.02
    b_proj = jax.random.normal(k3, (dim,), jnp.float32) * 0.02

    wt_q = (w_qkv[:dim].T * scale).astype(param_dtype)   # scale folded into Wq
    wt_k = w_qkv[dim:2 * dim].T.astype(param_dtype)
    wt_v = w_qkv[2 * dim:].T.astype(param_dtype)
    wt_proj = w_proj.T.astype(param_dtype)

    _, _, _, _, Kp, Np = _linear_geometry(8, dim, dim)
    wt_q, wt_k, wt_v, wt_proj = (_pad2d(w, Kp, Np)
                                 for w in (wt_q, wt_k, wt_v, wt_proj))
    b_row = jnp.pad(b_proj, (0, Np - dim)).reshape(1, Np).astype(jnp.float32)
    return {"wt_q": wt_q, "wt_k": wt_k, "wt_v": wt_v,
            "wt_proj": wt_proj, "b_proj": b_row}
    # qkv_bias=False (module default): no q/k/v bias entries.


# Pure-JAX fp32 reference mirroring the PyTorch forward (scale pre-folded into
# Wq, which is mathematically identical to the module's `* self.scale`).
def attention_reference(x, params, num_heads):
    B, N, C = x.shape
    Dh = C // num_heads
    wq = params["wt_q"][:C, :C].astype(jnp.float32)
    wk = params["wt_k"][:C, :C].astype(jnp.float32)
    wv = params["wt_v"][:C, :C].astype(jnp.float32)
    wp = params["wt_proj"][:C, :C].astype(jnp.float32)
    bp = params["b_proj"][0, :C]

    def heads(t):
        return t.reshape(B, N, num_heads, Dh).transpose(0, 2, 1, 3)

    q, k, v = heads(x @ wq), heads(x @ wk), heads(x @ wv)
    attn = jax.nn.softmax(q @ jnp.swapaxes(k, -2, -1), axis=-1)
    o = (attn @ v).transpose(0, 2, 1, 3).reshape(B, N, C)
    return o @ wp + bp


if __name__ == "__main__":
    B, N, C, H = 2, 16, 128, 8
    key = jax.random.PRNGKey(0)
    kx, kp = jax.random.split(key)
    x = jax.random.normal(kx, (B, N, C), jnp.float32)
    params = init_params(kp, C, H)

    fwd = jax.jit(functools.partial(attention_forward, num_heads=H))
    out = jax.block_until_ready(fwd(x, params))

    ref = attention_reference(x, params, num_heads=H)
    assert out.shape == (B, N, C)
    max_err = float(jnp.max(jnp.abs(out - ref)))
    assert max_err < 2e-2, f"mismatch vs reference: max abs err = {max_err}"

    print("KERNEL_OK")
</pallas_src>

<mosaic_0001>
module attributes {stable_mosaic.version = 11 : i64} {
  func.func @_flash_attn_kernel(%arg0: i32, %arg1: i32, %arg2: i32, %arg3: memref<1x16x128xbf16, #tpu.memory_space<vmem>>, %arg4: memref<1x16x128xbf16, #tpu.memory_space<vmem>>, %arg5: memref<1x16x128xbf16, #tpu.memory_space<vmem>>, %arg6: memref<1x16x128xbf16, #tpu.memory_space<vmem>>, %arg7: memref<16x8xf32, #tpu.memory_space<vmem>>, %arg8: memref<16x8xf32, #tpu.memory_space<vmem>>, %arg9: memref<16x128xf32, #tpu.memory_space<vmem>>) attributes {dimension_semantics = [#tpu.dimension_semantics<parallel>, #tpu.dimension_semantics<parallel>, #tpu.dimension_semantics<arbitrary>], iteration_bounds = array<i64: 2, 1, 1>, scalar_prefetch = 0 : i64, scratch_operands = 3 : i64, tpu.core_type = #tpu.core_type<tc>, window_params = [{transform_indices = @transform_0, window_bounds = array<i64: 1, 16, 128>}, {transform_indices = @transform_1, window_bounds = array<i64: 1, 16, 128>}, {transform_indices = @transform_2, window_bounds = array<i64: 1, 16, 128>}, {transform_indices = @transform_3, window_bounds = array<i64: 1, 16, 128>}]} {
    %c0_i32 = arith.constant 0 : i32
    %0 = arith.cmpi eq, %arg2, %c0_i32 : i32
    %1 = arith.extui %0 : i1 to i32
    %c0_i32_0 = arith.constant 0 : i32
    %2 = arith.cmpi ne, %1, %c0_i32_0 : i32
    scf.if %2 {
      %cst_187 = arith.constant 0xFF800000 : f32
      %246 = vector.broadcast %cst_187 : f32 to vector<16x8xf32>
      %c0_188 = arith.constant 0 : index
      %c0_189 = arith.constant 0 : index
      %247 = vector.load %arg7[%c0_188, %c0_189] : memref<16x8xf32, #tpu.memory_space<vmem>>, vector<16x8xf32>
      tpu.vector_store %arg7[%c0_188, %c0_189], %246 {strides = array<i32>} : memref<16x8xf32, #tpu.memory_space<vmem>>, vector<16x8xf32>,
      %cst_190 = arith.constant 0.000000e+00 : f32
      %248 = vector.broadcast %cst_190 : f32 to vector<16x8xf32>
      %c0_191 = arith.constant 0 : index
      %c0_192 = arith.constant 0 : index
      %249 = vector.load %arg8[%c0_191, %c0_192] : memref<16x8xf32, #tpu.memory_space<vmem>>, vector<16x8xf32>
      tpu.vector_store %arg8[%c0_191, %c0_192], %248 {strides = array<i32>} : memref<16x8xf32, #tpu.memory_space<vmem>>, vector<16x8xf32>,
      %cst_193 = arith.constant 0.000000e+00 : f32
      %250 = vector.broadcast %cst_193 : f32 to vector<16x128xf32>
      %c0_194 = arith.constant 0 : index
      %c0_195 = arith.constant 0 : index
      %251 = vector.load %arg9[%c0_194, %c0_195] : memref<16x128xf32, #tpu.memory_space<vmem>>, vector<16x128xf32>
      tpu.vector_store %arg9[%c0_194, %c0_195], %250 {strides = array<i32>} : memref<16x128xf32, #tpu.memory_space<vmem>>, vector<16x128xf32>,
    } else {
    }
    %c0 = arith.constant 0 : index
    %c0_1 = arith.constant 0 : index
    %c0_2 = arith.constant 0 : index
    %3 = vector.load %arg3[%c0, %c0_1, %c0_2] : memref<1x16x128xbf16, #tpu.memory_space<vmem>>, vector<1x16x16xbf16>
    %4 = vector.shape_cast %3 : vector<1x16x16xbf16> to vector<16x16xbf16>
    %c0_3 = arith.constant 0 : index
    %c0_4 = arith.constant 0 : index
    %c0_5 = arith.constant 0 : index
    %5 = vector.load %arg4[%c0_3, %c0_4, %c0_5] : memref<1x16x128xbf16, #tpu.memory_space<vmem>>, vector<1x16x16xbf16>
    %6 = vector.shape_cast %5 : vector<1x16x16xbf16> to vector<16x16xbf16>
    %c0_6 = arith.constant 0 : index
    %c0_7 = arith.constant 0 : index
    %c0_8 = arith.constant 0 : index
    %7 = vector.load %arg5[%c0_6, %c0_7, %c0_8] : memref<1x16x128xbf16, #tpu.memory_space<vmem>>, vector<1x16x16xbf16>
    %8 = vector.shape_cast %7 : vector<1x16x16xbf16> to vector<16x16xbf16>
    %cst = arith.constant dense<0.000000e+00> : vector<16x16xf32>
    %9 = tpu.matmul %4, %6, %cst {dimension_numbers = #tpu.dot_dimension_numbers<[1], [1], [0], [0], [0, 0, 1, 0], [], []>} : vector<16x16xbf16>, vector<16x16xbf16>, vector<16x16xf32> -> vector<16x16xf32>
    %c0_9 = arith.constant 0 : index
    %c0_10 = arith.constant 0 : index
    %10 = vector.load %arg7[%c0_9, %c0_10] : memref<16x8xf32, #tpu.memory_space<vmem>>, vector<16x1xf32>
    %cst_11 = arith.constant dense<0xFF800000> : vector<16xf32>
    %11 = vector.multi_reduction <maximumf>, %9, %cst_11 [1] : vector<16x16xf32> to vector<16xf32>
    %12 = vector.shape_cast %11 : vector<16xf32> to vector<16x1xf32>
    %13 = arith.maximumf %10, %12 : vector<16x1xf32>
    %14 = arith.subf %10, %13 : vector<16x1xf32>
    %15 = math.exp %14 : vector<16x1xf32>
    %16 = vector.broadcast %13 : vector<16x1xf32> to vector<16x16xf32>
    %17 = arith.subf %9, %16 : vector<16x16xf32>
    %18 = math.exp %17 : vector<16x16xf32>
    %c0_12 = arith.constant 0 : index
    %c0_13 = arith.constant 0 : index
    %19 = vector.load %arg8[%c0_12, %c0_13] : memref<16x8xf32, #tpu.memory_space<vmem>>, vector<16x1xf32>
    %20 = arith.mulf %15, %19 : vector<16x1xf32>
    %cst_14 = arith.constant dense<0.000000e+00> : vector<16xf32>
    %21 = vector.multi_reduction <add>, %18, %cst_14 [1] : vector<16x16xf32> to vector<16xf32>
    %22 = vector.shape_cast %21 : vector<16xf32> to vector<16x1xf32>
    %23 = arith.addf %20, %22 : vector<16x1xf32>
    %c0_15 = arith.constant 0 : index
    %c0_16 = arith.constant 0 : index
    %24 = vector.load %arg8[%c0_15, %c0_16] : memref<16x8xf32, #tpu.memory_space<vmem>>, vector<16x1xf32>
    tpu.vector_store %arg8[%c0_15, %c0_16], %23 {strides = array<i32>} : memref<16x8xf32, #tpu.memory_space<vmem>>, vector<16x1xf32>,
    %c0_17 = arith.constant 0 : index
    %c0_18 = arith.constant 0 : index
    %25 = vector.load %arg9[%c0_17, %c0_18] : memref<16x128xf32, #tpu.memory_space<vmem>>, vector<16x16xf32>
    %26 = vector.broadcast %15 : vector<16x1xf32> to vector<16x16xf32>
    %27 = arith.mulf %26, %25 : vector<16x16xf32>
    %28 = arith.truncf %18 : vector<16x16xf32> to vector<16x16xbf16>
    %cst_19 = arith.constant dense<0.000000e+00> : vector<16x16xf32>
    %29 = tpu.matmul %28, %8, %cst_19 {dimension_numbers = #tpu.dot_dimension_numbers<[1], [0], [0], [1], [0, 0, 1, 1], [], []>} : vector<16x16xbf16>, vector<16x16xbf16>, vector<16x16xf32> -> vector<16x16xf32>
    %30 = arith.addf %27, %29 : vector<16x16xf32>
    %c0_20 = arith.constant 0 : index
    %c0_21 = arith.constant 0 : index
    %31 = vector.load %arg9[%c0_20, %c0_21] : memref<16x128xf32, #tpu.memory_space<vmem>>, vector<16x16xf32>
    tpu.vector_store %arg9[%c0_20, %c0_21], %30 {strides = array<i32>} : memref<16x128xf32, #tpu.memory_space<vmem>>, vector<16x16xf32>,
    %c0_22 = arith.constant 0 : index
    %c0_23 = arith.constant 0 : index
    %32 = vector.load %arg7[%c0_22, %c0_23] : memref<16x8xf32, #tpu.memory_space<vmem>>, vector<16x1xf32>
    tpu.vector_store %arg7[%c0_22, %c0_23], %13 {strides = array<i32>} : memref<16x8xf32, #tpu.memory_space<vmem>>, vector<16x1xf32>,
    %c0_24 = arith.constant 0 : index
    %c0_25 = arith.constant 0 : index
    %c16 = arith.constant 16 : index
    %33 = vector.load %arg3[%c0_24, %c0_25, %c16] : memref<1x16x128xbf16, #tpu.memory_space<vmem>>, vector<1x16x16xbf16>
    %34 = vector.shape_cast %33 : vector<1x16x16xbf16> to vector<16x16xbf16>
    %c0_26 = arith.constant 0 : index
    %c0_27 = arith.constant 0 : index
    %c16_28 = arith.constant 16 : index
    %35 = vector.load %arg4[%c0_26, %c0_27, %c16_28] : memref<1x16x128xbf16, #tpu.memory_space<vmem>>, vector<1x16x16xbf16>
    %36 = vector.shape_cast %35 : vector<1x16x16xbf16> to vector<16x16xbf16>
    %c0_29 = arith.constant 0 : index
    %c0_30 = arith.constant 0 : index
    %c16_31 = arith.constant 16 : index
    %37 = vector.load %arg5[%c0_29, %c0_30, %c16_31] : memref<1x16x128xbf16, #tpu.memory_space<vmem>>, vector<1x16x16xbf16>
    %38 = vector.shape_cast %37 : vector<1x16x16xbf16> to vector<16x16xbf16>
    %cst_32 = arith.constant dense<0.000000e+00> : vector<16x16xf32>
    %39 = tpu.matmul %34, %36, %cst_32 {dimension_numbers = #tpu.dot_dimension_numbers<[1], [1], [0], [0], [0, 0, 1, 0], [], []>} : vector<16x16xbf16>, vector<16x16xbf16>, vector<16x16xf32> -> vector<16x16xf32>
    %c0_33 = arith.constant 0 : index
    %c1 = arith.constant 1 : index
    %40 = vector.load %arg7[%c0_33, %c1] : memref<16x8xf32, #tpu.memory_space<vmem>>, vector<16x1xf32>
    %cst_34 = arith.constant dense<0xFF800000> : vector<16xf32>
    %41 = vector.multi_reduction <maximumf>, %39, %cst_34 [1] : vector<16x16xf32> to vector<16xf32>
    %42 = vector.shape_cast %41 : vector<16xf32> to vector<16x1xf32>
    %43 = arith.maximumf %40, %42 : vector<16x1xf32>
    %44 = arith.subf %40, %43 : vector<16x1xf32>
    %45 = math.exp %44 : vector<16x1xf32>
    %46 = vector.broadcast %43 : vector<16x1xf32> to vector<16x16xf32>
    %47 = arith.subf %39, %46 : vector<16x16xf32>
    %48 = math.exp %47 : vector<16x16xf32>
    %c0_35 = arith.constant 0 : index
    %c1_36 = arith.constant 1 : index
    %49 = vector.load %arg8[%c0_35, %c1_36] : memref<16x8xf32, #tpu.memory_space<vmem>>, vector<16x1xf32>
    %50 = arith.mulf %45, %49 : vector<16x1xf32>
    %cst_37 = arith.constant dense<0.000000e+00> : vector<16xf32>
    %51 = vector.multi_reduction <add>, %48, %cst_37 [1] : vector<16x16xf32> to vector<16xf32>
    %52 = vector.shape_cast %51 : vector<16xf32> to vector<16x1xf32>
    %53 = arith.addf %50, %52 : vector<16x1xf32>
    %c0_38 = arith.constant 0 : index
    %c1_39 = arith.constant 1 : index
    %54 = vector.load %arg8[%c0_38, %c1_39] : memref<16x8xf32, #tpu.memory_space<vmem>>, vector<16x1xf32>
    tpu.vector_store %arg8[%c0_38, %c1_39], %53 {strides = array<i32>} : memref<16x8xf32, #tpu.memory_space<vmem>>, vector<16x1xf32>,
    %c0_40 = arith.constant 0 : index
    %c16_41 = arith.constant 16 : index
    %55 = vector.load %arg9[%c0_40, %c16_41] : memref<16x128xf32, #tpu.memory_space<vmem>>, vector<16x16xf32>
    %56 = vector.broadcast %45 : vector<16x1xf32> to vector<16x16xf32>
    %57 = arith.mulf %56, %55 : vector<16x16xf32>
    %58 = arith.truncf %48 : vector<16x16xf32> to vector<16x16xbf16>
    %cst_42 = arith.constant dense<0.000000e+00> : vector<16x16xf32>
    %59 = tpu.matmul %58, %38, %cst_42 {dimension_numbers = #tpu.dot_dimension_numbers<[1], [0], [0], [1], [0, 0, 1, 1], [], []>} : vector<16x16xbf16>, vector<16x16xbf16>, vector<16x16xf32> -> vector<16x16xf32>
    %60 = arith.addf %57, %59 : vector<16x16xf32>
    %c0_43 = arith.constant 0 : index
    %c16_44 = arith.constant 16 : index
    %61 = vector.load %arg9[%c0_43, %c16_44] : memref<16x128xf32, #tpu.memory_space<vmem>>, vector<16x16xf32>
    tpu.vector_store %arg9[%c0_43, %c16_44], %60 {strides = array<i32>} : memref<16x128xf32, #tpu.memory_space<vmem>>, vector<16x16xf32>,
    %c0_45 = arith.constant 0 : index
    %c1_46 = arith.constant 1 : index
    %62 = vector.load %arg7[%c0_45, %c1_46] : memref<16x8xf32, #tpu.memory_space<vmem>>, vector<16x1xf32>
    tpu.vector_store %arg7[%c0_45, %c1_46], %43 {strides = array<i32>} : memref<16x8xf32, #tpu.memory_space<vmem>>, vector<16x1xf32>,
    %c0_47 = arith.constant 0 : index
    %c0_48 = arith.constant 0 : index
    %c32 = arith.constant 32 : index
    %63 = vector.load %arg3[%c0_47, %c0_48, %c32] : memref<1x16x128xbf16, #tpu.memory_space<vmem>>, vector<1x16x16xbf16>
    %64 = vector.shape_cast %63 : vector<1x16x16xbf16> to vector<16x16xbf16>
    %c0_49 = arith.constant 0 : index
    %c0_50 = arith.constant 0 : index
    %c32_51 = arith.constant 32 : index
    %65 = vector.load %arg4[%c0_49, %c0_50, %c32_51] : memref<1x16x128xbf16, #tpu.memory_space<vmem>>, vector<1x16x16xbf16>
    %66 = vector.shape_cast %65 : vector<1x16x16xbf16> to vector<16x16xbf16>
    %c0_52 = arith.constant 0 : index
    %c0_53 = arith.constant 0 : index
    %c32_54 = arith.constant 32 : index
    %67 = vector.load %arg5[%c0_52, %c0_53, %c32_54] : memref<1x16x128xbf16, #tpu.memory_space<vmem>>, vector<1x16x16xbf16>
    %68 = vector.shape_cast %67 : vector<1x16x16xbf16> to vector<16x16xbf16>
    %cst_55 = arith.constant dense<0.000000e+00> : vector<16x16xf32>
    %69 = tpu.matmul %64, %66, %cst_55 {dimension_numbers = #tpu.dot_dimension_numbers<[1], [1], [0], [0], [0, 0, 1, 0], [], []>} : vector<16x16xbf16>, vector<16x16xbf16>, vector<16x16xf32> -> vector<16x16xf32>
    %c0_56 = arith.constant 0 : index
    %c2 = arith.constant 2 : index
    %70 = vector.load %arg7[%c0_56, %c2] : memref<16x8xf32, #tpu.memory_space<vmem>>, vector<16x1xf32>
    %cst_57 = arith.constant dense<0xFF800000> : vector<16xf32>
    %71 = vector.multi_reduction <maximumf>, %69, %cst_57 [1] : vector<16x16xf32> to vector<16xf32>
    %72 = vector.shape_cast %71 : vector<16xf32> to vector<16x1xf32>
    %73 = arith.maximumf %70, %72 : vector<16x1xf32>
    %74 = arith.subf %70, %73 : vector<16x1xf32>
    %75 = math.exp %74 : vector<16x1xf32>
    %76 = vector.broadcast %73 : vector<16x1xf32> to vector<16x16xf32>
    %77 = arith.subf %69, %76 : vector<16x16xf32>
    %78 = math.exp %77 : vector<16x16xf32>
    %c0_58 = arith.constant 0 : index
    %c2_59 = arith.constant 2 : index
    %79 = vector.load %arg8[%c0_58, %c2_59] : memref<16x8xf32, #tpu.memory_space<vmem>>, vector<16x1xf32>
    %80 = arith.mulf %75, %79 : vector<16x1xf32>
    %cst_60 = arith.constant dense<0.000000e+00> : vector<16xf32>
    %81 = vector.multi_reduction <add>, %78, %cst_60 [1] : vector<16x16xf32> to vector<16xf32>
    %82 = vector.shape_cast %81 : vector<16xf32> to vector<16x1xf32>
    %83 = arith.addf %80, %82 : vector<16x1xf32>
    %c0_61 = arith.constant 0 : index
    %c2_62 = arith.constant 2 : index
    %84 = vector.load %arg8[%c0_61, %c2_62] : memref<16x8xf32, #tpu.memory_space<vmem>>, vector<16x1xf32>
    tpu.vector_store %arg8[%c0_61, %c2_62], %83 {strides = array<i32>} : memref<16x8xf32, #tpu.memory_space<vmem>>, vector<16x1xf32>,
    %c0_63 = arith.constant 0 : index
    %c32_64 = arith.constant 32 : index
    %85 = vector.load %arg9[%c0_63, %c32_64] : memref<16x128xf32, #tpu.memory_space<vmem>>, vector<16x16xf32>
    %86 = vector.broadcast %75 : vector<16x1xf32> to vector<16x16xf32>
    %87 = arith.mulf %86, %85 : vector<16x16xf32>
    %88 = arith.truncf %78 : vector<16x16xf32> to vector<16x16xbf16>
    %cst_65 = arith.constant dense<0.000000e+00> : vector<16x16xf32>
    %89 = tpu.matmul %88, %68, %cst_65 {dimension_numbers = #tpu.dot_dimension_numbers<[1], [0], [0], [1], [0, 0, 1, 1], [], []>} : vector<16x16xbf16>, vector<16x16xbf16>, vector<16x16xf32> -> vector<16x16xf32>
    %90 = arith.addf %87, %89 : vector<16x16xf32>
    %c0_66 = arith.constant 0 : index
    %c32_67 = arith.constant 32 : index
    %91 = vector.load %arg9[%c0_66, %c32_67] : memref<16x128xf32, #tpu.memory_space<vmem>>, vector<16x16xf32>
    tpu.vector_store %arg9[%c0_66, %c32_67], %90 {strides = array<i32>} : memref<16x128xf32, #tpu.memory_space<vmem>>, vector<16x16xf32>,
    %c0_68 = arith.constant 0 : index
    %c2_69 = arith.constant 2 : index
    %92 = vector.load %arg7[%c0_68, %c2_69] : memref<16x8xf32, #tpu.memory_space<vmem>>, vector<16x1xf32>
    tpu.vector_store %arg7[%c0_68, %c2_69], %73 {strides = array<i32>} : memref<16x8xf32, #tpu.memory_space<vmem>>, vector<16x1xf32>,
    %c0_70 = arith.constant 0 : index
    %c0_71 = arith.constant 0 : index
    %c48 = arith.constant 48 : index
    %93 = vector.load %arg3[%c0_70, %c0_71, %c48] : memref<1x16x128xbf16, #tpu.memory_space<vmem>>, vector<1x16x16xbf16>
    %94 = vector.shape_cast %93 : vector<1x16x16xbf16> to vector<16x16xbf16>
    %c0_72 = arith.constant 0 : index
    %c0_73 = arith.constant 0 : index
    %c48_74 = arith.constant 48 : index
    %95 = vector.load %arg4[%c0_72, %c0_73, %c48_74] : memref<1x16x128xbf16, #tpu.memory_space<vmem>>, vector<1x16x16xbf16>
    %96 = vector.shape_cast %95 : vector<1x16x16xbf16> to vector<16x16xbf16>
    %c0_75 = arith.constant 0 : index
    %c0_76 = arith.constant 0 : index
    %c48_77 = arith.constant 48 : index
    %97 = vector.load %arg5[%c0_75, %c0_76, %c48_77] : memref<1x16x128xbf16, #tpu.memory_space<vmem>>, vector<1x16x16xbf16>
    %98 = vector.shape_cast %97 : vector<1x16x16xbf16> to vector<16x16xbf16>
    %cst_78 = arith.constant dense<0.000000e+00> : vector<16x16xf32>
    %99 = tpu.matmul %94, %96, %cst_78 {dimension_numbers = #tpu.dot_dimension_numbers<[1], [1], [0], [0], [0, 0, 1, 0], [], []>} : vector<16x16xbf16>, vector<16x16xbf16>, vector<16x16xf32> -> vector<16x16xf32>
    %c0_79 = arith.constant 0 : index
    %c3 = arith.constant 3 : index
    %100 = vector.load %arg7[%c0_79, %c3] : memref<16x8xf32, #tpu.memory_space<vmem>>, vector<16x1xf32>
    %cst_80 = arith.constant dense<0xFF800000> : vector<16xf32>
    %101 = vector.multi_reduction <maximumf>, %99, %cst_80 [1] : vector<16x16xf32> to vector<16xf32>
    %102 = vector.shape_cast %101 : vector<16xf32> to vector<16x1xf32>
    %103 = arith.maximumf %100, %102 : vector<16x1xf32>
    %104 = arith.subf %100, %103 : vector<16x1xf32>
    %105 = math.exp %104 : vector<16x1xf32>
    %106 = vector.broadcast %103 : vector<16x1xf32> to vector<16x16xf32>
    %107 = arith.subf %99, %106 : vector<16x16xf32>
    %108 = math.exp %107 : vector<16x16xf32>
    %c0_81 = arith.constant 0 : index
    %c3_82 = arith.constant 3 : index
    %109 = vector.load %arg8[%c0_81, %c3_82] : memref<16x8xf32, #tpu.memory_space<vmem>>, vector<16x1xf32>
    %110 = arith.mulf %105, %109 : vector<16x1xf32>
    %cst_83 = arith.constant dense<0.000000e+00> : vector<16xf32>
    %111 = vector.multi_reduction <add>, %108, %cst_83 [1] : vector<16x16xf32> to vector<16xf32>
    %112 = vector.shape_cast %111 : vector<16xf32> to vector<16x1xf32>
    %113 = arith.addf %110, %112 : vector<16x1xf32>
    %c0_84 = arith.constant 0 : index
    %c3_85 = arith.constant 3 : index
    %114 = vector.load %arg8[%c0_84, %c3_85] : memref<16x8xf32, #tpu.memory_space<vmem>>, vector<16x1xf32>
    tpu.vector_store %arg8[%c0_84, %c3_85], %113 {strides = array<i32>} : memref<16x8xf32, #tpu.memory_space<vmem>>, vector<16x1xf32>,
    %c0_86 = arith.constant 0 : index
    %c48_87 = arith.constant 48 : index
    %115 = vector.load %arg9[%c0_86, %c48_87] : memref<16x128xf32, #tpu.memory_space<vmem>>, vector<16x16xf32>
    %116 = vector.broadcast %105 : vector<16x1xf32> to vector<16x16xf32>
    %117 = arith.mulf %116, %115 : vector<16x16xf32>
    %118 = arith.truncf %108 : vector<16x16xf32> to vector<16x16xbf16>
    %cst_88 = arith.constant dense<0.000000e+00> : vector<16x16xf32>
    %119 = tpu.matmul %118, %98, %cst_88 {dimension_numbers = #tpu.dot_dimension_numbers<[1], [0], [0], [1], [0, 0, 1, 1], [], []>} : vector<16x16xbf16>, vector<16x16xbf16>, vector<16x16xf32> -> vector<16x16xf32>
    %120 = arith.addf %117, %119 : vector<16x16xf32>
    %c0_89 = arith.constant 0 : index
    %c48_90 = arith.constant 48 : index
    %121 = vector.load %arg9[%c0_89, %c48_90] : memref<16x128xf32, #tpu.memory_space<vmem>>, vector<16x16xf32>
    tpu.vector_store %arg9[%c0_89, %c48_90], %120 {strides = array<i32>} : memref<16x128xf32, #tpu.memory_space<vmem>>, vector<16x16xf32>,
    %c0_91 = arith.constant 0 : index
    %c3_92 = arith.constant 3 : index
    %122 = vector.load %arg7[%c0_91, %c3_92] : memref<16x8xf32, #tpu.memory_space<vmem>>, vector<16x1xf32>
    tpu.vector_store %arg7[%c0_91, %c3_92], %103 {strides = array<i32>} : memref<16x8xf32, #tpu.memory_space<vmem>>, vector<16x1xf32>,
    %c0_93 = arith.constant 0 : index
    %c0_94 = arith.constant 0 : index
    %c64 = arith.constant 64 : index
    %123 = vector.load %arg3[%c0_93, %c0_94, %c64] : memref<1x16x128xbf16, #tpu.memory_space<vmem>>, vector<1x16x16xbf16>
    %124 = vector.shape_cast %123 : vector<1x16x16xbf16> to vector<16x16xbf16>
    %c0_95 = arith.constant 0 : index
    %c0_96 = arith.constant 0 : index
    %c64_97 = arith.constant 64 : index
    %125 = vector.load %arg4[%c0_95, %c0_96, %c64_97] : memref<1x16x128xbf16, #tpu.memory_space<vmem>>, vector<1x16x16xbf16>
    %126 = vector.shape_cast %125 : vector<1x16x16xbf16> to vector<16x16xbf16>
    %c0_98 = arith.constant 0 : index
    %c0_99 = arith.constant 0 : index
    %c64_100 = arith.constant 64 : index
    %127 = vector.load %arg5[%c0_98, %c0_99, %c64_100] : memref<1x16x128xbf16, #tpu.memory_space<vmem>>, vector<1x16x16xbf16>
    %128 = vector.shape_cast %127 : vector<1x16x16xbf16> to vector<16x16xbf16>
    %cst_101 = arith.constant dense<0.000000e+00> : vector<16x16xf32>
    %129 = tpu.matmul %124, %126, %cst_101 {dimension_numbers = #tpu.dot_dimension_numbers<[1], [1], [0], [0], [0, 0, 1, 0], [], []>} : vector<16x16xbf16>, vector<16x16xbf16>, vector<16x16xf32> -> vector<16x16xf32>
    %c0_102 = arith.constant 0 : index
    %c4 = arith.constant 4 : index
    %130 = vector.load %arg7[%c0_102, %c4] : memref<16x8xf32, #tpu.memory_space<vmem>>, vector<16x1xf32>
    %cst_103 = arith.constant dense<0xFF800000> : vector<16xf32>
    %131 = vector.multi_reduction <maximumf>, %129, %cst_103 [1] : vector<16x16xf32> to vector<16xf32>
    %132 = vector.shape_cast %131 : vector<16xf32> to vector<16x1xf32>
    %133 = arith.maximumf %130, %132 : vector<16x1xf32>
    %134 = arith.subf %130, %133 : vector<16x1xf32>
    %135 = math.exp %134 : vector<16x1xf32>
    %136 = vector.broadcast %133 : vector<16x1xf32> to vector<16x16xf32>
    %137 = arith.subf %129, %136 : vector<16x16xf32>
    %138 = math.exp %137 : vector<16x16xf32>
    %c0_104 = arith.constant 0 : index
    %c4_105 = arith.constant 4 : index
    %139 = vector.load %arg8[%c0_104, %c4_105] : memref<16x8xf32, #tpu.memory_space<vmem>>, vector<16x1xf32>
    %140 = arith.mulf %135, %139 : vector<16x1xf32>
    %cst_106 = arith.constant dense<0.000000e+00> : vector<16xf32>
    %141 = vector.multi_reduction <add>, %138, %cst_106 [1] : vector<16x16xf32> to vector<16xf32>
    %142 = vector.shape_cast %141 : vector<16xf32> to vector<16x1xf32>
    %143 = arith.addf %140, %142 : vector<16x1xf32>
    %c0_107 = arith.constant 0 : index
    %c4_108 = arith.constant 4 : index
    %144 = vector.load %arg8[%c0_107, %c4_108] : memref<16x8xf32, #tpu.memory_space<vmem>>, vector<16x1xf32>
    tpu.vector_store %arg8[%c0_107, %c4_108], %143 {strides = array<i32>} : memref<16x8xf32, #tpu.memory_space<vmem>>, vector<16x1xf32>,
    %c0_109 = arith.constant 0 : index
    %c64_110 = arith.constant 64 : index
    %145 = vector.load %arg9[%c0_109, %c64_110] : memref<16x128xf32, #tpu.memory_space<vmem>>, vector<16x16xf32>
    %146 = vector.broadcast %135 : vector<16x1xf32> to vector<16x16xf32>
    %147 = arith.mulf %146, %145 : vector<16x16xf32>
    %148 = arith.truncf %138 : vector<16x16xf32> to vector<16x16xbf16>
    %cst_111 = arith.constant dense<0.000000e+00> : vector<16x16xf32>
    %149 = tpu.matmul %148, %128, %cst_111 {dimension_numbers = #tpu.dot_dimension_numbers<[1], [0], [0], [1], [0, 0, 1, 1], [], []>} : vector<16x16xbf16>, vector<16x16xbf16>, vector<16x16xf32> -> vector<16x16xf32>
    %150 = arith.addf %147, %149 : vector<16x16xf32>
    %c0_112 = arith.constant 0 : index
    %c64_113 = arith.constant 64 : index
    %151 = vector.load %arg9[%c0_112, %c64_113] : memref<16x128xf32, #tpu.memory_space<vmem>>, vector<16x16xf32>
    tpu.vector_store %arg9[%c0_112, %c64_113], %150 {strides = array<i32>} : memref<16x128xf32, #tpu.memory_space<vmem>>, vector<16x16xf32>,
    %c0_114 = arith.constant 0 : index
    %c4_115 = arith.constant 4 : index
    %152 = vector.load %arg7[%c0_114, %c4_115] : memref<16x8xf32, #tpu.memory_space<vmem>>, vector<16x1xf32>
    tpu.vector_store %arg7[%c0_114, %c4_115], %133 {strides = array<i32>} : memref<16x8xf32, #tpu.memory_space<vmem>>, vector<16x1xf32>,
    %c0_116 = arith.constant 0 : index
    %c0_117 = arith.constant 0 : index
    %c80 = arith.constant 80 : index
    %153 = vector.load %arg3[%c0_116, %c0_117, %c80] : memref<1x16x128xbf16, #tpu.memory_space<vmem>>, vector<1x16x16xbf16>
    %154 = vector.shape_cast %153 : vector<1x16x16xbf16> to vector<16x16xbf16>
    %c0_118 = arith.constant 0 : index
    %c0_119 = arith.constant 0 : index
    %c80_120 = arith.constant 80 : index
    %155 = vector.load %arg4[%c0_118, %c0_119, %c80_120] : memref<1x16x128xbf16, #tpu.memory_space<vmem>>, vector<1x16x16xbf16>
    %156 = vector.shape_cast %155 : vector<1x16x16xbf16> to vector<16x16xbf16>
    %c0_121 = arith.constant 0 : index
    %c0_122 = arith.constant 0 : index
    %c80_123 = arith.constant 80 : index
    %157 = vector.load %arg5[%c0_121, %c0_122, %c80_123] : memref<1x16x128xbf16, #tpu.memory_space<vmem>>, vector<1x16x16xbf16>
    %158 = vector.shape_cast %157 : vector<1x16x16xbf16> to vector<16x16xbf16>
    %cst_124 = arith.constant dense<0.000000e+00> : vector<16x16xf32>
    %159 = tpu.matmul %154, %156, %cst_124 {dimension_numbers = #tpu.dot_dimension_numbers<[1], [1], [0], [0], [0, 0, 1, 0], [], []>} : vector<16x16xbf16>, vector<16x16xbf16>, vector<16x16xf32> -> vector<16x16xf32>
    %c0_125 = arith.constant 0 : index
    %c5 = arith.constant 5 : index
    %160 = vector.load %arg7[%c0_125, %c5] : memref<16x8xf32, #tpu.memory_space<vmem>>, vector<16x1xf32>
    %cst_126 = arith.constant dense<0xFF800000> : vector<16xf32>
    %161 = vector.multi_reduction <maximumf>, %159, %cst_126 [1] : vector<16x16xf32> to vector<16xf32>
    %162 = vector.shape_cast %161 : vector<16xf32> to vector<16x1xf32>
    %163 = arith.maximumf %160, %162 : vector<16x1xf32>
    %164 = arith.subf %160, %163 : vector<16x1xf32>
    %165 = math.exp %164 : vector<16x1xf32>
    %166 = vector.broadcast %163 : vector<16x1xf32> to vector<16x16xf32>
    %167 = arith.subf %159, %166 : vector<16x16xf32>
    %168 = math.exp %167 : vector<16x16xf32>
    %c0_127 = arith.constant 0 : index
    %c5_128 = arith.constant 5 : index
    %169 = vector.load %arg8[%c0_127, %c5_128] : memref<16x8xf32, #tpu.memory_space<vmem>>, vector<16x1xf32>
    %170 = arith.mulf %165, %169 : vector<16x1xf32>
    %cst_129 = arith.constant dense<0.000000e+00> : vector<16xf32>
    %171 = vector.multi_reduction <add>, %168, %cst_129 [1] : vector<16x16xf32> to vector<16xf32>
    %172 = vector.shape_cast %171 : vector<16xf32> to vector<16x1xf32>
    %173 = arith.addf %170, %172 : vector<16x1xf32>
    %c0_130 = arith.constant 0 : index
    %c5_131 = arith.constant 5 : index
    %174 = vector.load %arg8[%c0_130, %c5_131] : memref<16x8xf32, #tpu.memory_space<vmem>>, vector<16x1xf32>
    tpu.vector_store %arg8[%c0_130, %c5_131], %173 {strides = array<i32>} : memref<16x8xf32, #tpu.memory_space<vmem>>, vector<16x1xf32>,
    %c0_132 = arith.constant 0 : index
    %c80_133 = arith.constant 80 : index
    %175 = vector.load %arg9[%c0_132, %c80_133] : memref<16x128xf32, #tpu.memory_space<vmem>>, vector<16x16xf32>
    %176 = vector.broadcast %165 : vector<16x1xf32> to vector<16x16xf32>
    %177 = arith.mulf %176, %175 : vector<16x16xf32>
    %178 = arith.truncf %168 : vector<16x16xf32> to vector<16x16xbf16>
    %cst_134 = arith.constant dense<0.000000e+00> : vector<16x16xf32>
    %179 = tpu.matmul %178, %158, %cst_134 {dimension_numbers = #tpu.dot_dimension_numbers<[1], [0], [0], [1], [0, 0, 1, 1], [], []>} : vector<16x16xbf16>, vector<16x16xbf16>, vector<16x16xf32> -> vector<16x16xf32>
    %180 = arith.addf %177, %179 : vector<16x16xf32>
    %c0_135 = arith.constant 0 : index
    %c80_136 = arith.constant 80 : index
    %181 = vector.load %arg9[%c0_135, %c80_136] : memref<16x128xf32, #tpu.memory_space<vmem>>, vector<16x16xf32>
    tpu.vector_store %arg9[%c0_135, %c80_136], %180 {strides = array<i32>} : memref<16x128xf32, #tpu.memory_space<vmem>>, vector<16x16xf32>,
    %c0_137 = arith.constant 0 : index
    %c5_138 = arith.constant 5 : index
    %182 = vector.load %arg7[%c0_137, %c5_138] : memref<16x8xf32, #tpu.memory_space<vmem>>, vector<16x1xf32>
    tpu.vector_store %arg7[%c0_137, %c5_138], %163 {strides = array<i32>} : memref<16x8xf32, #tpu.memory_space<vmem>>, vector<16x1xf32>,
    %c0_139 = arith.constant 0 : index
    %c0_140 = arith.constant 0 : index
    %c96 = arith.constant 96 : index
    %183 = vector.load %arg3[%c0_139, %c0_140, %c96] : memref<1x16x128xbf16, #tpu.memory_space<vmem>>, vector<1x16x16xbf16>
    %184 = vector.shape_cast %183 : vector<1x16x16xbf16> to vector<16x16xbf16>
    %c0_141 = arith.constant 0 : index
    %c0_142 = arith.constant 0 : index
    %c96_143 = arith.constant 96 : index
    %185 = vector.load %arg4[%c0_141, %c0_142, %c96_143] : memref<1x16x128xbf16, #tpu.memory_space<vmem>>, vector<1x16x16xbf16>
    %186 = vector.shape_cast %185 : vector<1x16x16xbf16> to vector<16x16xbf16>
    %c0_144 = arith.constant 0 : index
    %c0_145 = arith.constant 0 : index
    %c96_146 = arith.constant 96 : index
    %187 = vector.load %arg5[%c0_144, %c0_145, %c96_146] : memref<1x16x128xbf16, #tpu.memory_space<vmem>>, vector<1x16x16xbf16>
    %188 = vector.shape_cast %187 : vector<1x16x16xbf16> to vector<16x16xbf16>
    %cst_147 = arith.constant dense<0.000000e+00> : vector<16x16xf32>
    %189 = tpu.matmul %184, %186, %cst_147 {dimension_numbers = #tpu.dot_dimension_numbers<[1], [1], [0], [0], [0, 0, 1, 0], [], []>} : vector<16x16xbf16>, vector<16x16xbf16>, vector<16x16xf32> -> vector<16x16xf32>
    %c0_148 = arith.constant 0 : index
    %c6 = arith.constant 6 : index
    %190 = vector.load %arg7[%c0_148, %c6] : memref<16x8xf32, #tpu.memory_space<vmem>>, vector<16x1xf32>
    %cst_149 = arith.constant dense<0xFF800000> : vector<16xf32>
    %191 = vector.multi_reduction <maximumf>, %189, %cst_149 [1] : vector<16x16xf32> to vector<16xf32>
    %192 = vector.shape_cast %191 : vector<16xf32> to vector<16x1xf32>
    %193 = arith.maximumf %190, %192 : vector<16x1xf32>
    %194 = arith.subf %190, %193 : vector<16x1xf32>
    %195 = math.exp %194 : vector<16x1xf32>
    %196 = vector.broadcast %193 : vector<16x1xf32> to vector<16x16xf32>
    %197 = arith.subf %189, %196 : vector<16x16xf32>
    %198 = math.exp %197 : vector<16x16xf32>
    %c0_150 = arith.constant 0 : index
    %c6_151 = arith.constant 6 : index
    %199 = vector.load %arg8[%c0_150, %c6_151] : memref<16x8xf32, #tpu.memory_space<vmem>>, vector<16x1xf32>
    %200 = arith.mulf %195, %199 : vector<16x1xf32>
    %cst_152 = arith.constant dense<0.000000e+00> : vector<16xf32>
    %201 = vector.multi_reduction <add>, %198, %cst_152 [1] : vector<16x16xf32> to vector<16xf32>
    %202 = vector.shape_cast %201 : vector<16xf32> to vector<16x1xf32>
    %203 = arith.addf %200, %202 : vector<16x1xf32>
    %c0_153 = arith.constant 0 : index
    %c6_154 = arith.constant 6 : index
    %204 = vector.load %arg8[%c0_153, %c6_154] : memref<16x8xf32, #tpu.memory_space<vmem>>, vector<16x1xf32>
    tpu.vector_store %arg8[%c0_153, %c6_154], %203 {strides = array<i32>} : memref<16x8xf32, #tpu.memory_space<vmem>>, vector<16x1xf32>,
    %c0_155 = arith.constant 0 : index
    %c96_156 = arith.constant 96 : index
    %205 = vector.load %arg9[%c0_155, %c96_156] : memref<16x128xf32, #tpu.memory_space<vmem>>, vector<16x16xf32>
    %206 = vector.broadcast %195 : vector<16x1xf32> to vector<16x16xf32>
    %207 = arith.mulf %206, %205 : vector<16x16xf32>
    %208 = arith.truncf %198 : vector<16x16xf32> to vector<16x16xbf16>
    %cst_157 = arith.constant dense<0.000000e+00> : vector<16x16xf32>
    %209 = tpu.matmul %208, %188, %cst_157 {dimension_numbers = #tpu.dot_dimension_numbers<[1], [0], [0], [1], [0, 0, 1, 1], [], []>} : vector<16x16xbf16>, vector<16x16xbf16>, vector<16x16xf32> -> vector<16x16xf32>
    %210 = arith.addf %207, %209 : vector<16x16xf32>
    %c0_158 = arith.constant 0 : index
    %c96_159 = arith.constant 96 : index
    %211 = vector.load %arg9[%c0_158, %c96_159] : memref<16x128xf32, #tpu.memory_space<vmem>>, vector<16x16xf32>
    tpu.vector_store %arg9[%c0_158, %c96_159], %210 {strides = array<i32>} : memref<16x128xf32, #tpu.memory_space<vmem>>, vector<16x16xf32>,
    %c0_160 = arith.constant 0 : index
    %c6_161 = arith.constant 6 : index
    %212 = vector.load %arg7[%c0_160, %c6_161] : memref<16x8xf32, #tpu.memory_space<vmem>>, vector<16x1xf32>
    tpu.vector_store %arg7[%c0_160, %c6_161], %193 {strides = array<i32>} : memref<16x8xf32, #tpu.memory_space<vmem>>, vector<16x1xf32>,
    %c0_162 = arith.constant 0 : index
    %c0_163 = arith.constant 0 : index
    %c112 = arith.constant 112 : index
    %213 = vector.load %arg3[%c0_162, %c0_163, %c112] : memref<1x16x128xbf16, #tpu.memory_space<vmem>>, vector<1x16x16xbf16>
    %214 = vector.shape_cast %213 : vector<1x16x16xbf16> to vector<16x16xbf16>
    %c0_164 = arith.constant 0 : index
    %c0_165 = arith.constant 0 : index
    %c112_166 = arith.constant 112 : index
    %215 = vector.load %arg4[%c0_164, %c0_165, %c112_166] : memref<1x16x128xbf16, #tpu.memory_space<vmem>>, vector<1x16x16xbf16>
    %216 = vector.shape_cast %215 : vector<1x16x16xbf16> to vector<16x16xbf16>
    %c0_167 = arith.constant 0 : index
    %c0_168 = arith.constant 0 : index
    %c112_169 = arith.constant 112 : index
    %217 = vector.load %arg5[%c0_167, %c0_168, %c112_169] : memref<1x16x128xbf16, #tpu.memory_space<vmem>>, vector<1x16x16xbf16>
    %218 = vector.shape_cast %217 : vector<1x16x16xbf16> to vector<16x16xbf16>
    %cst_170 = arith.constant dense<0.000000e+00> : vector<16x16xf32>
    %219 = tpu.matmul %214, %216, %cst_170 {dimension_numbers = #tpu.dot_dimension_numbers<[1], [1], [0], [0], [0, 0, 1, 0], [], []>} : vector<16x16xbf16>, vector<16x16xbf16>, vector<16x16xf32> -> vector<16x16xf32>
    %c0_171 = arith.constant 0 : index
    %c7 = arith.constant 7 : index
    %220 = vector.load %arg7[%c0_171, %c7] : memref<16x8xf32, #tpu.memory_space<vmem>>, vector<16x1xf32>
    %cst_172 = arith.constant dense<0xFF800000> : vector<16xf32>
    %221 = vector.multi_reduction <maximumf>, %219, %cst_172 [1] : vector<16x16xf32> to vector<16xf32>
    %222 = vector.shape_cast %221 : vector<16xf32> to vector<16x1xf32>
    %223 = arith.maximumf %220, %222 : vector<16x1xf32>
    %224 = arith.subf %220, %223 : vector<16x1xf32>
    %225 = math.exp %224 : vector<16x1xf32>
    %226 = vector.broadcast %223 : vector<16x1xf32> to vector<16x16xf32>
    %227 = arith.subf %219, %226 : vector<16x16xf32>
    %228 = math.exp %227 : vector<16x16xf32>
    %c0_173 = arith.constant 0 : index
    %c7_174 = arith.constant 7 : index
    %229 = vector.load %arg8[%c0_173, %c7_174] : memref<16x8xf32, #tpu.memory_space<vmem>>, vector<16x1xf32>
    %230 = arith.mulf %225, %229 : vector<16x1xf32>
    %cst_175 = arith.constant dense<0.000000e+00> : vector<16xf32>
    %231 = vector.multi_reduction <add>, %228, %cst_175 [1] : vector<16x16xf32> to vector<16xf32>
    %232 = vector.shape_cast %231 : vector<16xf32> to vector<16x1xf32>
    %233 = arith.addf %230, %232 : vector<16x1xf32>
    %c0_176 = arith.constant 0 : index
    %c7_177 = arith.constant 7 : index
    %234 = vector.load %arg8[%c0_176, %c7_177] : memref<16x8xf32, #tpu.memory_space<vmem>>, vector<16x1xf32>
    tpu.vector_store %arg8[%c0_176, %c7_177], %233 {strides = array<i32>} : memref<16x8xf32, #tpu.memory_space<vmem>>, vector<16x1xf32>,
    %c0_178 = arith.constant 0 : index
    %c112_179 = arith.constant 112 : index
    %235 = vector.load %arg9[%c0_178, %c112_179] : memref<16x128xf32, #tpu.memory_space<vmem>>, vector<16x16xf32>
    %236 = vector.broadcast %225 : vector<16x1xf32> to vector<16x16xf32>
    %237 = arith.mulf %236, %235 : vector<16x16xf32>
    %238 = arith.truncf %228 : vector<16x16xf32> to vector<16x16xbf16>
    %cst_180 = arith.constant dense<0.000000e+00> : vector<16x16xf32>
    %239 = tpu.matmul %238, %218, %cst_180 {dimension_numbers = #tpu.dot_dimension_numbers<[1], [0], [0], [1], [0, 0, 1, 1], [], []>} : vector<16x16xbf16>, vector<16x16xbf16>, vector<16x16xf32> -> vector<16x16xf32>
    %240 = arith.addf %237, %239 : vector<16x16xf32>
    %c0_181 = arith.constant 0 : index
    %c112_182 = arith.constant 112 : index
    %241 = vector.load %arg9[%c0_181, %c112_182] : memref<16x128xf32, #tpu.memory_space<vmem>>, vector<16x16xf32>
    tpu.vector_store %arg9[%c0_181, %c112_182], %240 {strides = array<i32>} : memref<16x128xf32, #tpu.memory_space<vmem>>, vector<16x16xf32>,
    %c0_183 = arith.constant 0 : index
    %c7_184 = arith.constant 7 : index
    %242 = vector.load %arg7[%c0_183, %c7_184] : memref<16x8xf32, #tpu.memory_space<vmem>>, vector<16x1xf32>
    tpu.vector_store %arg7[%c0_183, %c7_184], %223 {strides = array<i32>} : memref<16x8xf32, #tpu.memory_space<vmem>>, vector<16x1xf32>,
    %c0_i32_185 = arith.constant 0 : i32
    %243 = arith.cmpi eq, %arg2, %c0_i32_185 : i32
    %244 = arith.extui %243 : i1 to i32
    %c0_i32_186 = arith.constant 0 : i32
    %245 = arith.cmpi ne, %244, %c0_i32_186 : i32
    scf.if %245 {
      %c0_187 = arith.constant 0 : index
      %c0_188 = arith.constant 0 : index
      %246 = vector.load %arg8[%c0_187, %c0_188] : memref<16x8xf32, #tpu.memory_space<vmem>>, vector<16x1xf32>
      %247 = tpu.reciprocal %246 {approx = true} : vector<16x1xf32> -> vector<16x1xf32>
      %c0_189 = arith.constant 0 : index
      %c0_190 = arith.constant 0 : index
      %248 = vector.load %arg9[%c0_189, %c0_190] : memref<16x128xf32, #tpu.memory_space<vmem>>, vector<16x16xf32>
      %249 = vector.broadcast %247 : vector<16x1xf32> to vector<16x16xf32>
      %250 = arith.mulf %248, %249 : vector<16x16xf32>
      %251 = arith.truncf %250 : vector<16x16xf32> to vector<16x16xbf16>
      %c0_191 = arith.constant 0 : index
      %c0_192 = arith.constant 0 : index
      %c0_193 = arith.constant 0 : index
      %252 = vector.load %arg6[%c0_191, %c0_192, %c0_193] : memref<1x16x128xbf16, #tpu.memory_space<vmem>>, vector<1x16x16xbf16>
      %253 = vector.shape_cast %252 : vector<1x16x16xbf16> to vector<16x16xbf16>
      %254 = vector.shape_cast %251 : vector<16x16xbf16> to vector<1x16x16xbf16>
      tpu.vector_store %arg6[%c0_191, %c0_192, %c0_193], %254 {strides = array<i32>} : memref<1x16x128xbf16, #tpu.memory_space<vmem>>, vector<1x16x16xbf16>,
      %c0_194 = arith.constant 0 : index
      %c1_195 = arith.constant 1 : index
      %255 = vector.load %arg8[%c0_194, %c1_195] : memref<16x8xf32, #tpu.memory_space<vmem>>, vector<16x1xf32>
      %256 = tpu.reciprocal %255 {approx = true} : vector<16x1xf32> -> vector<16x1xf32>
      %c0_196 = arith.constant 0 : index
      %c16_197 = arith.constant 16 : index
      %257 = vector.load %arg9[%c0_196, %c16_197] : memref<16x128xf32, #tpu.memory_space<vmem>>, vector<16x16xf32>
      %258 = vector.broadcast %256 : vector<16x1xf32> to vector<16x16xf32>
      %259 = arith.mulf %257, %258 : vector<16x16xf32>
      %260 = arith.truncf %259 : vector<16x16xf32> to vector<16x16xbf16>
      %c0_198 = arith.constant 0 : index
      %c0_199 = arith.constant 0 : index
      %c16_200 = arith.constant 16 : index
      %261 = vector.load %arg6[%c0_198, %c0_199, %c16_200] : memref<1x16x128xbf16, #tpu.memory_space<vmem>>, vector<1x16x16xbf16>
      %262 = vector.shape_cast %261 : vector<1x16x16xbf16> to vector<16x16xbf16>
      %263 = vector.shape_cast %260 : vector<16x16xbf16> to vector<1x16x16xbf16>
      tpu.vector_store %arg6[%c0_198, %c0_199, %c16_200], %263 {strides = array<i32>} : memref<1x16x128xbf16, #tpu.memory_space<vmem>>, vector<1x16x16xbf16>,
      %c0_201 = arith.constant 0 : index
      %c2_202 = arith.constant 2 : index
      %264 = vector.load %arg8[%c0_201, %c2_202] : memref<16x8xf32, #tpu.memory_space<vmem>>, vector<16x1xf32>
      %265 = tpu.reciprocal %264 {approx = true} : vector<16x1xf32> -> vector<16x1xf32>
      %c0_203 = arith.constant 0 : index
      %c32_204 = arith.constant 32 : index
      %266 = vector.load %arg9[%c0_203, %c32_204] : memref<16x128xf32, #tpu.memory_space<vmem>>, vector<16x16xf32>
      %267 = vector.broadcast %265 : vector<16x1xf32> to vector<16x16xf32>
      %268 = arith.mulf %266, %267 : vector<16x16xf32>
      %269 = arith.truncf %268 : vector<16x16xf32> to vector<16x16xbf16>
      %c0_205 = arith.constant 0 : index
      %c0_206 = arith.constant 0 : index
      %c32_207 = arith.constant 32 : index
      %270 = vector.load %arg6[%c0_205, %c0_206, %c32_207] : memref<1x16x128xbf16, #tpu.memory_space<vmem>>, vector<1x16x16xbf16>
      %271 = vector.shape_cast %270 : vector<1x16x16xbf16> to vector<16x16xbf16>
      %272 = vector.shape_cast %269 : vector<16x16xbf16> to vector<1x16x16xbf16>
      tpu.vector_store %arg6[%c0_205, %c0_206, %c32_207], %272 {strides = array<i32>} : memref<1x16x128xbf16, #tpu.memory_space<vmem>>, vector<1x16x16xbf16>,
      %c0_208 = arith.constant 0 : index
      %c3_209 = arith.constant 3 : index
      %273 = vector.load %arg8[%c0_208, %c3_209] : memref<16x8xf32, #tpu.memory_space<vmem>>, vector<16x1xf32>
      %274 = tpu.reciprocal %273 {approx = true} : vector<16x1xf32> -> vector<16x1xf32>
      %c0_210 = arith.constant 0 : index
      %c48_211 = arith.constant 48 : index
      %275 = vector.load %arg9[%c0_210, %c48_211] : memref<16x128xf32, #tpu.memory_space<vmem>>, vector<16x16xf32>
      %276 = vector.broadcast %274 : vector<16x1xf32> to vector<16x16xf32>
      %277 = arith.mulf %275, %276 : vector<16x16xf32>
      %278 = arith.truncf %277 : vector<16x16xf32> to vector<16x16xbf16>
      %c0_212 = arith.constant 0 : index
      %c0_213 = arith.constant 0 : index
      %c48_214 = arith.constant 48 : index
      %279 = vector.load %arg6[%c0_212, %c0_213, %c48_214] : memref<1x16x128xbf16, #tpu.memory_space<vmem>>, vector<1x16x16xbf16>
      %280 = vector.shape_cast %279 : vector<1x16x16xbf16> to vector<16x16xbf16>
      %281 = vector.shape_cast %278 : vector<16x16xbf16> to vector<1x16x16xbf16>
      tpu.vector_store %arg6[%c0_212, %c0_213, %c48_214], %281 {strides = array<i32>} : memref<1x16x128xbf16, #tpu.memory_space<vmem>>, vector<1x16x16xbf16>,
      %c0_215 = arith.constant 0 : index
      %c4_216 = arith.constant 4 : index
      %282 = vector.load %arg8[%c0_215, %c4_216] : memref<16x8xf32, #tpu.memory_space<vmem>>, vector<16x1xf32>
      %283 = tpu.reciprocal %282 {approx = true} : vector<16x1xf32> -> vector<16x1xf32>
      %c0_217 = arith.constant 0 : index
      %c64_218 = arith.constant 64 : index
      %284 = vector.load %arg9[%c0_217, %c64_218] : memref<16x128xf32, #tpu.memory_space<vmem>>, vector<16x16xf32>
      %285 = vector.broadcast %283 : vector<16x1xf32> to vector<16x16xf32>
      %286 = arith.mulf %284, %285 : vector<16x16xf32>
      %287 = arith.truncf %286 : vector<16x16xf32> to vector<16x16xbf16>
      %c0_219 = arith.constant 0 : index
      %c0_220 = arith.constant 0 : index
      %c64_221 = arith.constant 64 : index
      %288 = vector.load %arg6[%c0_219, %c0_220, %c64_221] : memref<1x16x128xbf16, #tpu.memory_space<vmem>>, vector<1x16x16xbf16>
      %289 = vector.shape_cast %288 : vector<1x16x16xbf16> to vector<16x16xbf16>
      %290 = vector.shape_cast %287 : vector<16x16xbf16> to vector<1x16x16xbf16>
      tpu.vector_store %arg6[%c0_219, %c0_220, %c64_221], %290 {strides = array<i32>} : memref<1x16x128xbf16, #tpu.memory_space<vmem>>, vector<1x16x16xbf16>,
      %c0_222 = arith.constant 0 : index
      %c5_223 = arith.constant 5 : index
      %291 = vector.load %arg8[%c0_222, %c5_223] : memref<16x8xf32, #tpu.memory_space<vmem>>, vector<16x1xf32>
      %292 = tpu.reciprocal %291 {approx = true} : vector<16x1xf32> -> vector<16x1xf32>
      %c0_224 = arith.constant 0 : index
      %c80_225 = arith.constant 80 : index
      %293 = vector.load %arg9[%c0_224, %c80_225] : memref<16x128xf32, #tpu.memory_space<vmem>>, vector<16x16xf32>
      %294 = vector.broadcast %292 : vector<16x1xf32> to vector<16x16xf32>
      %295 = arith.mulf %293, %294 : vector<16x16xf32>
      %296 = arith.truncf %295 : vector<16x16xf32> to vector<16x16xbf16>
      %c0_226 = arith.constant 0 : index
      %c0_227 = arith.constant 0 : index
      %c80_228 = arith.constant 80 : index
      %297 = vector.load %arg6[%c0_226, %c0_227, %c80_228] : memref<1x16x128xbf16, #tpu.memory_space<vmem>>, vector<1x16x16xbf16>
      %298 = vector.shape_cast %297 : vector<1x16x16xbf16> to vector<16x16xbf16>
      %299 = vector.shape_cast %296 : vector<16x16xbf16> to vector<1x16x16xbf16>
      tpu.vector_store %arg6[%c0_226, %c0_227, %c80_228], %299 {strides = array<i32>} : memref<1x16x128xbf16, #tpu.memory_space<vmem>>, vector<1x16x16xbf16>,
      %c0_229 = arith.constant 0 : index
      %c6_230 = arith.constant 6 : index
      %300 = vector.load %arg8[%c0_229, %c6_230] : memref<16x8xf32, #tpu.memory_space<vmem>>, vector<16x1xf32>
      %301 = tpu.reciprocal %300 {approx = true} : vector<16x1xf32> -> vector<16x1xf32>
      %c0_231 = arith.constant 0 : index
      %c96_232 = arith.constant 96 : index
      %302 = vector.load %arg9[%c0_231, %c96_232] : memref<16x128xf32, #tpu.memory_space<vmem>>, vector<16x16xf32>
      %303 = vector.broadcast %301 : vector<16x1xf32> to vector<16x16xf32>
      %304 = arith.mulf %302, %303 : vector<16x16xf32>
      %305 = arith.truncf %304 : vector<16x16xf32> to vector<16x16xbf16>
      %c0_233 = arith.constant 0 : index
      %c0_234 = arith.constant 0 : index
      %c96_235 = arith.constant 96 : index
      %306 = vector.load %arg6[%c0_233, %c0_234, %c96_235] : memref<1x16x128xbf16, #tpu.memory_space<vmem>>, vector<1x16x16xbf16>
      %307 = vector.shape_cast %306 : vector<1x16x16xbf16> to vector<16x16xbf16>
      %308 = vector.shape_cast %305 : vector<16x16xbf16> to vector<1x16x16xbf16>
      tpu.vector_store %arg6[%c0_233, %c0_234, %c96_235], %308 {strides = array<i32>} : memref<1x16x128xbf16, #tpu.memory_space<vmem>>, vector<1x16x16xbf16>,
      %c0_236 = arith.constant 0 : index
      %c7_237 = arith.constant 7 : index
      %309 = vector.load %arg8[%c0_236, %c7_237] : memref<16x8xf32, #tpu.memory_space<vmem>>, vector<16x1xf32>
      %310 = tpu.reciprocal %309 {approx = true} : vector<16x1xf32> -> vector<16x1xf32>
      %c0_238 = arith.constant 0 : index
      %c112_239 = arith.constant 112 : index
      %311 = vector.load %arg9[%c0_238, %c112_239] : memref<16x128xf32, #tpu.memory_space<vmem>>, vector<16x16xf32>
      %312 = vector.broadcast %310 : vector<16x1xf32> to vector<16x16xf32>
      %313 = arith.mulf %311, %312 : vector<16x16xf32>
      %314 = arith.truncf %313 : vector<16x16xf32> to vector<16x16xbf16>
      %c0_240 = arith.constant 0 : index
      %c0_241 = arith.constant 0 : index
      %c112_242 = arith.constant 112 : index
      %315 = vector.load %arg6[%c0_240, %c0_241, %c112_242] : memref<1x16x128xbf16, #tpu.memory_space<vmem>>, vector<1x16x16xbf16>
      %316 = vector.shape_cast %315 : vector<1x16x16xbf16> to vector<16x16xbf16>
      %317 = vector.shape_cast %314 : vector<16x16xbf16> to vector<1x16x16xbf16>
      tpu.vector_store %arg6[%c0_240, %c0_241, %c112_242], %317 {strides = array<i32>} : memref<1x16x128xbf16, #tpu.memory_space<vmem>>, vector<1x16x16xbf16>,
    } else {
    }
    return
  }
  func.func @transform_0(%arg0: i32, %arg1: i32, %arg2: i32) -> (i32, i32, i32) {
    %c0_i32 = arith.constant 0 : i32
    %c0_i32_0 = arith.constant 0 : i32
    return %arg0, %arg1, %c0_i32 : i32, i32, i32
  }
  func.func @transform_1(%arg0: i32, %arg1: i32, %arg2: i32) -> (i32, i32, i32) {
    %c0_i32 = arith.constant 0 : i32
    %c0_i32_0 = arith.constant 0 : i32
    return %arg0, %arg2, %c0_i32 : i32, i32, i32
  }
  func.func @transform_2(%arg0: i32, %arg1: i32, %arg2: i32) -> (i32, i32, i32) {
    %c0_i32 = arith.constant 0 : i32
    %c0_i32_0 = arith.constant 0 : i32
    return %arg0, %arg2, %c0_i32 : i32, i32, i32
  }
  func.func @transform_3(%arg0: i32, %arg1: i32, %arg2: i32) -> (i32, i32, i32) {
    %c0_i32 = arith.constant 0 : i32
    %c0_i32_0 = arith.constant 0 : i32
    return %arg0, %arg1, %c0_i32 : i32, i32, i32
  }
}

module attributes {stable_mosaic.version = 11 : i64} {
  func.func @_matmul_bias_kernel(%arg0: i32, %arg1: i32, %arg2: i32, %arg3: memref<32x128xbf16, #tpu.memory_space<vmem>>, %arg4: memref<128x128xbf16, #tpu.memory_space<vmem>>, %arg5: memref<1x128xf32, #tpu.memory_space<vmem>>, %arg6: memref<32x128xf32, #tpu.memory_space<vmem>>, %arg7: memref<32x128xf32, #tpu.memory_space<vmem>>) attributes {dimension_semantics = [#tpu.dimension_semantics<parallel>, #tpu.dimension_semantics<parallel>, #tpu.dimension_semantics<arbitrary>], iteration_bounds = array<i64: 1, 1, 1>, scalar_prefetch = 0 : i64, scratch_operands = 1 : i64, tpu.core_type = #tpu.core_type<tc>, window_params = [{transform_indices = @transform_0, window_bounds = array<i64: 32, 128>}, {transform_indices = @transform_1, window_bounds = array<i64: 128, 128>}, {transform_indices = @transform_2, window_bounds = array<i64: 1, 128>}, {transform_indices = @transform_3, window_bounds = array<i64: 32, 128>}]} {
    %c0_i32 = arith.constant 0 : i32
    %0 = arith.cmpi eq, %arg2, %c0_i32 : i32
    %1 = arith.extui %0 : i1 to i32
    %c0_i32_0 = arith.constant 0 : i32
    %2 = arith.cmpi ne, %1, %c0_i32_0 : i32
    scf.if %2 {
      %cst_10 = arith.constant 0.000000e+00 : f32
      %12 = vector.broadcast %cst_10 : f32 to vector<32x128xf32>
      %c0_11 = arith.constant 0 : index
      %c0_12 = arith.constant 0 : index
      %13 = vector.load %arg7[%c0_11, %c0_12] : memref<32x128xf32, #tpu.memory_space<vmem>>, vector<32x128xf32>
      tpu.vector_store %arg7[%c0_11, %c0_12], %12 {strides = array<i32>} : memref<32x128xf32, #tpu.memory_space<vmem>>, vector<32x128xf32>,
    } else {
    }
    %c0 = arith.constant 0 : index
    %c0_1 = arith.constant 0 : index
    %3 = vector.load %arg7[%c0, %c0_1] : memref<32x128xf32, #tpu.memory_space<vmem>>, vector<32x128xf32>
    %c0_2 = arith.constant 0 : index
    %c0_3 = arith.constant 0 : index
    %4 = vector.load %arg3[%c0_2, %c0_3] : memref<32x128xbf16, #tpu.memory_space<vmem>>, vector<32x128xbf16>
    %c0_4 = arith.constant 0 : index
    %c0_5 = arith.constant 0 : index
    %5 = vector.load %arg4[%c0_4, %c0_5] : memref<128x128xbf16, #tpu.memory_space<vmem>>, vector<128x128xbf16>
    %cst = arith.constant dense<0.000000e+00> : vector<32x128xf32>
    %6 = tpu.matmul %4, %5, %cst {dimension_numbers = #tpu.dot_dimension_numbers<[1], [0], [0], [1], [0, 0, 1, 1], [], []>} : vector<32x128xbf16>, vector<128x128xbf16>, vector<32x128xf32> -> vector<32x128xf32>
    %7 = arith.addf %3, %6 : vector<32x128xf32>
    %c0_6 = arith.constant 0 : index
    %c0_7 = arith.constant 0 : index
    %8 = vector.load %arg7[%c0_6, %c0_7] : memref<32x128xf32, #tpu.memory_space<vmem>>, vector<32x128xf32>
    tpu.vector_store %arg7[%c0_6, %c0_7], %7 {strides = array<i32>} : memref<32x128xf32, #tpu.memory_space<vmem>>, vector<32x128xf32>,
    %c0_i32_8 = arith.constant 0 : i32
    %9 = arith.cmpi eq, %arg2, %c0_i32_8 : i32
    %10 = arith.extui %9 : i1 to i32
    %c0_i32_9 = arith.constant 0 : i32
    %11 = arith.cmpi ne, %10, %c0_i32_9 : i32
    scf.if %11 {
      %c0_10 = arith.constant 0 : index
      %c0_11 = arith.constant 0 : index
      %12 = vector.load %arg7[%c0_10, %c0_11] : memref<32x128xf32, #tpu.memory_space<vmem>>, vector<32x128xf32>
      %c0_12 = arith.constant 0 : index
      %c0_13 = arith.constant 0 : index
      %13 = vector.load %arg5[%c0_12, %c0_13] : memref<1x128xf32, #tpu.memory_space<vmem>>, vector<1x128xf32>
      %14 = vector.broadcast %13 : vector<1x128xf32> to vector<32x128xf32>
      %15 = arith.addf %12, %14 : vector<32x128xf32>
      %c0_14 = arith.constant 0 : index
      %c0_15 = arith.constant 0 : index
      %16 = vector.load %arg6[%c0_14, %c0_15] : memref<32x128xf32, #tpu.memory_space<vmem>>, vector<32x128xf32>
      tpu.vector_store %arg6[%c0_14, %c0_15], %15 {strides = array<i32>} : memref<32x128xf32, #tpu.memory_space<vmem>>, vector<32x128xf32>,
    } else {
    }
    return
  }
  func.func @transform_0(%arg0: i32, %arg1: i32, %arg2: i32) -> (i32, i32) {
    %c0_i32 = arith.constant 0 : i32
    return %arg0, %arg2 : i32, i32
  }
  func.func @transform_1(%arg0: i32, %arg1: i32, %arg2: i32) -> (i32, i32) {
    %c0_i32 = arith.constant 0 : i32
    return %arg2, %arg1 : i32, i32
  }
  func.func @transform_2(%arg0: i32, %arg1: i32, %arg2: i32) -> (i32, i32) {
    %c0_i32 = arith.constant 0 : i32
    %c0_i32_0 = arith.constant 0 : i32
    return %c0_i32, %arg1 : i32, i32
  }
  func.func @transform_3(%arg0: i32, %arg1: i32, %arg2: i32) -> (i32, i32) {
    %c0_i32 = arith.constant 0 : i32
    return %arg0, %arg1 : i32, i32
  }
}

module attributes {stable_mosaic.version = 11 : i64} {
  func.func @_qkv_matmul_kernel(%arg0: i32, %arg1: i32, %arg2: i32, %arg3: memref<32x128xbf16, #tpu.memory_space<vmem>>, %arg4: memref<128x128xbf16, #tpu.memory_space<vmem>>, %arg5: memref<128x128xbf16, #tpu.memory_space<vmem>>, %arg6: memref<128x128xbf16, #tpu.memory_space<vmem>>, %arg7: memref<32x128xbf16, #tpu.memory_space<vmem>>, %arg8: memref<32x128xbf16, #tpu.memory_space<vmem>>, %arg9: memref<32x128xbf16, #tpu.memory_space<vmem>>, %arg10: memref<32x128xf32, #tpu.memory_space<vmem>>, %arg11: memref<32x128xf32, #tpu.memory_space<vmem>>, %arg12: memref<32x128xf32, #tpu.memory_space<vmem>>) attributes {dimension_semantics = [#tpu.dimension_semantics<parallel>, #tpu.dimension_semantics<parallel>, #tpu.dimension_semantics<arbitrary>], iteration_bounds = array<i64: 1, 1, 1>, scalar_prefetch = 0 : i64, scratch_operands = 3 : i64, tpu.core_type = #tpu.core_type<tc>, window_params = [{transform_indices = @transform_0, window_bounds = array<i64: 32, 128>}, {transform_indices = @transform_1, window_bounds = array<i64: 128, 128>}, {transform_indices = @transform_2, window_bounds = array<i64: 128, 128>}, {transform_indices = @transform_3, window_bounds = array<i64: 128, 128>}, {transform_indices = @transform_4, window_bounds = array<i64: 32, 128>}, {transform_indices = @transform_5, window_bounds = array<i64: 32, 128>}, {transform_indices = @transform_6, window_bounds = array<i64: 32, 128>}]} {
    %c0_i32 = arith.constant 0 : i32
    %0 = arith.cmpi eq, %arg2, %c0_i32 : i32
    %1 = arith.extui %0 : i1 to i32
    %c0_i32_0 = arith.constant 0 : i32
    %2 = arith.cmpi ne, %1, %c0_i32_0 : i32
    scf.if %2 {
      %cst_24 = arith.constant 0.000000e+00 : f32
      %22 = vector.broadcast %cst_24 : f32 to vector<32x128xf32>
      %c0_25 = arith.constant 0 : index
      %c0_26 = arith.constant 0 : index
      %23 = vector.load %arg10[%c0_25, %c0_26] : memref<32x128xf32, #tpu.memory_space<vmem>>, vector<32x128xf32>
      tpu.vector_store %arg10[%c0_25, %c0_26], %22 {strides = array<i32>} : memref<32x128xf32, #tpu.memory_space<vmem>>, vector<32x128xf32>,
      %cst_27 = arith.constant 0.000000e+00 : f32
      %24 = vector.broadcast %cst_27 : f32 to vector<32x128xf32>
      %c0_28 = arith.constant 0 : index
      %c0_29 = arith.constant 0 : index
      %25 = vector.load %arg11[%c0_28, %c0_29] : memref<32x128xf32, #tpu.memory_space<vmem>>, vector<32x128xf32>
      tpu.vector_store %arg11[%c0_28, %c0_29], %24 {strides = array<i32>} : memref<32x128xf32, #tpu.memory_space<vmem>>, vector<32x128xf32>,
      %cst_30 = arith.constant 0.000000e+00 : f32
      %26 = vector.broadcast %cst_30 : f32 to vector<32x128xf32>
      %c0_31 = arith.constant 0 : index
      %c0_32 = arith.constant 0 : index
      %27 = vector.load %arg12[%c0_31, %c0_32] : memref<32x128xf32, #tpu.memory_space<vmem>>, vector<32x128xf32>
      tpu.vector_store %arg12[%c0_31, %c0_32], %26 {strides = array<i32>} : memref<32x128xf32, #tpu.memory_space<vmem>>, vector<32x128xf32>,
    } else {
    }
    %c0 = arith.constant 0 : index
    %c0_1 = arith.constant 0 : index
    %3 = vector.load %arg3[%c0, %c0_1] : memref<32x128xbf16, #tpu.memory_space<vmem>>, vector<32x128xbf16>
    %c0_2 = arith.constant 0 : index
    %c0_3 = arith.constant 0 : index
    %4 = vector.load %arg10[%c0_2, %c0_3] : memref<32x128xf32, #tpu.memory_space<vmem>>, vector<32x128xf32>
    %c0_4 = arith.constant 0 : index
    %c0_5 = arith.constant 0 : index
    %5 = vector.load %arg4[%c0_4, %c0_5] : memref<128x128xbf16, #tpu.memory_space<vmem>>, vector<128x128xbf16>
    %cst = arith.constant dense<0.000000e+00> : vector<32x128xf32>
    %6 = tpu.matmul %3, %5, %cst {dimension_numbers = #tpu.dot_dimension_numbers<[1], [0], [0], [1], [0, 0, 1, 1], [], []>} : vector<32x128xbf16>, vector<128x128xbf16>, vector<32x128xf32> -> vector<32x128xf32>
    %7 = arith.addf %4, %6 : vector<32x128xf32>
    %c0_6 = arith.constant 0 : index
    %c0_7 = arith.constant 0 : index
    %8 = vector.load %arg10[%c0_6, %c0_7] : memref<32x128xf32, #tpu.memory_space<vmem>>, vector<32x128xf32>
    tpu.vector_store %arg10[%c0_6, %c0_7], %7 {strides = array<i32>} : memref<32x128xf32, #tpu.memory_space<vmem>>, vector<32x128xf32>,
    %c0_8 = arith.constant 0 : index
    %c0_9 = arith.constant 0 : index
    %9 = vector.load %arg11[%c0_8, %c0_9] : memref<32x128xf32, #tpu.memory_space<vmem>>, vector<32x128xf32>
    %c0_10 = arith.constant 0 : index
    %c0_11 = arith.constant 0 : index
    %10 = vector.load %arg5[%c0_10, %c0_11] : memref<128x128xbf16, #tpu.memory_space<vmem>>, vector<128x128xbf16>
    %cst_12 = arith.constant dense<0.000000e+00> : vector<32x128xf32>
    %11 = tpu.matmul %3, %10, %cst_12 {dimension_numbers = #tpu.dot_dimension_numbers<[1], [0], [0], [1], [0, 0, 1, 1], [], []>} : vector<32x128xbf16>, vector<128x128xbf16>, vector<32x128xf32> -> vector<32x128xf32>
    %12 = arith.addf %9, %11 : vector<32x128xf32>
    %c0_13 = arith.constant 0 : index
    %c0_14 = arith.constant 0 : index
    %13 = vector.load %arg11[%c0_13, %c0_14] : memref<32x128xf32, #tpu.memory_space<vmem>>, vector<32x128xf32>
    tpu.vector_store %arg11[%c0_13, %c0_14], %12 {strides = array<i32>} : memref<32x128xf32, #tpu.memory_space<vmem>>, vector<32x128xf32>,
    %c0_15 = arith.constant 0 : index
    %c0_16 = arith.constant 0 : index
    %14 = vector.load %arg12[%c0_15, %c0_16] : memref<32x128xf32, #tpu.memory_space<vmem>>, vector<32x128xf32>
    %c0_17 = arith.constant 0 : index
    %c0_18 = arith.constant 0 : index
    %15 = vector.load %arg6[%c0_17, %c0_18] : memref<128x128xbf16, #tpu.memory_space<vmem>>, vector<128x128xbf16>
    %cst_19 = arith.constant dense<0.000000e+00> : vector<32x128xf32>
    %16 = tpu.matmul %3, %15, %cst_19 {dimension_numbers = #tpu.dot_dimension_numbers<[1], [0], [0], [1], [0, 0, 1, 1], [], []>} : vector<32x128xbf16>, vector<128x128xbf16>, vector<32x128xf32> -> vector<32x128xf32>
    %17 = arith.addf %14, %16 : vector<32x128xf32>
    %c0_20 = arith.constant 0 : index
    %c0_21 = arith.constant 0 : index
    %18 = vector.load %arg12[%c0_20, %c0_21] : memref<32x128xf32, #tpu.memory_space<vmem>>, vector<32x128xf32>
    tpu.vector_store %arg12[%c0_20, %c0_21], %17 {strides = array<i32>} : memref<32x128xf32, #tpu.memory_space<vmem>>, vector<32x128xf32>,
    %c0_i32_22 = arith.constant 0 : i32
    %19 = arith.cmpi eq, %arg2, %c0_i32_22 : i32
    %20 = arith.extui %19 : i1 to i32
    %c0_i32_23 = arith.constant 0 : i32
    %21 = arith.cmpi ne, %20, %c0_i32_23 : i32
    scf.if %21 {
      %c0_24 = arith.constant 0 : index
      %c0_25 = arith.constant 0 : index
      %22 = vector.load %arg10[%c0_24, %c0_25] : memref<32x128xf32, #tpu.memory_space<vmem>>, vector<32x128xf32>
      %23 = arith.truncf %22 : vector<32x128xf32> to vector<32x128xbf16>
      %c0_26 = arith.constant 0 : index
      %c0_27 = arith.constant 0 : index
      %24 = vector.load %arg7[%c0_26, %c0_27] : memref<32x128xbf16, #tpu.memory_space<vmem>>, vector<32x128xbf16>
      tpu.vector_store %arg7[%c0_26, %c0_27], %23 {strides = array<i32>} : memref<32x128xbf16, #tpu.memory_space<vmem>>, vector<32x128xbf16>,
      %c0_28 = arith.constant 0 : index
      %c0_29 = arith.constant 0 : index
      %25 = vector.load %arg11[%c0_28, %c0_29] : memref<32x128xf32, #tpu.memory_space<vmem>>, vector<32x128xf32>
      %26 = arith.truncf %25 : vector<32x128xf32> to vector<32x128xbf16>
      %c0_30 = arith.constant 0 : index
      %c0_31 = arith.constant 0 : index
      %27 = vector.load %arg8[%c0_30, %c0_31] : memref<32x128xbf16, #tpu.memory_space<vmem>>, vector<32x128xbf16>
      tpu.vector_store %arg8[%c0_30, %c0_31], %26 {strides = array<i32>} : memref<32x128xbf16, #tpu.memory_space<vmem>>, vector<32x128xbf16>,
      %c0_32 = arith.constant 0 : index
      %c0_33 = arith.constant 0 : index
      %28 = vector.load %arg12[%c0_32, %c0_33] : memref<32x128xf32, #tpu.memory_space<vmem>>, vector<32x128xf32>
      %29 = arith.truncf %28 : vector<32x128xf32> to vector<32x128xbf16>
      %c0_34 = arith.constant 0 : index
      %c0_35 = arith.constant 0 : index
      %30 = vector.load %arg9[%c0_34, %c0_35] : memref<32x128xbf16, #tpu.memory_space<vmem>>, vector<32x128xbf16>
      tpu.vector_store %arg9[%c0_34, %c0_35], %29 {strides = array<i32>} : memref<32x128xbf16, #tpu.memory_space<vmem>>, vector<32x128xbf16>,
    } else {
    }
    return
  }
  func.func @transform_0(%arg0: i32, %arg1: i32, %arg2: i32) -> (i32, i32) {
    %c0_i32 = arith.constant 0 : i32
    return %arg0, %arg2 : i32, i32
  }
  func.func @transform_1(%arg0: i32, %arg1: i32, %arg2: i32) -> (i32, i32) {
    %c0_i32 = arith.constant 0 : i32
    return %arg2, %arg1 : i32, i32
  }
  func.func @transform_2(%arg0: i32, %arg1: i32, %arg2: i32) -> (i32, i32) {
    %c0_i32 = arith.constant 0 : i32
    return %arg2, %arg1 : i32, i32
  }
  func.func @transform_3(%arg0: i32, %arg1: i32, %arg2: i32) -> (i32, i32) {
    %c0_i32 = arith.constant 0 : i32
    return %arg2, %arg1 : i32, i32
  }
  func.func @transform_4(%arg0: i32, %arg1: i32, %arg2: i32) -> (i32, i32) {
    %c0_i32 = arith.constant 0 : i32
    return %arg0, %arg1 : i32, i32
  }
  func.func @transform_5(%arg0: i32, %arg1: i32, %arg2: i32) -> (i32, i32) {
    %c0_i32 = arith.constant 0 : i32
    return %arg0, %arg1 : i32, i32
  }
  func.func @transform_6(%arg0: i32, %arg1: i32, %arg2: i32) -> (i32, i32) {
    %c0_i32 = arith.constant 0 : i32
    return %arg0, %arg1 : i32, i32
  }
}

</mosaic_0001>

<llo_original>
// kernel: attention_forward.5
$region0: #{attention_forward.5}
  #allocation0 [shape = 'u32[]', space=smem, size = 0x4, offset = 0x4, fixed_abs, tag = 'smem constant byte address 0x4 - core index']
  #allocation1 [shape = 'u32[144,128]{1,0:T(1,128)}', space=vmem, size = 0x12000, scoped, tag = 'internal scratch']
  #allocation2 [shape = 'f32[32,128]{1,0:T(8,128)}', space=vmem, size = 0x4000, scoped, tag = 'scratch operand']
  %s0 = inlined_call_operand.vmem [shape: bf16[32,128], index: 0, kind: input, shape index: {}]
  %s1 = inlined_call_operand.vmem [shape: bf16[128,128], index: 1, kind: input, shape index: {}]
  %s2 = inlined_call_operand.vmem [shape: f32[1,128], index: 2, kind: input, shape index: {}]
  %s3 = inlined_call_operand.hbm [shape: f32[32,128], index: 3, kind: output, shape index: {}]
  %s4 = sld [smem:[#allocation0]]
  $region30: #{attention_forward.5} parent=0
    _
  %s6 = ssub.s32 1, %s4
  %s7 = scalar_select 0, %s6, %s4
  $region1: #{attention_forward.5} parent=0
    #allocation3 [shape = 'u8[16384]{0}', space=vmem, size = 0x4000, scoped, tag = 'output window, operand 0, single buffered']
    #allocation4 [shape = 's32[1]{0}', space=sflag, size = 0x4, scoped, tag = 'scoped memory for attention_forward.5']
    %8 = vsyncpa [#allocation4], 0
    // Predicated region
    $region2: #{attention_forward.5} parent=1 // pred_check
      _
    $region3: #{attention_forward.5} parent=1 // pred_check_branch
      %10 = sbr.rel (0) target = $region5
    $region4: #{attention_forward.5} parent=1 // pred_region
      _
    $region5: #{attention_forward.5} parent=1 // pred_fallthru
      _
    // Predicated region
    $region6: #{attention_forward.5} parent=1 // pred_check
      _
    $region7: #{attention_forward.5} parent=1 // pred_check_branch
      %12 = sbr.rel (0) target = $region9
    $region8: #{attention_forward.5} parent=1 // pred_region
      _
    $region9: #{attention_forward.5} parent=1 // pred_fallthru
      _
    // Predicated region
    $region10: #{attention_forward.5} parent=1 // pred_check
      _
    $region11: #{attention_forward.5} parent=1 // pred_check_branch
      %14 = sbr.rel (0) target = $region13
    $region12: #{attention_forward.5} parent=1 // pred_region
      _
    $region13: #{attention_forward.5} parent=1 // pred_fallthru
      _
    %p16 = scmp.eq.s32.totalorder 0, 0
    // Predicated region
    $region14: #{attention_forward.5} parent=1 // pred_check
      %p17 = pneg %p16
    $region15: #{attention_forward.5} parent=1 // pred_check_branch
      %19 = sbr.rel (%p17) target = $region17
    $region16: #{attention_forward.5} parent=1 // pred_region
      %20 = vst [vmem:[#allocation2] sm:$0xff] 0.0
      %21 = vst [vmem:[#allocation2 + $0x8] sm:$0xff] 0.0
      %22 = vst [vmem:[#allocation2 + $0x10] sm:$0xff] 0.0
      %23 = vst [vmem:[#allocation2 + $0x18] sm:$0xff] 0.0
    $region17: #{attention_forward.5} parent=1 // pred_fallthru
      _
    %v24 = vld [vmem:[#allocation2] sm:$0xff]
    %v25 = vld [vmem:[#allocation2 + $0x8] sm:$0xff]
    %v26 = vld [vmem:[#allocation2 + $0x10] sm:$0xff]
    %v27 = vld [vmem:[#allocation2 + $0x18] sm:$0xff]
    %v28 = vld [vmem:[%s0] sm:$0xf]
    %v29 = vld [vmem:[%s0 + $0x4] sm:$0xf]
    %v30 = vld [vmem:[%s0 + $0x8] sm:$0xf]
    %v31 = vld [vmem:[%s0 + $0xc] sm:$0xf]
    %v32 = vld [vmem:[%s1] sm:$0xf]
    %v33 = vld [vmem:[%s1 + $0x4] sm:$0xf]
    %v34 = vld [vmem:[%s1 + $0x8] sm:$0xf]
    %v35 = vld [vmem:[%s1 + $0xc] sm:$0xf]
    %v36 = vld [vmem:[%s1 + $0x10] sm:$0xf]
    %v37 = vld [vmem:[%s1 + $0x14] sm:$0xf]
    %v38 = vld [vmem:[%s1 + $0x18] sm:$0xf]
    %v39 = vld [vmem:[%s1 + $0x1c] sm:$0xf]
    %v40 = vld [vmem:[%s1 + $0x20] sm:$0xf]
    %v41 = vld [vmem:[%s1 + $0x24] sm:$0xf]
    %v42 = vld [vmem:[%s1 + $0x28] sm:$0xf]
    %v43 = vld [vmem:[%s1 + $0x2c] sm:$0xf]
    %v44 = vld [vmem:[%s1 + $0x30] sm:$0xf]
    %v45 = vld [vmem:[%s1 + $0x34] sm:$0xf]
    %v46 = vld [vmem:[%s1 + $0x38] sm:$0xf]
    %v47 = vld [vmem:[%s1 + $0x3c] sm:$0xf]
    %v52 = vunpack.c.l.b16 %v28
    %v53 = vunpack.c.l.b16 %v29
    %v54 = vunpack.c.l.b16 %v30
    %v55 = vunpack.c.l.b16 %v31
    %v56 = vpack.c.b16 %v53, %v52
    %v57 = vpack.c.b16 %v55, %v54
    %v76 = vunpack.c.l.b16 %v32
    %v77 = vunpack.c.l.b16 %v33
    %v78 = vunpack.c.l.b16 %v34
    %v79 = vunpack.c.l.b16 %v35
    %v80 = vunpack.c.l.b16 %v36
    %v81 = vunpack.c.l.b16 %v37
    %v82 = vunpack.c.l.b16 %v38
    %v83 = vunpack.c.l.b16 %v39
    %v84 = vunpack.c.l.b16 %v40
    %v85 = vunpack.c.l.b16 %v41
    %v86 = vunpack.c.l.b16 %v42
    %v87 = vunpack.c.l.b16 %v43
    %v88 = vunpack.c.l.b16 %v44
    %v89 = vunpack.c.l.b16 %v45
    %v90 = vunpack.c.l.b16 %v46
    %v91 = vunpack.c.l.b16 %v47
    %v92 = vpack.c.b16 %v77, %v76
    %v93 = vpack.c.b16 %v79, %v78
    %v94 = vpack.c.b16 %v81, %v80
    %v95 = vpack.c.b16 %v83, %v82
    %v96 = vpack.c.b16 %v85, %v84
    %v97 = vpack.c.b16 %v87, %v86
    %v98 = vpack.c.b16 %v89, %v88
    %v99 = vpack.c.b16 %v91, %v90
    %108 = vmatprep.subr.bf16.mxu0 0
    %109 = vmatpush1.bf16.msra.mxu0 %v92
    %110 = vmatprep.subr.bf16.mxu0 0
    %111 = vmatpush1.bf16.msra.mxu0 %v93
    %112 = vmatprep.subr.bf16.mxu0 0
    %113 = vmatpush1.bf16.msra.mxu0 %v94
    %114 = vmatprep.subr.bf16.mxu0 0
    %115 = vmatpush1.bf16.msra.mxu0 %v95
    %116 = vmatprep.subr.bf16.mxu0 0
    %117 = vmatpush1.bf16.msra.mxu0 %v96
    %118 = vmatprep.subr.bf16.mxu0 0
    %119 = vmatpush1.bf16.msra.mxu0 %v97
    %120 = vmatprep.subr.bf16.mxu0 0
    %121 = vmatpush1.bf16.msra.mxu0 %v98
    %122 = vmatprep.subr.bf16.mxu0 0
    %123 = vmatpush1.bf16.msra.mxu0 %v99
    %124 = vmatprep.subr.bf16.mxu0 0
    %125 = vmatpush1.bf16.msra.mxu0 0
    %126 = vmatprep.subr.bf16.mxu0 0
    %127 = vmatpush1.bf16.msra.mxu0 0
    %128 = vmatprep.subr.bf16.mxu0 0
    %129 = vmatpush1.bf16.msra.mxu0 0
    %130 = vmatprep.subr.bf16.mxu0 0
    %131 = vmatpush1.bf16.msra.mxu0 0
    %132 = vmatprep.subr.bf16.mxu0 0
    %133 = vmatpush1.bf16.msra.mxu0 0
    %134 = vmatprep.subr.bf16.mxu0 0
    %135 = vmatpush1.bf16.msra.mxu0 0
    %136 = vmatprep.subr.bf16.mxu0 0
    %137 = vmatpush1.bf16.msra.mxu0 0
    %138 = vmatprep.subr.bf16.mxu0 0
    %139 = vmatpush1.bf16.msra.mxu0 0
    %140 = vmatprep.mubr.bf16.mxu0 0
    %141 = vmatmul.mubr.bf16.gmra.mrb[0].mxu0 %v56
    %v142 = vpop.f32.mrb[0].mxu0
    %v143 = vadd.f32 0.0, %v142
    %v144 = vpop.f32.mrb[0].mxu0
    %v145 = vpop.f32.mrb[0].mxu0
    %v146 = vadd.f32 0.0, %v145
    %v147 = vpop.f32.mrb[0].mxu0
    %148 = vmatprep.mubr.bf16.mxu0 0
    %149 = vmatmul.mubr.bf16.gmra.mrb[0].mxu0 %v57
    %v150 = vpop.f32.mrb[0].mxu0
    %v151 = vadd.f32 0.0, %v150
    %v152 = vpop.f32.mrb[0].mxu0
    %v153 = vpop.f32.mrb[0].mxu0
    %v154 = vadd.f32 0.0, %v153
    %v155 = vpop.f32.mrb[0].mxu0
    %156 = vdwg.mxu0
    %v157 = vadd.f32 %v24, %v143
    %v158 = vadd.f32 %v25, %v146
    %v159 = vadd.f32 %v26, %v151
    %v160 = vadd.f32 %v27, %v154
    %161 = vst [vmem:[#allocation2] sm:$0xff] %v157
    %162 = vst [vmem:[#allocation2 + $0x8] sm:$0xff] %v158
    %163 = vst [vmem:[#allocation2 + $0x10] sm:$0xff] %v159
    %164 = vst [vmem:[#allocation2 + $0x18] sm:$0xff] %v160
    // Predicated region
    $region18: #{attention_forward.5} parent=1 // pred_check
      %p165 = pneg %p16
    $region19: #{attention_forward.5} parent=1 // pred_check_branch
      %167 = sbr.rel (%p165) target = $region21
    $region20: #{attention_forward.5} parent=1 // pred_region
      %v168 = vld [vmem:[#allocation2] sm:$0xff]
      %v169 = vld [vmem:[#allocation2 + $0x8] sm:$0xff]
      %v170 = vld [vmem:[#allocation2 + $0x10] sm:$0xff]
      %v171 = vld [vmem:[#allocation2 + $0x18] sm:$0xff]
      %v172 = vld [vmem:[%s2] sm:$0x1]
      %v174 = vlaneseq
      %v175 = vshrl.u32 %v174, 7
      %v176 = vsub.s32 0, %v175
      %v177 = vrot.slane %v172, %v176
      %v179 = vadd.f32 %v168, %v177
      %v180 = vadd.f32 %v169, %v177
      %v181 = vadd.f32 %v170, %v177
      %v182 = vadd.f32 %v171, %v177
      %183 = vst [vmem:[#allocation3] sm:$0xff] %v179
      %184 = vst [vmem:[#allocation3 + $0x8] sm:$0xff] %v180
      %185 = vst [vmem:[#allocation3 + $0x10] sm:$0xff] %v181
      %186 = vst [vmem:[#allocation3 + $0x18] sm:$0xff] %v182
    $region21: #{attention_forward.5} parent=1 // pred_fallthru
      _
    // Predicated region
    $region22: #{attention_forward.5} parent=1 // pred_check
      _
    $region23: #{attention_forward.5} parent=1 // pred_check_branch
      %188 = sbr.rel (0) target = $region25
    $region24: #{attention_forward.5} parent=1 // pred_region
      %s190 = ssub.s32 512, 512
      %191 = vsyncadd [#allocation4], %s190
      %s192 = sshll.u32 [#allocation3], 4
      %s193 = int_to_ptr.vmem [resolvable:$true] %s192
      %198 = dma.vmem_to_hbm [thread:$0]  %s193, 512, %s3, [#allocation4], 128, 128, 8
    $region25: #{attention_forward.5} parent=1 // pred_fallthru
      _
    // Predicated region
    $region26: #{attention_forward.5} parent=1 // pred_check
      _
    $region27: #{attention_forward.5} parent=1 // pred_check_branch
      %200 = sbr.rel (0) target = $region29
    $region28: #{attention_forward.5} parent=1 // pred_region
      %201 = dma.done [#allocation4], 512
    $region29: #{attention_forward.5} parent=1 // pred_fallthru
      _
    %202 = vsyncpa [#allocation4], 1

// kernel: attention_forward.3
$region0: #{attention_forward.3}
  #allocation0 [shape = 'u32[]', space=smem, size = 0x4, offset = 0x4, fixed_abs, tag = 'smem constant byte address 0x4 - core index']
  #allocation1 [shape = 'u32[144,128]{1,0:T(1,128)}', space=vmem, size = 0x12000, scoped, tag = 'internal scratch']
  #allocation2 [shape = 'f32[32,128]{1,0:T(8,128)}', space=vmem, size = 0x4000, scoped, tag = 'scratch operand']
  #allocation3 [shape = 'f32[32,128]{1,0:T(8,128)}', space=vmem, size = 0x4000, scoped, tag = 'scratch operand']
  #allocation4 [shape = 'f32[32,128]{1,0:T(8,128)}', space=vmem, size = 0x4000, scoped, tag = 'scratch operand']
  %s0 = inlined_call_operand.vmem [shape: bf16[32,128], index: 0, kind: input, shape index: {}]
  %s1 = inlined_call_operand.vmem [shape: bf16[128,128], index: 1, kind: input, shape index: {}]
  %s2 = inlined_call_operand.hbm [shape: bf16[128,128], index: 2, kind: input, shape index: {}]
  %s3 = inlined_call_operand.hbm [shape: bf16[128,128], index: 3, kind: input, shape index: {}]
  %s4 = inlined_call_operand.vmem [shape: bf16[32,128], index: 4, kind: output, shape index: {0}]
  %s5 = inlined_call_operand.vmem [shape: bf16[32,128], index: 5, kind: output, shape index: {1}]
  %s6 = inlined_call_operand.vmem [shape: bf16[32,128], index: 6, kind: output, shape index: {2}]
  %7 = xla_tuple %s4, %s5, %s6
  %s8 = sld [smem:[#allocation0]]
  $region58: #{attention_forward.3} parent=0
    _
  %s10 = ssub.s32 1, %s8
  %s11 = scalar_select 0, %s10, %s8
  $region1: #{attention_forward.3} parent=0
    #allocation5 [shape = 'u8[32768]{0}', space=vmem, size = 0x8000, scoped, tag = 'input window, operand 2, single buffered']
    #allocation6 [shape = 's32[1]{0}', space=sflag, size = 0x4, scoped, tag = 'scoped memory for attention_forward.3']
    #allocation7 [shape = 'u8[32768]{0}', space=vmem, size = 0x8000, scoped, tag = 'input window, operand 3, single buffered']
    #allocation8 [shape = 's32[1]{0}', space=sflag, size = 0x4, scoped, tag = 'scoped memory for attention_forward.3']
    %12 = vsyncpa [#allocation6], 0
    %13 = vsyncpa [#allocation8], 0
    // Predicated region
    $region2: #{attention_forward.3} parent=1 // pred_check
      _
    $region3: #{attention_forward.3} parent=1 // pred_check_branch
      %15 = sbr.rel (0) target = $region5
    $region4: #{attention_forward.3} parent=1 // pred_region
      _
    $region5: #{attention_forward.3} parent=1 // pred_fallthru
      _
    // Predicated region
    $region6: #{attention_forward.3} parent=1 // pred_check
      _
    $region7: #{attention_forward.3} parent=1 // pred_check_branch
      %17 = sbr.rel (0) target = $region9
    $region8: #{attention_forward.3} parent=1 // pred_region
      _
    $region9: #{attention_forward.3} parent=1 // pred_fallthru
      _
    // Predicated region
    $region10: #{attention_forward.3} parent=1 // pred_check
      _
    $region11: #{attention_forward.3} parent=1 // pred_check_branch
      %19 = sbr.rel (0) target = $region13
    $region12: #{attention_forward.3} parent=1 // pred_region
      %s21 = ssub.s32 1024, 1024
      %22 = vsyncadd [#allocation6], %s21
      %s23 = sshll.u32 [#allocation5], 4
      %s24 = int_to_ptr.vmem [resolvable:$true] %s23
      %29 = dma.hbm_to_vmem [thread:$0]  %s2, 1024, %s24, [#allocation6], 64, 64, 4
    $region13: #{attention_forward.3} parent=1 // pred_fallthru
      _
    // Predicated region
    $region14: #{attention_forward.3} parent=1 // pred_check
      _
    $region15: #{attention_forward.3} parent=1 // pred_check_branch
      %31 = sbr.rel (0) target = $region17
    $region16: #{attention_forward.3} parent=1 // pred_region
      %s33 = ssub.s32 1024, 1024
      %34 = vsyncadd [#allocation8], %s33
      %s35 = sshll.u32 [#allocation7], 4
      %s36 = int_to_ptr.vmem [resolvable:$true] %s35
      %41 = dma.hbm_to_vmem [thread:$0]  %s3, 1024, %s36, [#allocation8], 64, 64, 4
    $region17: #{attention_forward.3} parent=1 // pred_fallthru
      _
    // Predicated region
    $region18: #{attention_forward.3} parent=1 // pred_check
      _
    $region19: #{attention_forward.3} parent=1 // pred_check_branch
      %43 = sbr.rel (0) target = $region21
    $region20: #{attention_forward.3} parent=1 // pred_region
      %44 = dma.done [#allocation6], 1024
    $region21: #{attention_forward.3} parent=1 // pred_fallthru
      _
    // Predicated region
    $region22: #{attention_forward.3} parent=1 // pred_check
      _
    $region23: #{attention_forward.3} parent=1 // pred_check_branch
      %46 = sbr.rel (0) target = $region25
    $region24: #{attention_forward.3} parent=1 // pred_region
      %47 = dma.done [#allocation8], 1024
    $region25: #{attention_forward.3} parent=1 // pred_fallthru
      _
    %p49 = scmp.eq.s32.totalorder 0, 0
    // Predicated region
    $region26: #{attention_forward.3} parent=1 // pred_check
      %p50 = pneg %p49
    $region27: #{attention_forward.3} parent=1 // pred_check_branch
      %52 = sbr.rel (%p50) target = $region29
    $region28: #{attention_forward.3} parent=1 // pred_region
      %53 = vst [vmem:[#allocation2] sm:$0xff] 0.0
      %54 = vst [vmem:[#allocation2 + $0x8] sm:$0xff] 0.0
      %55 = vst [vmem:[#allocation2 + $0x10] sm:$0xff] 0.0
      %56 = vst [vmem:[#allocation2 + $0x18] sm:$0xff] 0.0
      %57 = vst [vmem:[#allocation3] sm:$0xff] 0.0
      %58 = vst [vmem:[#allocation3 + $0x8] sm:$0xff] 0.0
      %59 = vst [vmem:[#allocation3 + $0x10] sm:$0xff] 0.0
      %60 = vst [vmem:[#allocation3 + $0x18] sm:$0xff] 0.0
      %61 = vst [vmem:[#allocation4] sm:$0xff] 0.0
      %62 = vst [vmem:[#allocation4 + $0x8] sm:$0xff] 0.0
      %63 = vst [vmem:[#allocation4 + $0x10] sm:$0xff] 0.0
      %64 = vst [vmem:[#allocation4 + $0x18] sm:$0xff] 0.0
    $region29: #{attention_forward.3} parent=1 // pred_fallthru
      _
    %v65 = vld [vmem:[%s0] sm:$0xf]
    %v66 = vld [vmem:[%s0 + $0x4] sm:$0xf]
    %v67 = vld [vmem:[%s0 + $0x8] sm:$0xf]
    %v68 = vld [vmem:[%s0 + $0xc] sm:$0xf]
    %v69 = vld [vmem:[#allocation2] sm:$0xff]
    %v70 = vld [vmem:[#allocation2 + $0x8] sm:$0xff]
    %v71 = vld [vmem:[#allocation2 + $0x10] sm:$0xff]
    %v72 = vld [vmem:[#allocation2 + $0x18] sm:$0xff]
    %v73 = vld [vmem:[%s1] sm:$0xf]
    %v74 = vld [vmem:[%s1 + $0x4] sm:$0xf]
    %v75 = vld [vmem:[%s1 + $0x8] sm:$0xf]
    %v76 = vld [vmem:[%s1 + $0xc] sm:$0xf]
    %v77 = vld [vmem:[%s1 + $0x10] sm:$0xf]
    %v78 = vld [vmem:[%s1 + $0x14] sm:$0xf]
    %v79 = vld [vmem:[%s1 + $0x18] sm:$0xf]
    %v80 = vld [vmem:[%s1 + $0x1c] sm:$0xf]
    %v81 = vld [vmem:[%s1 + $0x20] sm:$0xf]
    %v82 = vld [vmem:[%s1 + $0x24] sm:$0xf]
    %v83 = vld [vmem:[%s1 + $0x28] sm:$0xf]
    %v84 = vld [vmem:[%s1 + $0x2c] sm:$0xf]
    %v85 = vld [vmem:[%s1 + $0x30] sm:$0xf]
    %v86 = vld [vmem:[%s1 + $0x34] sm:$0xf]
    %v87 = vld [vmem:[%s1 + $0x38] sm:$0xf]
    %v88 = vld [vmem:[%s1 + $0x3c] sm:$0xf]
    %v93 = vunpack.c.l.b16 %v65
    %v94 = vunpack.c.l.b16 %v66
    %v95 = vunpack.c.l.b16 %v67
    %v96 = vunpack.c.l.b16 %v68
    %v97 = vpack.c.b16 %v94, %v93
    %v98 = vpack.c.b16 %v96, %v95
    %v117 = vunpack.c.l.b16 %v73
    %v118 = vunpack.c.l.b16 %v74
    %v119 = vunpack.c.l.b16 %v75
    %v120 = vunpack.c.l.b16 %v76
    %v121 = vunpack.c.l.b16 %v77
    %v122 = vunpack.c.l.b16 %v78
    %v123 = vunpack.c.l.b16 %v79
    %v124 = vunpack.c.l.b16 %v80
    %v125 = vunpack.c.l.b16 %v81
    %v126 = vunpack.c.l.b16 %v82
    %v127 = vunpack.c.l.b16 %v83
    %v128 = vunpack.c.l.b16 %v84
    %v129 = vunpack.c.l.b16 %v85
    %v130 = vunpack.c.l.b16 %v86
    %v131 = vunpack.c.l.b16 %v87
    %v132 = vunpack.c.l.b16 %v88
    %v133 = vpack.c.b16 %v118, %v117
    %v134 = vpack.c.b16 %v120, %v119
    %v135 = vpack.c.b16 %v122, %v121
    %v136 = vpack.c.b16 %v124, %v123
    %v137 = vpack.c.b16 %v126, %v125
    %v138 = vpack.c.b16 %v128, %v127
    %v139 = vpack.c.b16 %v130, %v129
    %v140 = vpack.c.b16 %v132, %v131
    %149 = vmatprep.subr.bf16.mxu0 0
    %150 = vmatpush1.bf16.msra.mxu0 %v133
    %151 = vmatprep.subr.bf16.mxu0 0
    %152 = vmatpush1.bf16.msra.mxu0 %v134
    %153 = vmatprep.subr.bf16.mxu0 0
    %154 = vmatpush1.bf16.msra.mxu0 %v135
    %155 = vmatprep.subr.bf16.mxu0 0
    %156 = vmatpush1.bf16.msra.mxu0 %v136
    %157 = vmatprep.subr.bf16.mxu0 0
    %158 = vmatpush1.bf16.msra.mxu0 %v137
    %159 = vmatprep.subr.bf16.mxu0 0
    %160 = vmatpush1.bf16.msra.mxu0 %v138
    %161 = vmatprep.subr.bf16.mxu0 0
    %162 = vmatpush1.bf16.msra.mxu0 %v139
    %163 = vmatprep.subr.bf16.mxu0 0
    %164 = vmatpush1.bf16.msra.mxu0 %v140
    %165 = vmatprep.subr.bf16.mxu0 0
    %166 = vmatpush1.bf16.msra.mxu0 0
    %167 = vmatprep.subr.bf16.mxu0 0
    %168 = vmatpush1.bf16.msra.mxu0 0
    %169 = vmatprep.subr.bf16.mxu0 0
    %170 = vmatpush1.bf16.msra.mxu0 0
    %171 = vmatprep.subr.bf16.mxu0 0
    %172 = vmatpush1.bf16.msra.mxu0 0
    %173 = vmatprep.subr.bf16.mxu0 0
    %174 = vmatpush1.bf16.msra.mxu0 0
    %175 = vmatprep.subr.bf16.mxu0 0
    %176 = vmatpush1.bf16.msra.mxu0 0
    %177 = vmatprep.subr.bf16.mxu0 0
    %178 = vmatpush1.bf16.msra.mxu0 0
    %179 = vmatprep.subr.bf16.mxu0 0
    %180 = vmatpush1.bf16.msra.mxu0 0
    %181 = vmatprep.mubr.bf16.mxu0 0
    %182 = vmatmul.mubr.bf16.gmra.mrb[0].mxu0 %v97
    %v183 = vpop.f32.mrb[0].mxu0
    %v184 = vadd.f32 0.0, %v183
    %v185 = vpop.f32.mrb[0].mxu0
    %v186 = vpop.f32.mrb[0].mxu0
    %v187 = vadd.f32 0.0, %v186
    %v188 = vpop.f32.mrb[0].mxu0
    %189 = vmatprep.mubr.bf16.mxu0 0
    %190 = vmatmul.mubr.bf16.gmra.mrb[0].mxu0 %v98
    %v191 = vpop.f32.mrb[0].mxu0
    %v192 = vadd.f32 0.0, %v191
    %v193 = vpop.f32.mrb[0].mxu0
    %v194 = vpop.f32.mrb[0].mxu0
    %v195 = vadd.f32 0.0, %v194
    %v196 = vpop.f32.mrb[0].mxu0
    %197 = vdwg.mxu0
    %v198 = vadd.f32 %v69, %v184
    %v199 = vadd.f32 %v70, %v187
    %v200 = vadd.f32 %v71, %v192
    %v201 = vadd.f32 %v72, %v195
    %202 = vst [vmem:[#allocation2] sm:$0xff] %v198
    %203 = vst [vmem:[#allocation2 + $0x8] sm:$0xff] %v199
    %204 = vst [vmem:[#allocation2 + $0x10] sm:$0xff] %v200
    %205 = vst [vmem:[#allocation2 + $0x18] sm:$0xff] %v201
    %v206 = vld [vmem:[#allocation3] sm:$0xff]
    %v207 = vld [vmem:[#allocation3 + $0x8] sm:$0xff]
    %v208 = vld [vmem:[#allocation3 + $0x10] sm:$0xff]
    %v209 = vld [vmem:[#allocation3 + $0x18] sm:$0xff]
    %v210 = vld [vmem:[#allocation5] sm:$0xf]
    %v211 = vld [vmem:[#allocation5 + $0x4] sm:$0xf]
    %v212 = vld [vmem:[#allocation5 + $0x8] sm:$0xf]
    %v213 = vld [vmem:[#allocation5 + $0xc] sm:$0xf]
    %v214 = vld [vmem:[#allocation5 + $0x10] sm:$0xf]
    %v215 = vld [vmem:[#allocation5 + $0x14] sm:$0xf]
    %v216 = vld [vmem:[#allocation5 + $0x18] sm:$0xf]
    %v217 = vld [vmem:[#allocation5 + $0x1c] sm:$0xf]
    %v218 = vld [vmem:[#allocation5 + $0x20] sm:$0xf]
    %v219 = vld [vmem:[#allocation5 + $0x24] sm:$0xf]
    %v220 = vld [vmem:[#allocation5 + $0x28] sm:$0xf]
    %v221 = vld [vmem:[#allocation5 + $0x2c] sm:$0xf]
    %v222 = vld [vmem:[#allocation5 + $0x30] sm:$0xf]
    %v223 = vld [vmem:[#allocation5 + $0x34] sm:$0xf]
    %v224 = vld [vmem:[#allocation5 + $0x38] sm:$0xf]
    %v225 = vld [vmem:[#allocation5 + $0x3c] sm:$0xf]
    %v242 = vunpack.c.l.b16 %v210
    %v243 = vunpack.c.l.b16 %v211
    %v244 = vunpack.c.l.b16 %v212
    %v245 = vunpack.c.l.b16 %v213
    %v246 = vunpack.c.l.b16 %v214
    %v247 = vunpack.c.l.b16 %v215
    %v248 = vunpack.c.l.b16 %v216
    %v249 = vunpack.c.l.b16 %v217
    %v250 = vunpack.c.l.b16 %v218
    %v251 = vunpack.c.l.b16 %v219
    %v252 = vunpack.c.l.b16 %v220
    %v253 = vunpack.c.l.b16 %v221
    %v254 = vunpack.c.l.b16 %v222
    %v255 = vunpack.c.l.b16 %v223
    %v256 = vunpack.c.l.b16 %v224
    %v257 = vunpack.c.l.b16 %v225
    %v258 = vpack.c.b16 %v243, %v242
    %v259 = vpack.c.b16 %v245, %v244
    %v260 = vpack.c.b16 %v247, %v246
    %v261 = vpack.c.b16 %v249, %v248
    %v262 = vpack.c.b16 %v251, %v250
    %v263 = vpack.c.b16 %v253, %v252
    %v264 = vpack.c.b16 %v255, %v254
    %v265 = vpack.c.b16 %v257, %v256
    %274 = vmatprep.subr.bf16.mxu0 0
    %275 = vmatpush1.bf16.msra.mxu0 %v258
    %276 = vmatprep.subr.bf16.mxu0 0
    %277 = vmatpush1.bf16.msra.mxu0 %v259
    %278 = vmatprep.subr.bf16.mxu0 0
    %279 = vmatpush1.bf16.msra.mxu0 %v260
    %280 = vmatprep.subr.bf16.mxu0 0
    %281 = vmatpush1.bf16.msra.mxu0 %v261
    %282 = vmatprep.subr.bf16.mxu0 0
    %283 = vmatpush1.bf16.msra.mxu0 %v262
    %284 = vmatprep.subr.bf16.mxu0 0
    %285 = vmatpush1.bf16.msra.mxu0 %v263
    %286 = vmatprep.subr.bf16.mxu0 0
    %287 = vmatpush1.bf16.msra.mxu0 %v264
    %288 = vmatprep.subr.bf16.mxu0 0
    %289 = vmatpush1.bf16.msra.mxu0 %v265
    %290 = vmatprep.subr.bf16.mxu0 0
    %291 = vmatpush1.bf16.msra.mxu0 0
    %292 = vmatprep.subr.bf16.mxu0 0
    %293 = vmatpush1.bf16.msra.mxu0 0
    %294 = vmatprep.subr.bf16.mxu0 0
    %295 = vmatpush1.bf16.msra.mxu0 0
    %296 = vmatprep.subr.bf16.mxu0 0
    %297 = vmatpush1.bf16.msra.mxu0 0
    %298 = vmatprep.subr.bf16.mxu0 0
    %299 = vmatpush1.bf16.msra.mxu0 0
    %300 = vmatprep.subr.bf16.mxu0 0
    %301 = vmatpush1.bf16.msra.mxu0 0
    %302 = vmatprep.subr.bf16.mxu0 0
    %303 = vmatpush1.bf16.msra.mxu0 0
    %304 = vmatprep.subr.bf16.mxu0 0
    %305 = vmatpush1.bf16.msra.mxu0 0
    %306 = vmatprep.mubr.bf16.mxu0 0
    %307 = vmatmul.mubr.bf16.gmra.mrb[0].mxu0 %v97
    %v308 = vpop.f32.mrb[0].mxu0
    %v309 = vadd.f32 0.0, %v308
    %v310 = vpop.f32.mrb[0].mxu0
    %v311 = vpop.f32.mrb[0].mxu0
    %v312 = vadd.f32 0.0, %v311
    %v313 = vpop.f32.mrb[0].mxu0
    %314 = vmatprep.mubr.bf16.mxu0 0
    %315 = vmatmul.mubr.bf16.gmra.mrb[0].mxu0 %v98
    %v316 = vpop.f32.mrb[0].mxu0
    %v317 = vadd.f32 0.0, %v316
    %v318 = vpop.f32.mrb[0].mxu0
    %v319 = vpop.f32.mrb[0].mxu0
    %v320 = vadd.f32 0.0, %v319
    %v321 = vpop.f32.mrb[0].mxu0
    %322 = vdwg.mxu0
    %v323 = vadd.f32 %v206, %v309
    %v324 = vadd.f32 %v207, %v312
    %v325 = vadd.f32 %v208, %v317
    %v326 = vadd.f32 %v209, %v320
    %327 = vst [vmem:[#allocation3] sm:$0xff] %v323
    %328 = vst [vmem:[#allocation3 + $0x8] sm:$0xff] %v324
    %329 = vst [vmem:[#allocation3 + $0x10] sm:$0xff] %v325
    %330 = vst [vmem:[#allocation3 + $0x18] sm:$0xff] %v326
    %v331 = vld [vmem:[#allocation4] sm:$0xff]
    %v332 = vld [vmem:[#allocation4 + $0x8] sm:$0xff]
    %v333 = vld [vmem:[#allocation4 + $0x10] sm:$0xff]
    %v334 = vld [vmem:[#allocation4 + $0x18] sm:$0xff]
    %v335 = vld [vmem:[#allocation7] sm:$0xf]
    %v336 = vld [vmem:[#allocation7 + $0x4] sm:$0xf]
    %v337 = vld [vmem:[#allocation7 + $0x8] sm:$0xf]
    %v338 = vld [vmem:[#allocation7 + $0xc] sm:$0xf]
    %v339 = vld [vmem:[#allocation7 + $0x10] sm:$0xf]
    %v340 = vld [vmem:[#allocation7 + $0x14] sm:$0xf]
    %v341 = vld [vmem:[#allocation7 + $0x18] sm:$0xf]
    %v342 = vld [vmem:[#allocation7 + $0x1c] sm:$0xf]
    %v343 = vld [vmem:[#allocation7 + $0x20] sm:$0xf]
    %v344 = vld [vmem:[#allocation7 + $0x24] sm:$0xf]
    %v345 = vld [vmem:[#allocation7 + $0x28] sm:$0xf]
    %v346 = vld [vmem:[#allocation7 + $0x2c] sm:$0xf]
    %v347 = vld [vmem:[#allocation7 + $0x30] sm:$0xf]
    %v348 = vld [vmem:[#allocation7 + $0x34] sm:$0xf]
    %v349 = vld [vmem:[#allocation7 + $0x38] sm:$0xf]
    %v350 = vld [vmem:[#allocation7 + $0x3c] sm:$0xf]
    %v367 = vunpack.c.l.b16 %v335
    %v368 = vunpack.c.l.b16 %v336
    %v369 = vunpack.c.l.b16 %v337
    %v370 = vunpack.c.l.b16 %v338
    %v371 = vunpack.c.l.b16 %v339
    %v372 = vunpack.c.l.b16 %v340
    %v373 = vunpack.c.l.b16 %v341
    %v374 = vunpack.c.l.b16 %v342
    %v375 = vunpack.c.l.b16 %v343
    %v376 = vunpack.c.l.b16 %v344
    %v377 = vunpack.c.l.b16 %v345
    %v378 = vunpack.c.l.b16 %v346
    %v379 = vunpack.c.l.b16 %v347
    %v380 = vunpack.c.l.b16 %v348
    %v381 = vunpack.c.l.b16 %v349
    %v382 = vunpack.c.l.b16 %v350
    %v383 = vpack.c.b16 %v368, %v367
    %v384 = vpack.c.b16 %v370, %v369
    %v385 = vpack.c.b16 %v372, %v371
    %v386 = vpack.c.b16 %v374, %v373
    %v387 = vpack.c.b16 %v376, %v375
    %v388 = vpack.c.b16 %v378, %v377
    %v389 = vpack.c.b16 %v380, %v379
    %v390 = vpack.c.b16 %v382, %v381
    %399 = vmatprep.subr.bf16.mxu0 0
    %400 = vmatpush1.bf16.msra.mxu0 %v383
    %401 = vmatprep.subr.bf16.mxu0 0
    %402 = vmatpush1.bf16.msra.mxu0 %v384
    %403 = vmatprep.subr.bf16.mxu0 0
    %404 = vmatpush1.bf16.msra.mxu0 %v385
    %405 = vmatprep.subr.bf16.mxu0 0
    %406 = vmatpush1.bf16.msra.mxu0 %v386
    %407 = vmatprep.subr.bf16.mxu0 0
    %408 = vmatpush1.bf16.msra.mxu0 %v387
    %409 = vmatprep.subr.bf16.mxu0 0
    %410 = vmatpush1.bf16.msra.mxu0 %v388
    %411 = vmatprep.subr.bf16.mxu0 0
    %412 = vmatpush1.bf16.msra.mxu0 %v389
    %413 = vmatprep.subr.bf16.mxu0 0
    %414 = vmatpush1.bf16.msra.mxu0 %v390
    %415 = vmatprep.subr.bf16.mxu0 0
    %416 = vmatpush1.bf16.msra.mxu0 0
    %417 = vmatprep.subr.bf16.mxu0 0
    %418 = vmatpush1.bf16.msra.mxu0 0
    %419 = vmatprep.subr.bf16.mxu0 0
    %420 = vmatpush1.bf16.msra.mxu0 0
    %421 = vmatprep.subr.bf16.mxu0 0
    %422 = vmatpush1.bf16.msra.mxu0 0
    %423 = vmatprep.subr.bf16.mxu0 0
    %424 = vmatpush1.bf16.msra.mxu0 0
    %425 = vmatprep.subr.bf16.mxu0 0
    %426 = vmatpush1.bf16.msra.mxu0 0
    %427 = vmatprep.subr.bf16.mxu0 0
    %428 = vmatpush1.bf16.msra.mxu0 0
    %429 = vmatprep.subr.bf16.mxu0 0
    %430 = vmatpush1.bf16.msra.mxu0 0
    %431 = vmatprep.mubr.bf16.mxu0 0
    %432 = vmatmul.mubr.bf16.gmra.mrb[0].mxu0 %v97
    %v433 = vpop.f32.mrb[0].mxu0
    %v434 = vadd.f32 0.0, %v433
    %v435 = vpop.f32.mrb[0].mxu0
    %v436 = vpop.f32.mrb[0].mxu0
    %v437 = vadd.f32 0.0, %v436
    %v438 = vpop.f32.mrb[0].mxu0
    %439 = vmatprep.mubr.bf16.mxu0 0
    %440 = vmatmul.mubr.bf16.gmra.mrb[0].mxu0 %v98
    %v441 = vpop.f32.mrb[0].mxu0
    %v442 = vadd.f32 0.0, %v441
    %v443 = vpop.f32.mrb[0].mxu0
    %v444 = vpop.f32.mrb[0].mxu0
    %v445 = vadd.f32 0.0, %v444
    %v446 = vpop.f32.mrb[0].mxu0
    %447 = vdwg.mxu0
    %v448 = vadd.f32 %v331, %v434
    %v449 = vadd.f32 %v332, %v437
    %v450 = vadd.f32 %v333, %v442
    %v451 = vadd.f32 %v334, %v445
    %452 = vst [vmem:[#allocation4] sm:$0xff] %v448
    %453 = vst [vmem:[#allocation4 + $0x8] sm:$0xff] %v449
    %454 = vst [vmem:[#allocation4 + $0x10] sm:$0xff] %v450
    %455 = vst [vmem:[#allocation4 + $0x18] sm:$0xff] %v451
    // Predicated region
    $region30: #{attention_forward.3} parent=1 // pred_check
      %p456 = pneg %p49
    $region31: #{attention_forward.3} parent=1 // pred_check_branch
      %458 = sbr.rel (%p456) target = $region33
    $region32: #{attention_forward.3} parent=1 // pred_region
      %v459 = vld [vmem:[#allocation2] sm:$0xff]
      %v460 = vld [vmem:[#allocation2 + $0x8] sm:$0xff]
      %v461 = vld [vmem:[#allocation2 + $0x10] sm:$0xff]
      %v462 = vld [vmem:[#allocation2 + $0x18] sm:$0xff]
      %v463 = vpack.c.bf16 %v460, %v459
      %v464 = vpack.c.bf16 %v462, %v461
      %v467 = vunpack.c.l.b16 %v463
      %v468 = vunpack.c.h.b16 %v463
      %v469 = vunpack.c.l.b16 %v464
      %v470 = vunpack.c.h.b16 %v464
      %v471 = vpack.c.b16 %v467, %v467
      %v472 = vpack.c.b16 %v468, %v468
      %v473 = vpack.c.b16 %v469, %v469
      %v474 = vpack.c.b16 %v470, %v470
      %479 = vst [vmem:[%s4] sm:$0xf] %v471
      %480 = vst [vmem:[%s4 + $0x4] sm:$0xf] %v472
      %481 = vst [vmem:[%s4 + $0x8] sm:$0xf] %v473
      %482 = vst [vmem:[%s4 + $0xc] sm:$0xf] %v474
      %v483 = vld [vmem:[#allocation3] sm:$0xff]
      %v484 = vld [vmem:[#allocation3 + $0x8] sm:$0xff]
      %v485 = vld [vmem:[#allocation3 + $0x10] sm:$0xff]
      %v486 = vld [vmem:[#allocation3 + $0x18] sm:$0xff]
      %v487 = vpack.c.bf16 %v484, %v483
      %v488 = vpack.c.bf16 %v486, %v485
      %v491 = vunpack.c.l.b16 %v487
      %v492 = vunpack.c.h.b16 %v487
      %v493 = vunpack.c.l.b16 %v488
      %v494 = vunpack.c.h.b16 %v488
      %v495 = vpack.c.b16 %v491, %v491
      %v496 = vpack.c.b16 %v492, %v492
      %v497 = vpack.c.b16 %v493, %v493
      %v498 = vpack.c.b16 %v494, %v494
      %503 = vst [vmem:[%s5] sm:$0xf] %v495
      %504 = vst [vmem:[%s5 + $0x4] sm:$0xf] %v496
      %505 = vst [vmem:[%s5 + $0x8] sm:$0xf] %v497
      %506 = vst [vmem:[%s5 + $0xc] sm:$0xf] %v498
      %v507 = vld [vmem:[#allocation4] sm:$0xff]
      %v508 = vld [vmem:[#allocation4 + $0x8] sm:$0xff]
      %v509 = vld [vmem:[#allocation4 + $0x10] sm:$0xff]
      %v510 = vld [vmem:[#allocation4 + $0x18] sm:$0xff]
      %v511 = vpack.c.bf16 %v508, %v507
      %v512 = vpack.c.bf16 %v510, %v509
      %v515 = vunpack.c.l.b16 %v511
      %v516 = vunpack.c.h.b16 %v511
      %v517 = vunpack.c.l.b16 %v512
      %v518 = vunpack.c.h.b16 %v512
      %v519 = vpack.c.b16 %v515, %v515
      %v520 = vpack.c.b16 %v516, %v516
      %v521 = vpack.c.b16 %v517, %v517
      %v522 = vpack.c.b16 %v518, %v518
      %527 = vst [vmem:[%s6] sm:$0xf] %v519
      %528 = vst [vmem:[%s6 + $0x4] sm:$0xf] %v520
      %529 = vst [vmem:[%s6 + $0x8] sm:$0xf] %v521
      %530 = vst [vmem:[%s6 + $0xc] sm:$0xf] %v522
    $region33: #{attention_forward.3} parent=1 // pred_fallthru
      _
    // Predicated region
    $region34: #{attention_forward.3} parent=1 // pred_check
      _
    $region35: #{attention_forward.3} parent=1 // pred_check_branch
      %532 = sbr.rel (0) target = $region37
    $region36: #{attention_forward.3} parent=1 // pred_region
      _
    $region37: #{attention_forward.3} parent=1 // pred_fallthru
      _
    // Predicated region
    $region38: #{attention_forward.3} parent=1 // pred_check
      _
    $region39: #{attention_forward.3} parent=1 // pred_check_branch
      %534 = sbr.rel (0) target = $region41
    $region40: #{attention_forward.3} parent=1 // pred_region
      _
    $region41: #{attention_forward.3} parent=1 // pred_fallthru
      _
    // Predicated region
    $region42: #{attention_forward.3} parent=1 // pred_check
      _
    $region43: #{attention_forward.3} parent=1 // pred_check_branch
      %536 = sbr.rel (0) target = $region45
    $region44: #{attention_forward.3} parent=1 // pred_region
      _
    $region45: #{attention_forward.3} parent=1 // pred_fallthru
      _
    // Predicated region
    $region46: #{attention_forward.3} parent=1 // pred_check
      _
    $region47: #{attention_forward.3} parent=1 // pred_check_branch
      %538 = sbr.rel (0) target = $region49
    $region48: #{attention_forward.3} parent=1 // pred_region
      _
    $region49: #{attention_forward.3} parent=1 // pred_fallthru
      _
    // Predicated region
    $region50: #{attention_forward.3} parent=1 // pred_check
      _
    $region51: #{attention_forward.3} parent=1 // pred_check_branch
      %540 = sbr.rel (0) target = $region53
    $region52: #{attention_forward.3} parent=1 // pred_region
      _
    $region53: #{attention_forward.3} parent=1 // pred_fallthru
      _
    // Predicated region
    $region54: #{attention_forward.3} parent=1 // pred_check
      _
    $region55: #{attention_forward.3} parent=1 // pred_check_branch
      %542 = sbr.rel (0) target = $region57
    $region56: #{attention_forward.3} parent=1 // pred_region
      _
    $region57: #{attention_forward.3} parent=1 // pred_fallthru
      _
    %543 = vsyncpa [#allocation6], 1
    %544 = vsyncpa [#allocation8], 1

// kernel: attention_forward.4
$region0: #{attention_forward.4}
  #allocation0 [shape = 'u32[]', space=smem, size = 0x4, offset = 0x4, fixed_abs, tag = 'smem constant byte address 0x4 - core index']
  #allocation1 [shape = 'u32[144,128]{1,0:T(1,128)}', space=vmem, size = 0x12000, scoped, tag = 'internal scratch']
  #allocation2 [shape = 'f32[16,8]{1,0:T(8,128)}', space=vmem, size = 0x2000, scoped, tag = 'scratch operand']
  #allocation3 [shape = 'f32[16,8]{1,0:T(8,128)}', space=vmem, size = 0x2000, scoped, tag = 'scratch operand']
  #allocation4 [shape = 'f32[16,128]{1,0:T(8,128)}', space=vmem, size = 0x2000, scoped, tag = 'scratch operand']
  %s0 = inlined_call_operand.vmem [shape: bf16[2,16,128], index: 0, kind: input, shape index: {}]
  %s1 = inlined_call_operand.vmem [shape: bf16[2,16,128], index: 1, kind: input, shape index: {}]
  %s2 = inlined_call_operand.vmem [shape: bf16[2,16,128], index: 2, kind: input, shape index: {}]
  %s3 = inlined_call_operand.vmem [shape: bf16[2,16,128], index: 3, kind: output, shape index: {}]
  %s4 = sld [smem:[#allocation0]]
  $region53: #{attention_forward.4} parent=0
    _
  %s6 = ssub.s32 1, %s4
  %s7 = scalar_select 0, %s6, %s4
  loop: start=0, step=1, limit=4
  $region2: #{attention_forward.4} parent=0 // loop_pre_header
    _
  $region3: #{attention_forward.4} parent=0 // loop_header
    %s9 = sphi 0, %s13
    %p10 = scmp.ge.s32.totalorder %s9, 4
    %s16 = sphi 0, %s35
    %s17 = sphi 0, %s31
    %s18 = sphi 0, %s27
    %s19 = sphi 0, %s16
    %s20 = sphi 0, %s17
    %s21 = sphi 0, %s18
    %s22 = sphi 0, %s19
    %s23 = sphi 0, %s20
    %s24 = sphi 0, %s21
    %s40 = sphi 0, %s42
    %s43 = sphi 0, %s40
    %s44 = sphi 0, %s43
    %s60 = sphi 0, %s44
    %s68 = sphi 0, %s70
    %s71 = sphi 0, %s68
    %s72 = sphi 0, %s71
    %s88 = sphi 0, %s72
    %s96 = sphi 0, %s98
    %s99 = sphi 0, %s96
    %s100 = sphi 0, %s99
    %s116 = sphi 0, %s100
    %s124 = sphi 0, %s126
    %s127 = sphi 0, %s124
    %s128 = sphi 0, %s127
    %s144 = sphi 0, %s128
  $region4: #{attention_forward.4} parent=0 // loop_header_branch
    %12 = sbr.rel (%p10) target = $region8
  $region5: #{attention_forward.4} parent=0 // loop_body
    %s14 = ssub.s32 %s9, 1
    %s15 = ssub.s32 %s9, 2
    %s25 = sadd.s32 1, %s18
    %p26 = scmp.ge.s32.totalorder %s25, 1
    %s27 = scalar_select %p26, 0, %s25
    %s28 = sadd.s32 1, %s17
    %s29 = scalar_select %p26, %s28, %s17
    %p30 = scmp.ge.s32.totalorder %s29, 1
    %s31 = scalar_select %p30, 0, %s29
    %s32 = sadd.s32 1, %s16
    %s33 = scalar_select %p30, %s32, %s16
    %p34 = scmp.ge.s32.totalorder %s33, 2
    %s35 = scalar_select %p34, 0, %s33
    %s36 = ssub.s32 %s16, %s35
    %s37 = ssub.s32 %s17, %s31
    %s38 = sor.u32 %s36, %s37
    %p39 = scmp.eq.s32.totalorder %s38, 0
    %s41 = sadd.s32 %s40, 1
    %s42 = scalar_select %p39, %s40, %s41
    %p45 = pneg %p39
    %p46 = scmp.eq.s32.totalorder %s9, 1
    %p47 = por %p45, %p46
    %p48 = scmp.ne.s32.totalorder %s40, %s43
    %p49 = scmp.eq.s32.totalorder %s9, 0
    %p50 = por %p48, %p49
    %p51 = scmp.ne.s32.totalorder %s40, %s43
    %p52 = scmp.eq.s32.totalorder %s14, 1
    %p53 = por %p51, %p52
    %p54 = scmp.ne.s32.totalorder %s43, %s44
    %p55 = scmp.eq.s32.totalorder %s14, 0
    %p56 = por %p54, %p55
    %p57 = scmp.ne.s32.totalorder %s43, %s44
    %p58 = scmp.eq.s32.totalorder %s15, 1
    %p59 = por %p57, %p58
    %p61 = scmp.ne.s32.totalorder %s44, %s60
    %p62 = scmp.eq.s32.totalorder %s15, 0
    %p63 = por %p61, %p62
    %s64 = ssub.s32 %s16, %s35
    %s65 = ssub.s32 %s18, %s27
    %s66 = sor.u32 %s64, %s65
    %p67 = scmp.eq.s32.totalorder %s66, 0
    %s69 = sadd.s32 %s68, 1
    %s70 = scalar_select %p67, %s68, %s69
    %p73 = pneg %p67
    %p74 = scmp.eq.s32.totalorder %s9, 1
    %p75 = por %p73, %p74
    %p76 = scmp.ne.s32.totalorder %s68, %s71
    %p77 = scmp.eq.s32.totalorder %s9, 0
    %p78 = por %p76, %p77
    %p79 = scmp.ne.s32.totalorder %s68, %s71
    %p80 = scmp.eq.s32.totalorder %s14, 1
    %p81 = por %p79, %p80
    %p82 = scmp.ne.s32.totalorder %s71, %s72
    %p83 = scmp.eq.s32.totalorder %s14, 0
    %p84 = por %p82, %p83
    %p85 = scmp.ne.s32.totalorder %s71, %s72
    %p86 = scmp.eq.s32.totalorder %s15, 1
    %p87 = por %p85, %p86
    %p89 = scmp.ne.s32.totalorder %s72, %s88
    %p90 = scmp.eq.s32.totalorder %s15, 0
    %p91 = por %p89, %p90
    %s92 = ssub.s32 %s16, %s35
    %s93 = ssub.s32 %s18, %s27
    %s94 = sor.u32 %s92, %s93
    %p95 = scmp.eq.s32.totalorder %s94, 0
    %s97 = sadd.s32 %s96, 1
    %s98 = scalar_select %p95, %s96, %s97
    %p101 = pneg %p95
    %p102 = scmp.eq.s32.totalorder %s9, 1
    %p103 = por %p101, %p102
    %p104 = scmp.ne.s32.totalorder %s96, %s99
    %p105 = scmp.eq.s32.totalorder %s9, 0
    %p106 = por %p104, %p105
    %p107 = scmp.ne.s32.totalorder %s96, %s99
    %p108 = scmp.eq.s32.totalorder %s14, 1
    %p109 = por %p107, %p108
    %p110 = scmp.ne.s32.totalorder %s99, %s100
    %p111 = scmp.eq.s32.totalorder %s14, 0
    %p112 = por %p110, %p111
    %p113 = scmp.ne.s32.totalorder %s99, %s100
    %p114 = scmp.eq.s32.totalorder %s15, 1
    %p115 = por %p113, %p114
    %p117 = scmp.ne.s32.totalorder %s100, %s116
    %p118 = scmp.eq.s32.totalorder %s15, 0
    %p119 = por %p117, %p118
    %s120 = ssub.s32 %s16, %s35
    %s121 = ssub.s32 %s17, %s31
    %s122 = sor.u32 %s120, %s121
    %p123 = scmp.eq.s32.totalorder %s122, 0
    %s125 = sadd.s32 %s124, 1
    %s126 = scalar_select %p123, %s124, %s125
    %p129 = pneg %p123
    %p130 = scmp.eq.s32.totalorder %s9, 1
    %p131 = por %p129, %p130
    %p132 = scmp.ne.s32.totalorder %s124, %s127
    %p133 = scmp.eq.s32.totalorder %s9, 0
    %p134 = por %p132, %p133
    %p135 = scmp.ne.s32.totalorder %s124, %s127
    %p136 = scmp.eq.s32.totalorder %s14, 1
    %p137 = por %p135, %p136
    %p138 = scmp.ne.s32.totalorder %s127, %s128
    %p139 = scmp.eq.s32.totalorder %s14, 0
    %p140 = por %p138, %p139
    %p141 = scmp.ne.s32.totalorder %s127, %s128
    %p142 = scmp.eq.s32.totalorder %s15, 1
    %p143 = por %p141, %p142
    %p145 = scmp.ne.s32.totalorder %s128, %s144
    %p146 = scmp.eq.s32.totalorder %s15, 0
    %p147 = por %p145, %p146
    %p148 = scmp.le.s32.totalorder 1, %s9
    %p149 = scmp.lt.s32.totalorder %s9, 3
    %p150 = pnand %p148, %p149
    %p151 = pneg %p150
    // Predicated region
    $region9: #{attention_forward.4} parent=5 // pred_check
      _
    $region10: #{attention_forward.4} parent=5 // pred_check_branch
      %153 = sbr.rel (%p150) target = $region12
    $region11: #{attention_forward.4} parent=5 // pred_region
      %s154 = ssub.s32 %s9, 1
    $region12: #{attention_forward.4} parent=5 // pred_fallthru
      _
    %p155 = scmp.lt.s32.totalorder %s9, 2
    // Predicated region
    $region13: #{attention_forward.4} parent=5 // pred_check
      %p156 = pneg %p155
    $region14: #{attention_forward.4} parent=5 // pred_check_branch
      %158 = sbr.rel (%p156) target = $region16
    $region15: #{attention_forward.4} parent=5 // pred_region
      // Predicated region
      $region17: #{attention_forward.4} parent=15 // pred_check
        %p159 = pneg %p50
      $region18: #{attention_forward.4} parent=15 // pred_check_branch
        %161 = sbr.rel (%p159) target = $region20
      $region19: #{attention_forward.4} parent=15 // pred_region
        %s162 = smul.u32 2, %s17
        %p163 = scmp.lt.s32.totalorder %s16, 1
        %s164 = scalar_select %p163, %s16, 1
        %p165 = scmp.lt.s32.totalorder %s162, 1
        %s166 = scalar_select %p165, %s162, 1
        %s167 = smul.addr %s164, 2
        %s168 = sadd.s32 %s166, %s167
        %s169 = smul.addr %s168, 4
        %s170 = scalar_lea.vmem %s0, %s169
        %s171 = smul.u32 2, %s17
      $region20: #{attention_forward.4} parent=15 // pred_fallthru
        _
      // Predicated region
      $region21: #{attention_forward.4} parent=15 // pred_check
        %p172 = pneg %p78
      $region22: #{attention_forward.4} parent=15 // pred_check_branch
        %174 = sbr.rel (%p172) target = $region24
      $region23: #{attention_forward.4} parent=15 // pred_region
        %s175 = smul.u32 2, %s18
        %p176 = scmp.lt.s32.totalorder %s16, 1
        %s177 = scalar_select %p176, %s16, 1
        %p178 = scmp.lt.s32.totalorder %s175, 1
        %s179 = scalar_select %p178, %s175, 1
        %s180 = smul.addr %s177, 2
        %s181 = sadd.s32 %s179, %s180
        %s182 = smul.addr %s181, 4
        %s183 = scalar_lea.vmem %s1, %s182
        %s184 = smul.u32 2, %s18
      $region24: #{attention_forward.4} parent=15 // pred_fallthru
        _
      // Predicated region
      $region25: #{attention_forward.4} parent=15 // pred_check
        %p185 = pneg %p106
      $region26: #{attention_forward.4} parent=15 // pred_check_branch
        %187 = sbr.rel (%p185) target = $region28
      $region27: #{attention_forward.4} parent=15 // pred_region
        %s188 = smul.u32 2, %s18
        %p189 = scmp.lt.s32.totalorder %s16, 1
        %s190 = scalar_select %p189, %s16, 1
        %p191 = scmp.lt.s32.totalorder %s188, 1
        %s192 = scalar_select %p191, %s188, 1
        %s193 = smul.addr %s190, 2
        %s194 = sadd.s32 %s192, %s193
        %s195 = smul.addr %s194, 4
        %s196 = scalar_lea.vmem %s2, %s195
        %s197 = smul.u32 2, %s18
      $region28: #{attention_forward.4} parent=15 // pred_fallthru
        _
    $region16: #{attention_forward.4} parent=5 // pred_fallthru
      _
    %p198 = scmp.le.s32.totalorder 1, %s9
    %p199 = scmp.lt.s32.totalorder %s9, 3
    %p200 = pnand %p198, %p199
    %p201 = pneg %p200
    // Predicated region
    $region29: #{attention_forward.4} parent=5 // pred_check
      _
    $region30: #{attention_forward.4} parent=5 // pred_check_branch
      %203 = sbr.rel (%p200) target = $region32
    $region31: #{attention_forward.4} parent=5 // pred_region
      %s204 = ssub.s32 %s9, 1
      %s205 = smul.u32 2, %s20
      %p206 = scmp.lt.s32.totalorder %s19, 1
      %s207 = scalar_select %p206, %s19, 1
      %p208 = scmp.lt.s32.totalorder %s205, 1
      %s209 = scalar_select %p208, %s205, 1
      %s210 = smul.addr %s207, 2
      %s211 = sadd.s32 %s209, %s210
      %s212 = smul.addr %s211, 4
      %s213 = scalar_lea.vmem %s0, %s212
      %p214 = pneg %p56
      %p215 = pneg %p53
      %s216 = smul.u32 2, %s21
      %p217 = scmp.lt.s32.totalorder %s19, 1
      %s218 = scalar_select %p217, %s19, 1
      %p219 = scmp.lt.s32.totalorder %s216, 1
      %s220 = scalar_select %p219, %s216, 1
      %s221 = smul.addr %s218, 2
      %s222 = sadd.s32 %s220, %s221
      %s223 = smul.addr %s222, 4
      %s224 = scalar_lea.vmem %s1, %s223
      %p225 = pneg %p84
      %p226 = pneg %p81
      %s227 = smul.u32 2, %s21
      %p228 = scmp.lt.s32.totalorder %s19, 1
      %s229 = scalar_select %p228, %s19, 1
      %p230 = scmp.lt.s32.totalorder %s227, 1
      %s231 = scalar_select %p230, %s227, 1
      %s232 = smul.addr %s229, 2
      %s233 = sadd.s32 %s231, %s232
      %s234 = smul.addr %s233, 4
      %s235 = scalar_lea.vmem %s2, %s234
      %p236 = pneg %p112
      %p237 = pneg %p109
      %p238 = pneg %p140
      %p239 = pneg %p137
      %s240 = smul.u32 2, %s20
      %p241 = scmp.lt.s32.totalorder %s19, 1
      %s242 = scalar_select %p241, %s19, 1
      %p243 = scmp.lt.s32.totalorder %s240, 1
      %s244 = scalar_select %p243, %s240, 1
      %s245 = smul.addr %s242, 2
      %s246 = sadd.s32 %s244, %s245
      %s247 = smul.addr %s246, 4
      %s248 = scalar_lea.vmem %s3, %s247
      %s249 = smul.u32 2, %s20
      %p250 = scmp.lt.s32.totalorder %s19, 1
      %s251 = scalar_select %p250, %s19, 1
      %p252 = scmp.lt.s32.totalorder %s249, 1
      %s253 = scalar_select %p252, %s249, 1
      %s254 = smul.addr %s251, 2
      %s255 = sadd.s32 %s253, %s254
      %s256 = smul.addr %s255, 4
      %s257 = scalar_lea.vmem %s0, %s256
      %s258 = smul.u32 2, %s20
      %s259 = smul.u32 2, %s21
      %p260 = scmp.lt.s32.totalorder %s19, 1
      %s261 = scalar_select %p260, %s19, 1
      %p262 = scmp.lt.s32.totalorder %s259, 1
      %s263 = scalar_select %p262, %s259, 1
      %s264 = smul.addr %s261, 2
      %s265 = sadd.s32 %s263, %s264
      %s266 = smul.addr %s265, 4
      %s267 = scalar_lea.vmem %s1, %s266
      %s268 = smul.u32 2, %s21
      %s269 = smul.u32 2, %s21
      %p270 = scmp.lt.s32.totalorder %s19, 1
      %s271 = scalar_select %p270, %s19, 1
      %p272 = scmp.lt.s32.totalorder %s269, 1
      %s273 = scalar_select %p272, %s269, 1
      %s274 = smul.addr %s271, 2
      %s275 = sadd.s32 %s273, %s274
      %s276 = smul.addr %s275, 4
      %s277 = scalar_lea.vmem %s2, %s276
      %s278 = smul.u32 2, %s21
      %s279 = smul.u32 2, %s20
      %p280 = scmp.lt.s32.totalorder %s19, 1
      %s281 = scalar_select %p280, %s19, 1
      %p282 = scmp.lt.s32.totalorder %s279, 1
      %s283 = scalar_select %p282, %s279, 1
      %s284 = smul.addr %s281, 2
      %s285 = sadd.s32 %s283, %s284
      %s286 = smul.addr %s285, 4
      %s287 = scalar_lea.vmem %s3, %s286
      %s288 = smul.u32 2, %s20
      %p290 = scmp.eq.s32.totalorder %s21, 0
      // Predicated region
      $region33: #{attention_forward.4} parent=31 // pred_check
        %p291 = pneg %p290
      $region34: #{attention_forward.4} parent=31 // pred_check_branch
        %293 = sbr.rel (%p291) target = $region36
      $region35: #{attention_forward.4} parent=31 // pred_region
        %vm294 = vcmask 64512
        %295 = vst.msk [vmem:[#allocation2] sm:$0xff] %vm294, -inf
        %296 = vst.msk [vmem:[#allocation2 + $0x8] sm:$0xff] %vm294, -inf
        %297 = vst.msk [vmem:[#allocation3] sm:$0xff] %vm294, 0.0
        %298 = vst.msk [vmem:[#allocation3 + $0x8] sm:$0xff] %vm294, 0.0
        %299 = vst [vmem:[#allocation4] sm:$0xff] 0.0
        %300 = vst [vmem:[#allocation4 + $0x8] sm:$0xff] 0.0
      $region36: #{attention_forward.4} parent=31 // pred_fallthru
        _
      %v301 = vld [vmem:[%s257] sm:$0xf]
      %v302 = vld [vmem:[%s257 + $0x4] sm:$0xf]
      %v303 = vld [vmem:[%s267] sm:$0xf]
      %v304 = vld [vmem:[%s267 + $0x4] sm:$0xf]
      %v305 = vld [vmem:[%s277] sm:$0xf]
      %v306 = vld [vmem:[%s277 + $0x4] sm:$0xf]
      %v309 = vunpack.c.l.b16 %v301
      %v310 = vunpack.c.l.b16 %v302
      %v311 = vpack.c.b16 %v310, %v309
      %v314 = vunpack.c.l.b16 %v303
      %v315 = vunpack.c.l.b16 %v304
      %v316 = vpack.c.b16 %v315, %v314
      %vm317 = vcmask 130048
      %v319 = vsel %vm317, %v311, 0
      %v322 = vsel %vm317, %v316, 0
      %324 = vmatprep.subr.bf16.mxu0 0
      %325 = vmatpush1.bf16.xpose.msra.mxu0 %v322
      %326 = vmatprep.subr.bf16.mxu0 0
      %327 = vmatpush1.bf16.xpose.msra.mxu0 0
      %328 = vmatprep.subr.bf16.mxu0 0
      %329 = vmatpush1.bf16.xpose.msra.mxu0 0
      %330 = vmatprep.subr.bf16.mxu0 0
      %331 = vmatpush1.bf16.xpose.msra.mxu0 0
      %332 = vmatprep.subr.bf16.mxu0 0
      %333 = vmatpush1.bf16.xpose.msra.mxu0 0
      %334 = vmatprep.subr.bf16.mxu0 0
      %335 = vmatpush1.bf16.xpose.msra.mxu0 0
      %336 = vmatprep.subr.bf16.mxu0 0
      %337 = vmatpush1.bf16.xpose.msra.mxu0 0
      %338 = vmatprep.subr.bf16.mxu0 0
      %339 = vmatpush1.bf16.xpose.msra.mxu0 0
      %340 = vmatprep.subr.bf16.mxu0 0
      %341 = vmatpush1.bf16.xpose.msra.mxu0 0
      %342 = vmatprep.subr.bf16.mxu0 0
      %343 = vmatpush1.bf16.xpose.msra.mxu0 0
      %344 = vmatprep.subr.bf16.mxu0 0
      %345 = vmatpush1.bf16.xpose.msra.mxu0 0
      %346 = vmatprep.subr.bf16.mxu0 0
      %347 = vmatpush1.bf16.xpose.msra.mxu0 0
      %348 = vmatprep.subr.bf16.mxu0 0
      %349 = vmatpush1.bf16.xpose.msra.mxu0 0
      %350 = vmatprep.subr.bf16.mxu0 0
      %351 = vmatpush1.bf16.xpose.msra.mxu0 0
      %352 = vmatprep.subr.bf16.mxu0 0
      %353 = vmatpush1.bf16.xpose.msra.mxu0 0
      %354 = vmatprep.subr.bf16.mxu0 0
      %355 = vmatpush1.bf16.xpose.msra.mxu0 0
      %356 = vmatprep.mubr.bf16.mxu0 0
      %357 = vmatmul.mubr.bf16.gmra.mrb[0].mxu0 %v319
      %v358 = vpop.f32.mrb[0].mxu0
      %v359 = vadd.f32 0.0, %v358
      %v360 = vpop.f32.mrb[0].mxu0
      %v361 = vpop.f32.mrb[0].mxu0
      %v362 = vadd.f32 0.0, %v361
      %v363 = vpop.f32.mrb[0].mxu0
      %364 = vdwg.mxu0
      %v365 = vld [vmem:[#allocation2] sm:$0xff]
      %v366 = vld [vmem:[#allocation2 + $0x8] sm:$0xff]
      %v367 = vsel %vm317, %v359, -inf
      %368 = vmax.xlane.f32.xlu0 %v367
      %v369 = vpop.xlane.xlu0 %368
      %v370 = vsel %vm317, %v362, -inf
      %371 = vmax.xlane.f32.xlu0 %v370
      %v372 = vpop.xlane.xlu0 %371
      %v373 = vmax.f32 %v365, %v369
      %v374 = vmax.f32 %v366, %v372
      %v375 = vsub.f32 %v365, %v373
      %v376 = vsub.f32 %v366, %v374
      %v377 = vmul.f32 %v375, 1.442695
      %v378 = vpow.pop %v377
      %v379 = vmul.f32 %v376, 1.442695
      %v380 = vpow.pop %v379
      %382 = vset.pattern.permute.xlu0 0
      %383 = vperm.xlu0 %382, %v373
      %v384 = vpop.permute.xlu0 %383
      %387 = vset.pattern.permute.xlu0 0
      %388 = vperm.xlu0 %387, %v374
      %v389 = vpop.permute.xlu0 %388
      %v391 = vsub.f32 %v359, %v384
      %v392 = vsub.f32 %v362, %v389
      %v393 = vmul.f32 %v391, 1.442695
      %v394 = vpow.pop %v393
      %v395 = vmul.f32 %v392, 1.442695
      %v396 = vpow.pop %v395
      %v397 = vld [vmem:[#allocation3] sm:$0xff]
      %v398 = vld [vmem:[#allocation3 + $0x8] sm:$0xff]
      %v399 = vmul.f32 %v378, %v397
      %v400 = vmul.f32 %v380, %v398
      %v401 = vsel %vm317, %v394, 0.0
      %402 = vadd.xlane.f32.xlu0 %v401
      %v403 = vpop.xlane.xlu0 %402
      %v404 = vsel %vm317, %v396, 0.0
      %405 = vadd.xlane.f32.xlu0 %v404
      %v406 = vpop.xlane.xlu0 %405
      %v407 = vadd.f32 %v399, %v403
      %v408 = vadd.f32 %v400, %v406
      %vm409 = vcmask 7168
      %410 = vst.msk [vmem:[#allocation3] sm:$0xff] %vm409, %v407
      %411 = vst.msk [vmem:[#allocation3 + $0x8] sm:$0xff] %vm409, %v408
      %v412 = vld [vmem:[#allocation4] sm:$0xff]
      %v413 = vld [vmem:[#allocation4 + $0x8] sm:$0xff]
      %415 = vset.pattern.permute.xlu0 0
      %416 = vperm.xlu0 %415, %v378
      %v417 = vpop.permute.xlu0 %416
      %420 = vset.pattern.permute.xlu0 0
      %421 = vperm.xlu0 %420, %v380
      %v422 = vpop.permute.xlu0 %421
      %v424 = vmul.f32 %v417, %v412
      %v425 = vmul.f32 %v422, %v413
      %v426 = vpack.c.bf16 %v396, %v394
      %v429 = vunpack.c.l.b16 %v305
      %v430 = vunpack.c.l.b16 %v306
      %v431 = vpack.c.b16 %v430, %v429
      %v434 = vsel %vm317, %v426, 0
      %436 = vmatprep.subr.bf16.mxu0 0
      %437 = vmatpush1.bf16.msra.mxu0 %v431
      %438 = vmatprep.subr.bf16.mxu0 0
      %439 = vmatpush1.bf16.msra.mxu0 0
      %440 = vmatprep.subr.bf16.mxu0 0
      %441 = vmatpush1.bf16.msra.mxu0 0
      %442 = vmatprep.subr.bf16.mxu0 0
      %443 = vmatpush1.bf16.msra.mxu0 0
      %444 = vmatprep.subr.bf16.mxu0 0
      %445 = vmatpush1.bf16.msra.mxu0 0
      %446 = vmatprep.subr.bf16.mxu0 0
      %447 = vmatpush1.bf16.msra.mxu0 0
      %448 = vmatprep.subr.bf16.mxu0 0
      %449 = vmatpush1.bf16.msra.mxu0 0
      %450 = vmatprep.subr.bf16.mxu0 0
      %451 = vmatpush1.bf16.msra.mxu0 0
      %452 = vmatprep.subr.bf16.mxu0 0
      %453 = vmatpush1.bf16.msra.mxu0 0
      %454 = vmatprep.subr.bf16.mxu0 0
      %455 = vmatpush1.bf16.msra.mxu0 0
      %456 = vmatprep.subr.bf16.mxu0 0
      %457 = vmatpush1.bf16.msra.mxu0 0
      %458 = vmatprep.subr.bf16.mxu0 0
      %459 = vmatpush1.bf16.msra.mxu0 0
      %460 = vmatprep.subr.bf16.mxu0 0
      %461 = vmatpush1.bf16.msra.mxu0 0
      %462 = vmatprep.subr.bf16.mxu0 0
      %463 = vmatpush1.bf16.msra.mxu0 0
      %464 = vmatprep.subr.bf16.mxu0 0
      %465 = vmatpush1.bf16.msra.mxu0 0
      %466 = vmatprep.subr.bf16.mxu0 0
      %467 = vmatpush1.bf16.msra.mxu0 0
      %468 = vmatprep.mubr.bf16.mxu0 0
      %469 = vmatmul.mubr.bf16.gmra.mrb[0].mxu0 %v434
      %v470 = vpop.f32.mrb[0].mxu0
      %v471 = vadd.f32 0.0, %v470
      %v472 = vpop.f32.mrb[0].mxu0
      %v473 = vpop.f32.mrb[0].mxu0
      %v474 = vadd.f32 0.0, %v473
      %v475 = vpop.f32.mrb[0].mxu0
      %476 = vdwg.mxu0
      %v477 = vadd.f32 %v424, %v471
      %v478 = vadd.f32 %v425, %v474
      %479 = vst.msk [vmem:[#allocation4] sm:$0xff] %vm317, %v477
      %480 = vst.msk [vmem:[#allocation4 + $0x8] sm:$0xff] %vm317, %v478
      %481 = vst.msk [vmem:[#allocation2] sm:$0xff] %vm409, %v373
      %482 = vst.msk [vmem:[#allocation2 + $0x8] sm:$0xff] %vm409, %v374
      %v483 = vld [vmem:[%s257] sm:$0xf]
      %v484 = vld [vmem:[%s257 + $0x4] sm:$0xf]
      %v485 = vld [vmem:[%s267] sm:$0xf]
      %v486 = vld [vmem:[%s267 + $0x4] sm:$0xf]
      %v487 = vld [vmem:[%s277] sm:$0xf]
      %v488 = vld [vmem:[%s277 + $0x4] sm:$0xf]
      %v491 = vunpack.c.l.b16 %v483
      %v492 = vunpack.c.l.b16 %v484
      %v493 = vpack.c.b16 %v492, %v491
      %494 = vrot.lane.b32.xlu0 %v493, 112
      %v495 = vpop.permute.xlu0 %494
      %v498 = vunpack.c.l.b16 %v485
      %v499 = vunpack.c.l.b16 %v486
      %v500 = vpack.c.b16 %v499, %v498
      %501 = vrot.lane.b32.xlu0 %v500, 112
      %v502 = vpop.permute.xlu0 %501
      %v504 = vsel %vm317, %v495, 0
      %v507 = vsel %vm317, %v502, 0
      %509 = vmatprep.subr.bf16.mxu0 0
      %510 = vmatpush1.bf16.xpose.msra.mxu0 %v507
      %511 = vmatprep.subr.bf16.mxu0 0
      %512 = vmatpush1.bf16.xpose.msra.mxu0 0
      %513 = vmatprep.subr.bf16.mxu0 0
      %514 = vmatpush1.bf16.xpose.msra.mxu0 0
      %515 = vmatprep.subr.bf16.mxu0 0
      %516 = vmatpush1.bf16.xpose.msra.mxu0 0
      %517 = vmatprep.subr.bf16.mxu0 0
      %518 = vmatpush1.bf16.xpose.msra.mxu0 0
      %519 = vmatprep.subr.bf16.mxu0 0
      %520 = vmatpush1.bf16.xpose.msra.mxu0 0
      %521 = vmatprep.subr.bf16.mxu0 0
      %522 = vmatpush1.bf16.xpose.msra.mxu0 0
      %523 = vmatprep.subr.bf16.mxu0 0
      %524 = vmatpush1.bf16.xpose.msra.mxu0 0
      %525 = vmatprep.subr.bf16.mxu0 0
      %526 = vmatpush1.bf16.xpose.msra.mxu0 0
      %527 = vmatprep.subr.bf16.mxu0 0
      %528 = vmatpush1.bf16.xpose.msra.mxu0 0
      %529 = vmatprep.subr.bf16.mxu0 0
      %530 = vmatpush1.bf16.xpose.msra.mxu0 0
      %531 = vmatprep.subr.bf16.mxu0 0
      %532 = vmatpush1.bf16.xpose.msra.mxu0 0
      %533 = vmatprep.subr.bf16.mxu0 0
      %534 = vmatpush1.bf16.xpose.msra.mxu0 0
      %535 = vmatprep.subr.bf16.mxu0 0
      %536 = vmatpush1.bf16.xpose.msra.mxu0 0
      %537 = vmatprep.subr.bf16.mxu0 0
      %538 = vmatpush1.bf16.xpose.msra.mxu0 0
      %539 = vmatprep.subr.bf16.mxu0 0
      %540 = vmatpush1.bf16.xpose.msra.mxu0 0
      %541 = vmatprep.mubr.bf16.mxu0 0
      %542 = vmatmul.mubr.bf16.gmra.mrb[0].mxu0 %v504
      %v543 = vpop.f32.mrb[0].mxu0
      %v544 = vadd.f32 0.0, %v543
      %v545 = vpop.f32.mrb[0].mxu0
      %v546 = vpop.f32.mrb[0].mxu0
      %v547 = vadd.f32 0.0, %v546
      %v548 = vpop.f32.mrb[0].mxu0
      %549 = vdwg.mxu0
      %v550 = vld [vmem:[#allocation2] sm:$0xff]
      %v551 = vld [vmem:[#allocation2 + $0x8] sm:$0xff]
      %v552 = vsel %vm317, %v544, -inf
      %553 = vmax.xlane.f32.xlu0 %v552
      %v554 = vpop.xlane.xlu0 %553
      %v555 = vsel %vm317, %v547, -inf
      %556 = vmax.xlane.f32.xlu0 %v555
      %v557 = vpop.xlane.xlu0 %556
      %v558 = vmax.f32 %v550, %v554
      %v559 = vmax.f32 %v551, %v557
      %v560 = vsub.f32 %v550, %v558
      %v561 = vsub.f32 %v551, %v559
      %v562 = vmul.f32 %v560, 1.442695
      %v563 = vpow.pop %v562
      %v564 = vmul.f32 %v561, 1.442695
      %v565 = vpow.pop %v564
      %567 = vset.pattern.permute.xlu0 1
      %568 = vperm.xlu0 %567, %v558
      %v569 = vpop.permute.xlu0 %568
      %572 = vset.pattern.permute.xlu0 1
      %573 = vperm.xlu0 %572, %v559
      %v574 = vpop.permute.xlu0 %573
      %v576 = vsub.f32 %v544, %v569
      %v577 = vsub.f32 %v547, %v574
      %v578 = vmul.f32 %v576, 1.442695
      %v579 = vpow.pop %v578
      %v580 = vmul.f32 %v577, 1.442695
      %v581 = vpow.pop %v580
      %v582 = vld [vmem:[#allocation3] sm:$0xff]
      %v583 = vld [vmem:[#allocation3 + $0x8] sm:$0xff]
      %v584 = vmul.f32 %v563, %v582
      %v585 = vmul.f32 %v565, %v583
      %v586 = vsel %vm317, %v579, 0.0
      %587 = vadd.xlane.f32.xlu0 %v586
      %v588 = vpop.xlane.xlu0 %587
      %v589 = vsel %vm317, %v581, 0.0
      %590 = vadd.xlane.f32.xlu0 %v589
      %v591 = vpop.xlane.xlu0 %590
      %v592 = vadd.f32 %v584, %v588
      %v593 = vadd.f32 %v585, %v591
      %vm594 = vcmask 15368
      %595 = vst.msk [vmem:[#allocation3] sm:$0xff] %vm594, %v592
      %596 = vst.msk [vmem:[#allocation3 + $0x8] sm:$0xff] %vm594, %v593
      %v597 = vld [vmem:[#allocation4] sm:$0xff]
      %v598 = vld [vmem:[#allocation4 + $0x8] sm:$0xff]
      %600 = vset.pattern.permute.xlu0 1
      %601 = vperm.xlu0 %600, %v563
      %v602 = vpop.permute.xlu0 %601
      %605 = vset.pattern.permute.xlu0 1
      %606 = vperm.xlu0 %605, %v565
      %v607 = vpop.permute.xlu0 %606
      %v609 = vmul.f32 %v602, %v597
      %v610 = vmul.f32 %v607, %v598
      %v611 = vpack.c.bf16 %v581, %v579
      %v614 = vunpack.c.l.b16 %v487
      %v615 = vunpack.c.l.b16 %v488
      %v616 = vpack.c.b16 %v615, %v614
      %617 = vrot.lane.b32.xlu0 %v616, 112
      %v618 = vpop.permute.xlu0 %617
      %v621 = vsel %vm317, %v611, 0
      %623 = vmatprep.subr.bf16.mxu0 0
      %624 = vmatpush1.bf16.msra.mxu0 %v618
      %625 = vmatprep.subr.bf16.mxu0 0
      %626 = vmatpush1.bf16.msra.mxu0 0
      %627 = vmatprep.subr.bf16.mxu0 0
      %628 = vmatpush1.bf16.msra.mxu0 0
      %629 = vmatprep.subr.bf16.mxu0 0
      %630 = vmatpush1.bf16.msra.mxu0 0
      %631 = vmatprep.subr.bf16.mxu0 0
      %632 = vmatpush1.bf16.msra.mxu0 0
      %633 = vmatprep.subr.bf16.mxu0 0
      %634 = vmatpush1.bf16.msra.mxu0 0
      %635 = vmatprep.subr.bf16.mxu0 0
      %636 = vmatpush1.bf16.msra.mxu0 0
      %637 = vmatprep.subr.bf16.mxu0 0
      %638 = vmatpush1.bf16.msra.mxu0 0
      %639 = vmatprep.subr.bf16.mxu0 0
      %640 = vmatpush1.bf16.msra.mxu0 0
      %641 = vmatprep.subr.bf16.mxu0 0
      %642 = vmatpush1.bf16.msra.mxu0 0
      %643 = vmatprep.subr.bf16.mxu0 0
      %644 = vmatpush1.bf16.msra.mxu0 0
      %645 = vmatprep.subr.bf16.mxu0 0
      %646 = vmatpush1.bf16.msra.mxu0 0
      %647 = vmatprep.subr.bf16.mxu0 0
      %648 = vmatpush1.bf16.msra.mxu0 0
      %649 = vmatprep.subr.bf16.mxu0 0
      %650 = vmatpush1.bf16.msra.mxu0 0
      %651 = vmatprep.subr.bf16.mxu0 0
      %652 = vmatpush1.bf16.msra.mxu0 0
      %653 = vmatprep.subr.bf16.mxu0 0
      %654 = vmatpush1.bf16.msra.mxu0 0
      %655 = vmatprep.mubr.bf16.mxu0 0
      %656 = vmatmul.mubr.bf16.gmra.mrb[0].mxu0 %v621
      %v657 = vpop.f32.mrb[0].mxu0
      %v658 = vadd.f32 0.0, %v657
      %v659 = vpop.f32.mrb[0].mxu0
      %v660 = vpop.f32.mrb[0].mxu0
      %v661 = vadd.f32 0.0, %v660
      %v662 = vpop.f32.mrb[0].mxu0
      %663 = vdwg.mxu0
      %666 = vrot.lane.b32.xlu0 %v658, 16
      %v667 = vpop.permute.xlu0 %666
      %668 = vrot.lane.b32.xlu0 %v661, 16
      %v669 = vpop.permute.xlu0 %668
      %v672 = vadd.f32 %v609, %v667
      %v673 = vadd.f32 %v610, %v669
      %vm674 = vcmask 261248
      %675 = vst.msk [vmem:[#allocation4] sm:$0xff] %vm674, %v672
      %676 = vst.msk [vmem:[#allocation4 + $0x8] sm:$0xff] %vm674, %v673
      %677 = vst.msk [vmem:[#allocation2] sm:$0xff] %vm594, %v558
      %678 = vst.msk [vmem:[#allocation2 + $0x8] sm:$0xff] %vm594, %v559
      %v679 = vld [vmem:[%s257] sm:$0xf]
      %v680 = vld [vmem:[%s257 + $0x4] sm:$0xf]
      %v681 = vld [vmem:[%s267] sm:$0xf]
      %v682 = vld [vmem:[%s267 + $0x4] sm:$0xf]
      %v683 = vld [vmem:[%s277] sm:$0xf]
      %v684 = vld [vmem:[%s277 + $0x4] sm:$0xf]
      %v687 = vunpack.c.l.b16 %v679
      %v688 = vunpack.c.l.b16 %v680
      %v689 = vpack.c.b16 %v688, %v687
      %690 = vrot.lane.b32.xlu0 %v689, 96
      %v691 = vpop.permute.xlu0 %690
      %v694 = vunpack.c.l.b16 %v681
      %v695 = vunpack.c.l.b16 %v682
      %v696 = vpack.c.b16 %v695, %v694
      %697 = vrot.lane.b32.xlu0 %v696, 96
      %v698 = vpop.permute.xlu0 %697
      %v700 = vsel %vm317, %v691, 0
      %v703 = vsel %vm317, %v698, 0
      %705 = vmatprep.subr.bf16.mxu0 0
      %706 = vmatpush1.bf16.xpose.msra.mxu0 %v703
      %707 = vmatprep.subr.bf16.mxu0 0
      %708 = vmatpush1.bf16.xpose.msra.mxu0 0
      %709 = vmatprep.subr.bf16.mxu0 0
      %710 = vmatpush1.bf16.xpose.msra.mxu0 0
      %711 = vmatprep.subr.bf16.mxu0 0
      %712 = vmatpush1.bf16.xpose.msra.mxu0 0
      %713 = vmatprep.subr.bf16.mxu0 0
      %714 = vmatpush1.bf16.xpose.msra.mxu0 0
      %715 = vmatprep.subr.bf16.mxu0 0
      %716 = vmatpush1.bf16.xpose.msra.mxu0 0
      %717 = vmatprep.subr.bf16.mxu0 0
      %718 = vmatpush1.bf16.xpose.msra.mxu0 0
      %719 = vmatprep.subr.bf16.mxu0 0
      %720 = vmatpush1.bf16.xpose.msra.mxu0 0
      %721 = vmatprep.subr.bf16.mxu0 0
      %722 = vmatpush1.bf16.xpose.msra.mxu0 0
      %723 = vmatprep.subr.bf16.mxu0 0
      %724 = vmatpush1.bf16.xpose.msra.mxu0 0
      %725 = vmatprep.subr.bf16.mxu0 0
      %726 = vmatpush1.bf16.xpose.msra.mxu0 0
      %727 = vmatprep.subr.bf16.mxu0 0
      %728 = vmatpush1.bf16.xpose.msra.mxu0 0
      %729 = vmatprep.subr.bf16.mxu0 0
      %730 = vmatpush1.bf16.xpose.msra.mxu0 0
      %731 = vmatprep.subr.bf16.mxu0 0
      %732 = vmatpush1.bf16.xpose.msra.mxu0 0
      %733 = vmatprep.subr.bf16.mxu0 0
      %734 = vmatpush1.bf16.xpose.msra.mxu0 0
      %735 = vmatprep.subr.bf16.mxu0 0
      %736 = vmatpush1.bf16.xpose.msra.mxu0 0
      %737 = vmatprep.mubr.bf16.mxu0 0
      %738 = vmatmul.mubr.bf16.gmra.mrb[0].mxu0 %v700
      %v739 = vpop.f32.mrb[0].mxu0
      %v740 = vadd.f32 0.0, %v739
      %v741 = vpop.f32.mrb[0].mxu0
      %v742 = vpop.f32.mrb[0].mxu0
      %v743 = vadd.f32 0.0, %v742
      %v744 = vpop.f32.mrb[0].mxu0
      %745 = vdwg.mxu0
      %v746 = vld [vmem:[#allocation2] sm:$0xff]
      %v747 = vld [vmem:[#allocation2 + $0x8] sm:$0xff]
      %v748 = vsel %vm317, %v740, -inf
      %749 = vmax.xlane.f32.xlu0 %v748
      %v750 = vpop.xlane.xlu0 %749
      %v751 = vsel %vm317, %v743, -inf
      %752 = vmax.xlane.f32.xlu0 %v751
      %v753 = vpop.xlane.xlu0 %752
      %v754 = vmax.f32 %v746, %v750
      %v755 = vmax.f32 %v747, %v753
      %v756 = vsub.f32 %v746, %v754
      %v757 = vsub.f32 %v747, %v755
      %v758 = vmul.f32 %v756, 1.442695
      %v759 = vpow.pop %v758
      %v760 = vmul.f32 %v757, 1.442695
      %v761 = vpow.pop %v760
      %763 = vset.pattern.permute.xlu0 2
      %764 = vperm.xlu0 %763, %v754
      %v765 = vpop.permute.xlu0 %764
      %768 = vset.pattern.permute.xlu0 2
      %769 = vperm.xlu0 %768, %v755
      %v770 = vpop.permute.xlu0 %769
      %v772 = vsub.f32 %v740, %v765
      %v773 = vsub.f32 %v743, %v770
      %v774 = vmul.f32 %v772, 1.442695
      %v775 = vpow.pop %v774
      %v776 = vmul.f32 %v773, 1.442695
      %v777 = vpow.pop %v776
      %v778 = vld [vmem:[#allocation3] sm:$0xff]
      %v779 = vld [vmem:[#allocation3 + $0x8] sm:$0xff]
      %v780 = vmul.f32 %v759, %v778
      %v781 = vmul.f32 %v761, %v779
      %v782 = vsel %vm317, %v775, 0.0
      %783 = vadd.xlane.f32.xlu0 %v782
      %v784 = vpop.xlane.xlu0 %783
      %v785 = vsel %vm317, %v777, 0.0
      %786 = vadd.xlane.f32.xlu0 %v785
      %v787 = vpop.xlane.xlu0 %786
      %v788 = vadd.f32 %v780, %v784
      %v789 = vadd.f32 %v781, %v787
      %vm790 = vcmask 23568
      %791 = vst.msk [vmem:[#allocation3] sm:$0xff] %vm790, %v788
      %792 = vst.msk [vmem:[#allocation3 + $0x8] sm:$0xff] %vm790, %v789
      %v793 = vld [vmem:[#allocation4] sm:$0xff]
      %v794 = vld [vmem:[#allocation4 + $0x8] sm:$0xff]
      %796 = vset.pattern.permute.xlu0 2
      %797 = vperm.xlu0 %796, %v759
      %v798 = vpop.permute.xlu0 %797
      %801 = vset.pattern.permute.xlu0 2
      %802 = vperm.xlu0 %801, %v761
      %v803 = vpop.permute.xlu0 %802
      %v805 = vmul.f32 %v798, %v793
      %v806 = vmul.f32 %v803, %v794
      %v807 = vpack.c.bf16 %v777, %v775
      %v810 = vunpack.c.l.b16 %v683
      %v811 = vunpack.c.l.b16 %v684
      %v812 = vpack.c.b16 %v811, %v810
      %813 = vrot.lane.b32.xlu0 %v812, 96
      %v814 = vpop.permute.xlu0 %813
      %v817 = vsel %vm317, %v807, 0
      %819 = vmatprep.subr.bf16.mxu0 0
      %820 = vmatpush1.bf16.msra.mxu0 %v814
      %821 = vmatprep.subr.bf16.mxu0 0
      %822 = vmatpush1.bf16.msra.mxu0 0
      %823 = vmatprep.subr.bf16.mxu0 0
      %824 = vmatpush1.bf16.msra.mxu0 0
      %825 = vmatprep.subr.bf16.mxu0 0
      %826 = vmatpush1.bf16.msra.mxu0 0
      %827 = vmatprep.subr.bf16.mxu0 0
      %828 = vmatpush1.bf16.msra.mxu0 0
      %829 = vmatprep.subr.bf16.mxu0 0
      %830 = vmatpush1.bf16.msra.mxu0 0
      %831 = vmatprep.subr.bf16.mxu0 0
      %832 = vmatpush1.bf16.msra.mxu0 0
      %833 = vmatprep.subr.bf16.mxu0 0
      %834 = vmatpush1.bf16.msra.mxu0 0
      %835 = vmatprep.subr.bf16.mxu0 0
      %836 = vmatpush1.bf16.msra.mxu0 0
      %837 = vmatprep.subr.bf16.mxu0 0
      %838 = vmatpush1.bf16.msra.mxu0 0
      %839 = vmatprep.subr.bf16.mxu0 0
      %840 = vmatpush1.bf16.msra.mxu0 0
      %841 = vmatprep.subr.bf16.mxu0 0
      %842 = vmatpush1.bf16.msra.mxu0 0
      %843 = vmatprep.subr.bf16.mxu0 0
      %844 = vmatpush1.bf16.msra.mxu0 0
      %845 = vmatprep.subr.bf16.mxu0 0
      %846 = vmatpush1.bf16.msra.mxu0 0
      %847 = vmatprep.subr.bf16.mxu0 0
      %848 = vmatpush1.bf16.msra.mxu0 0
      %849 = vmatprep.subr.bf16.mxu0 0
      %850 = vmatpush1.bf16.msra.mxu0 0
      %851 = vmatprep.mubr.bf16.mxu0 0
      %852 = vmatmul.mubr.bf16.gmra.mrb[0].mxu0 %v817
      %v853 = vpop.f32.mrb[0].mxu0
      %v854 = vadd.f32 0.0, %v853
      %v855 = vpop.f32.mrb[0].mxu0
      %v856 = vpop.f32.mrb[0].mxu0
      %v857 = vadd.f32 0.0, %v856
      %v858 = vpop.f32.mrb[0].mxu0
      %859 = vdwg.mxu0
      %862 = vrot.lane.b32.xlu0 %v854, 32
      %v863 = vpop.permute.xlu0 %862
      %864 = vrot.lane.b32.xlu0 %v857, 32
      %v865 = vpop.permute.xlu0 %864
      %v868 = vadd.f32 %v805, %v863
      %v869 = vadd.f32 %v806, %v865
      %vm870 = vcmask 392448
      %871 = vst.msk [vmem:[#allocation4] sm:$0xff] %vm870, %v868
      %872 = vst.msk [vmem:[#allocation4 + $0x8] sm:$0xff] %vm870, %v869
      %873 = vst.msk [vmem:[#allocation2] sm:$0xff] %vm790, %v754
      %874 = vst.msk [vmem:[#allocation2 + $0x8] sm:$0xff] %vm790, %v755
      %v875 = vld [vmem:[%s257] sm:$0xf]
      %v876 = vld [vmem:[%s257 + $0x4] sm:$0xf]
      %v877 = vld [vmem:[%s267] sm:$0xf]
      %v878 = vld [vmem:[%s267 + $0x4] sm:$0xf]
      %v879 = vld [vmem:[%s277] sm:$0xf]
      %v880 = vld [vmem:[%s277 + $0x4] sm:$0xf]
      %v883 = vunpack.c.l.b16 %v875
      %v884 = vunpack.c.l.b16 %v876
      %v885 = vpack.c.b16 %v884, %v883
      %886 = vrot.lane.b32.xlu0 %v885, 80
      %v887 = vpop.permute.xlu0 %886
      %v890 = vunpack.c.l.b16 %v877
      %v891 = vunpack.c.l.b16 %v878
      %v892 = vpack.c.b16 %v891, %v890
      %893 = vrot.lane.b32.xlu0 %v892, 80
      %v894 = vpop.permute.xlu0 %893
      %v896 = vsel %vm317, %v887, 0
      %v899 = vsel %vm317, %v894, 0
      %901 = vmatprep.subr.bf16.mxu0 0
      %902 = vmatpush1.bf16.xpose.msra.mxu0 %v899
      %903 = vmatprep.subr.bf16.mxu0 0
      %904 = vmatpush1.bf16.xpose.msra.mxu0 0
      %905 = vmatprep.subr.bf16.mxu0 0
      %906 = vmatpush1.bf16.xpose.msra.mxu0 0
      %907 = vmatprep.subr.bf16.mxu0 0
      %908 = vmatpush1.bf16.xpose.msra.mxu0 0
      %909 = vmatprep.subr.bf16.mxu0 0
      %910 = vmatpush1.bf16.xpose.msra.mxu0 0
      %911 = vmatprep.subr.bf16.mxu0 0
      %912 = vmatpush1.bf16.xpose.msra.mxu0 0
      %913 = vmatprep.subr.bf16.mxu0 0
      %914 = vmatpush1.bf16.xpose.msra.mxu0 0
      %915 = vmatprep.subr.bf16.mxu0 0
      %916 = vmatpush1.bf16.xpose.msra.mxu0 0
      %917 = vmatprep.subr.bf16.mxu0 0
      %918 = vmatpush1.bf16.xpose.msra.mxu0 0
      %919 = vmatprep.subr.bf16.mxu0 0
      %920 = vmatpush1.bf16.xpose.msra.mxu0 0
      %921 = vmatprep.subr.bf16.mxu0 0
      %922 = vmatpush1.bf16.xpose.msra.mxu0 0
      %923 = vmatprep.subr.bf16.mxu0 0
      %924 = vmatpush1.bf16.xpose.msra.mxu0 0
      %925 = vmatprep.subr.bf16.mxu0 0
      %926 = vmatpush1.bf16.xpose.msra.mxu0 0
      %927 = vmatprep.subr.bf16.mxu0 0
      %928 = vmatpush1.bf16.xpose.msra.mxu0 0
      %929 = vmatprep.subr.bf16.mxu0 0
      %930 = vmatpush1.bf16.xpose.msra.mxu0 0
      %931 = vmatprep.subr.bf16.mxu0 0
      %932 = vmatpush1.bf16.xpose.msra.mxu0 0
      %933 = vmatprep.mubr.bf16.mxu0 0
      %934 = vmatmul.mubr.bf16.gmra.mrb[0].mxu0 %v896
      %v935 = vpop.f32.mrb[0].mxu0
      %v936 = vadd.f32 0.0, %v935
      %v937 = vpop.f32.mrb[0].mxu0
      %v938 = vpop.f32.mrb[0].mxu0
      %v939 = vadd.f32 0.0, %v938
      %v940 = vpop.f32.mrb[0].mxu0
      %941 = vdwg.mxu0
      %v942 = vld [vmem:[#allocation2] sm:$0xff]
      %v943 = vld [vmem:[#allocation2 + $0x8] sm:$0xff]
      %v944 = vsel %vm317, %v936, -inf
      %945 = vmax.xlane.f32.xlu0 %v944
      %v946 = vpop.xlane.xlu0 %945
      %v947 = vsel %vm317, %v939, -inf
      %948 = vmax.xlane.f32.xlu0 %v947
      %v949 = vpop.xlane.xlu0 %948
      %v950 = vmax.f32 %v942, %v946
      %v951 = vmax.f32 %v943, %v949
      %v952 = vsub.f32 %v942, %v950
      %v953 = vsub.f32 %v943, %v951
      %v954 = vmul.f32 %v952, 1.442695
      %v955 = vpow.pop %v954
      %v956 = vmul.f32 %v953, 1.442695
      %v957 = vpow.pop %v956
      %959 = vset.pattern.permute.xlu0 3
      %960 = vperm.xlu0 %959, %v950
      %v961 = vpop.permute.xlu0 %960
      %964 = vset.pattern.permute.xlu0 3
      %965 = vperm.xlu0 %964, %v951
      %v966 = vpop.permute.xlu0 %965
      %v968 = vsub.f32 %v936, %v961
      %v969 = vsub.f32 %v939, %v966
      %v970 = vmul.f32 %v968, 1.442695
      %v971 = vpow.pop %v970
      %v972 = vmul.f32 %v969, 1.442695
      %v973 = vpow.pop %v972
      %v974 = vld [vmem:[#allocation3] sm:$0xff]
      %v975 = vld [vmem:[#allocation3 + $0x8] sm:$0xff]
      %v976 = vmul.f32 %v955, %v974
      %v977 = vmul.f32 %v957, %v975
      %v978 = vsel %vm317, %v971, 0.0
      %979 = vadd.xlane.f32.xlu0 %v978
      %v980 = vpop.xlane.xlu0 %979
      %v981 = vsel %vm317, %v973, 0.0
      %982 = vadd.xlane.f32.xlu0 %v981
      %v983 = vpop.xlane.xlu0 %982
      %v984 = vadd.f32 %v976, %v980
      %v985 = vadd.f32 %v977, %v983
      %vm986 = vcmask 31768
      %987 = vst.msk [vmem:[#allocation3] sm:$0xff] %vm986, %v984
      %988 = vst.msk [vmem:[#allocation3 + $0x8] sm:$0xff] %vm986, %v985
      %v989 = vld [vmem:[#allocation4] sm:$0xff]
      %v990 = vld [vmem:[#allocation4 + $0x8] sm:$0xff]
      %992 = vset.pattern.permute.xlu0 3
      %993 = vperm.xlu0 %992, %v955
      %v994 = vpop.permute.xlu0 %993
      %997 = vset.pattern.permute.xlu0 3
      %998 = vperm.xlu0 %997, %v957
      %v999 = vpop.permute.xlu0 %998
      %v1001 = vmul.f32 %v994, %v989
      %v1002 = vmul.f32 %v999, %v990
      %v1003 = vpack.c.bf16 %v973, %v971
      %v1006 = vunpack.c.l.b16 %v879
      %v1007 = vunpack.c.l.b16 %v880
      %v1008 = vpack.c.b16 %v1007, %v1006
      %1009 = vrot.lane.b32.xlu0 %v1008, 80
      %v1010 = vpop.permute.xlu0 %1009
      %v1013 = vsel %vm317, %v1003, 0
      %1015 = vmatprep.subr.bf16.mxu0 0
      %1016 = vmatpush1.bf16.msra.mxu0 %v1010
      %1017 = vmatprep.subr.bf16.mxu0 0
      %1018 = vmatpush1.bf16.msra.mxu0 0
      %1019 = vmatprep.subr.bf16.mxu0 0
      %1020 = vmatpush1.bf16.msra.mxu0 0
      %1021 = vmatprep.subr.bf16.mxu0 0
      %1022 = vmatpush1.bf16.msra.mxu0 0
      %1023 = vmatprep.subr.bf16.mxu0 0
      %1024 = vmatpush1.bf16.msra.mxu0 0
      %1025 = vmatprep.subr.bf16.mxu0 0
      %1026 = vmatpush1.bf16.msra.mxu0 0
      %1027 = vmatprep.subr.bf16.mxu0 0
      %1028 = vmatpush1.bf16.msra.mxu0 0
      %1029 = vmatprep.subr.bf16.mxu0 0
      %1030 = vmatpush1.bf16.msra.mxu0 0
      %1031 = vmatprep.subr.bf16.mxu0 0
      %1032 = vmatpush1.bf16.msra.mxu0 0
      %1033 = vmatprep.subr.bf16.mxu0 0
      %1034 = vmatpush1.bf16.msra.mxu0 0
      %1035 = vmatprep.subr.bf16.mxu0 0
      %1036 = vmatpush1.bf16.msra.mxu0 0
      %1037 = vmatprep.subr.bf16.mxu0 0
      %1038 = vmatpush1.bf16.msra.mxu0 0
      %1039 = vmatprep.subr.bf16.mxu0 0
      %1040 = vmatpush1.bf16.msra.mxu0 0
      %1041 = vmatprep.subr.bf16.mxu0 0
      %1042 = vmatpush1.bf16.msra.mxu0 0
      %1043 = vmatprep.subr.bf16.mxu0 0
      %1044 = vmatpush1.bf16.msra.mxu0 0
      %1045 = vmatprep.subr.bf16.mxu0 0
      %1046 = vmatpush1.bf16.msra.mxu0 0
      %1047 = vmatprep.mubr.bf16.mxu0 0
      %1048 = vmatmul.mubr.bf16.gmra.mrb[0].mxu0 %v1013
      %v1049 = vpop.f32.mrb[0].mxu0
      %v1050 = vadd.f32 0.0, %v1049
      %v1051 = vpop.f32.mrb[0].mxu0
      %v1052 = vpop.f32.mrb[0].mxu0
      %v1053 = vadd.f32 0.0, %v1052
      %v1054 = vpop.f32.mrb[0].mxu0
      %1055 = vdwg.mxu0
      %1058 = vrot.lane.b32.xlu0 %v1050, 48
      %v1059 = vpop.permute.xlu0 %1058
      %1060 = vrot.lane.b32.xlu0 %v1053, 48
      %v1061 = vpop.permute.xlu0 %1060
      %v1064 = vadd.f32 %v1001, %v1059
      %v1065 = vadd.f32 %v1002, %v1061
      %vm1066 = vcmask 523648
      %1067 = vst.msk [vmem:[#allocation4] sm:$0xff] %vm1066, %v1064
      %1068 = vst.msk [vmem:[#allocation4 + $0x8] sm:$0xff] %vm1066, %v1065
      %1069 = vst.msk [vmem:[#allocation2] sm:$0xff] %vm986, %v950
      %1070 = vst.msk [vmem:[#allocation2 + $0x8] sm:$0xff] %vm986, %v951
      %v1071 = vld [vmem:[%s257] sm:$0xf]
      %v1072 = vld [vmem:[%s257 + $0x4] sm:$0xf]
      %v1073 = vld [vmem:[%s267] sm:$0xf]
      %v1074 = vld [vmem:[%s267 + $0x4] sm:$0xf]
      %v1075 = vld [vmem:[%s277] sm:$0xf]
      %v1076 = vld [vmem:[%s277 + $0x4] sm:$0xf]
      %v1079 = vunpack.c.l.b16 %v1071
      %v1080 = vunpack.c.l.b16 %v1072
      %v1081 = vpack.c.b16 %v1080, %v1079
      %1082 = vrot.lane.b32.xlu0 %v1081, 64
      %v1083 = vpop.permute.xlu0 %1082
      %v1086 = vunpack.c.l.b16 %v1073
      %v1087 = vunpack.c.l.b16 %v1074
      %v1088 = vpack.c.b16 %v1087, %v1086
      %1089 = vrot.lane.b32.xlu0 %v1088, 64
      %v1090 = vpop.permute.xlu0 %1089
      %v1092 = vsel %vm317, %v1083, 0
      %v1095 = vsel %vm317, %v1090, 0
      %1097 = vmatprep.subr.bf16.mxu0 0
      %1098 = vmatpush1.bf16.xpose.msra.mxu0 %v1095
      %1099 = vmatprep.subr.bf16.mxu0 0
      %1100 = vmatpush1.bf16.xpose.msra.mxu0 0
      %1101 = vmatprep.subr.bf16.mxu0 0
      %1102 = vmatpush1.bf16.xpose.msra.mxu0 0
      %1103 = vmatprep.subr.bf16.mxu0 0
      %1104 = vmatpush1.bf16.xpose.msra.mxu0 0
      %1105 = vmatprep.subr.bf16.mxu0 0
      %1106 = vmatpush1.bf16.xpose.msra.mxu0 0
      %1107 = vmatprep.subr.bf16.mxu0 0
      %1108 = vmatpush1.bf16.xpose.msra.mxu0 0
      %1109 = vmatprep.subr.bf16.mxu0 0
      %1110 = vmatpush1.bf16.xpose.msra.mxu0 0
      %1111 = vmatprep.subr.bf16.mxu0 0
      %1112 = vmatpush1.bf16.xpose.msra.mxu0 0
      %1113 = vmatprep.subr.bf16.mxu0 0
      %1114 = vmatpush1.bf16.xpose.msra.mxu0 0
      %1115 = vmatprep.subr.bf16.mxu0 0
      %1116 = vmatpush1.bf16.xpose.msra.mxu0 0
      %1117 = vmatprep.subr.bf16.mxu0 0
      %1118 = vmatpush1.bf16.xpose.msra.mxu0 0
      %1119 = vmatprep.subr.bf16.mxu0 0
      %1120 = vmatpush1.bf16.xpose.msra.mxu0 0
      %1121 = vmatprep.subr.bf16.mxu0 0
      %1122 = vmatpush1.bf16.xpose.msra.mxu0 0
      %1123 = vmatprep.subr.bf16.mxu0 0
      %1124 = vmatpush1.bf16.xpose.msra.mxu0 0
      %1125 = vmatprep.subr.bf16.mxu0 0
      %1126 = vmatpush1.bf16.xpose.msra.mxu0 0
      %1127 = vmatprep.subr.bf16.mxu0 0
      %1128 = vmatpush1.bf16.xpose.msra.mxu0 0
      %1129 = vmatprep.mubr.bf16.mxu0 0
      %1130 = vmatmul.mubr.bf16.gmra.mrb[0].mxu0 %v1092
      %v1131 = vpop.f32.mrb[0].mxu0
      %v1132 = vadd.f32 0.0, %v1131
      %v1133 = vpop.f32.mrb[0].mxu0
      %v1134 = vpop.f32.mrb[0].mxu0
      %v1135 = vadd.f32 0.0, %v1134
      %v1136 = vpop.f32.mrb[0].mxu0
      %1137 = vdwg.mxu0
      %v1138 = vld [vmem:[#allocation2] sm:$0xff]
      %v1139 = vld [vmem:[#allocation2 + $0x8] sm:$0xff]
      %v1140 = vsel %vm317, %v1132, -inf
      %1141 = vmax.xlane.f32.xlu0 %v1140
      %v1142 = vpop.xlane.xlu0 %1141
      %v1143 = vsel %vm317, %v1135, -inf
      %1144 = vmax.xlane.f32.xlu0 %v1143
      %v1145 = vpop.xlane.xlu0 %1144
      %v1146 = vmax.f32 %v1138, %v1142
      %v1147 = vmax.f32 %v1139, %v1145
      %v1148 = vsub.f32 %v1138, %v1146
      %v1149 = vsub.f32 %v1139, %v1147
      %v1150 = vmul.f32 %v1148, 1.442695
      %v1151 = vpow.pop %v1150
      %v1152 = vmul.f32 %v1149, 1.442695
      %v1153 = vpow.pop %v1152
      %1155 = vset.pattern.permute.xlu0 4
      %1156 = vperm.xlu0 %1155, %v1146
      %v1157 = vpop.permute.xlu0 %1156
      %1160 = vset.pattern.permute.xlu0 4
      %1161 = vperm.xlu0 %1160, %v1147
      %v1162 = vpop.permute.xlu0 %1161
      %v1164 = vsub.f32 %v1132, %v1157
      %v1165 = vsub.f32 %v1135, %v1162
      %v1166 = vmul.f32 %v1164, 1.442695
      %v1167 = vpow.pop %v1166
      %v1168 = vmul.f32 %v1165, 1.442695
      %v1169 = vpow.pop %v1168
      %v1170 = vld [vmem:[#allocation3] sm:$0xff]
      %v1171 = vld [vmem:[#allocation3 + $0x8] sm:$0xff]
      %v1172 = vmul.f32 %v1151, %v1170
      %v1173 = vmul.f32 %v1153, %v1171
      %v1174 = vsel %vm317, %v1167, 0.0
      %1175 = vadd.xlane.f32.xlu0 %v1174
      %v1176 = vpop.xlane.xlu0 %1175
      %v1177 = vsel %vm317, %v1169, 0.0
      %1178 = vadd.xlane.f32.xlu0 %v1177
      %v1179 = vpop.xlane.xlu0 %1178
      %v1180 = vadd.f32 %v1172, %v1176
      %v1181 = vadd.f32 %v1173, %v1179
      %vm1182 = vcmask 39968
      %1183 = vst.msk [vmem:[#allocation3] sm:$0xff] %vm1182, %v1180
      %1184 = vst.msk [vmem:[#allocation3 + $0x8] sm:$0xff] %vm1182, %v1181
      %v1185 = vld [vmem:[#allocation4] sm:$0xff]
      %v1186 = vld [vmem:[#allocation4 + $0x8] sm:$0xff]
      %1188 = vset.pattern.permute.xlu0 4
      %1189 = vperm.xlu0 %1188, %v1151
      %v1190 = vpop.permute.xlu0 %1189
      %1193 = vset.pattern.permute.xlu0 4
      %1194 = vperm.xlu0 %1193, %v1153
      %v1195 = vpop.permute.xlu0 %1194
      %v1197 = vmul.f32 %v1190, %v1185
      %v1198 = vmul.f32 %v1195, %v1186
      %v1199 = vpack.c.bf16 %v1169, %v1167
      %v1202 = vunpack.c.l.b16 %v1075
      %v1203 = vunpack.c.l.b16 %v1076
      %v1204 = vpack.c.b16 %v1203, %v1202
      %1205 = vrot.lane.b32.xlu0 %v1204, 64
      %v1206 = vpop.permute.xlu0 %1205
      %v1209 = vsel %vm317, %v1199, 0
      %1211 = vmatprep.subr.bf16.mxu0 0
      %1212 = vmatpush1.bf16.msra.mxu0 %v1206
      %1213 = vmatprep.subr.bf16.mxu0 0
      %1214 = vmatpush1.bf16.msra.mxu0 0
      %1215 = vmatprep.subr.bf16.mxu0 0
      %1216 = vmatpush1.bf16.msra.mxu0 0
      %1217 = vmatprep.subr.bf16.mxu0 0
      %1218 = vmatpush1.bf16.msra.mxu0 0
      %1219 = vmatprep.subr.bf16.mxu0 0
      %1220 = vmatpush1.bf16.msra.mxu0 0
      %1221 = vmatprep.subr.bf16.mxu0 0
      %1222 = vmatpush1.bf16.msra.mxu0 0
      %1223 = vmatprep.subr.bf16.mxu0 0
      %1224 = vmatpush1.bf16.msra.mxu0 0
      %1225 = vmatprep.subr.bf16.mxu0 0
      %1226 = vmatpush1.bf16.msra.mxu0 0
      %1227 = vmatprep.subr.bf16.mxu0 0
      %1228 = vmatpush1.bf16.msra.mxu0 0
      %1229 = vmatprep.subr.bf16.mxu0 0
      %1230 = vmatpush1.bf16.msra.mxu0 0
      %1231 = vmatprep.subr.bf16.mxu0 0
      %1232 = vmatpush1.bf16.msra.mxu0 0
      %1233 = vmatprep.subr.bf16.mxu0 0
      %1234 = vmatpush1.bf16.msra.mxu0 0
      %1235 = vmatprep.subr.bf16.mxu0 0
      %1236 = vmatpush1.bf16.msra.mxu0 0
      %1237 = vmatprep.subr.bf16.mxu0 0
      %1238 = vmatpush1.bf16.msra.mxu0 0
      %1239 = vmatprep.subr.bf16.mxu0 0
      %1240 = vmatpush1.bf16.msra.mxu0 0
      %1241 = vmatprep.subr.bf16.mxu0 0
      %1242 = vmatpush1.bf16.msra.mxu0 0
      %1243 = vmatprep.mubr.bf16.mxu0 0
      %1244 = vmatmul.mubr.bf16.gmra.mrb[0].mxu0 %v1209
      %v1245 = vpop.f32.mrb[0].mxu0
      %v1246 = vadd.f32 0.0, %v1245
      %v1247 = vpop.f32.mrb[0].mxu0
      %v1248 = vpop.f32.mrb[0].mxu0
      %v1249 = vadd.f32 0.0, %v1248
      %v1250 = vpop.f32.mrb[0].mxu0
      %1251 = vdwg.mxu0
      %1254 = vrot.lane.b32.xlu0 %v1246, 64
      %v1255 = vpop.permute.xlu0 %1254
      %1256 = vrot.lane.b32.xlu0 %v1249, 64
      %v1257 = vpop.permute.xlu0 %1256
      %v1260 = vadd.f32 %v1197, %v1255
      %v1261 = vadd.f32 %v1198, %v1257
      %vm1262 = vcmask 654848
      %1263 = vst.msk [vmem:[#allocation4] sm:$0xff] %vm1262, %v1260
      %1264 = vst.msk [vmem:[#allocation4 + $0x8] sm:$0xff] %vm1262, %v1261
      %1265 = vst.msk [vmem:[#allocation2] sm:$0xff] %vm1182, %v1146
      %1266 = vst.msk [vmem:[#allocation2 + $0x8] sm:$0xff] %vm1182, %v1147
      %v1267 = vld [vmem:[%s257] sm:$0xf]
      %v1268 = vld [vmem:[%s257 + $0x4] sm:$0xf]
      %v1269 = vld [vmem:[%s267] sm:$0xf]
      %v1270 = vld [vmem:[%s267 + $0x4] sm:$0xf]
      %v1271 = vld [vmem:[%s277] sm:$0xf]
      %v1272 = vld [vmem:[%s277 + $0x4] sm:$0xf]
      %v1275 = vunpack.c.l.b16 %v1267
      %v1276 = vunpack.c.l.b16 %v1268
      %v1277 = vpack.c.b16 %v1276, %v1275
      %1278 = vrot.lane.b32.xlu0 %v1277, 48
      %v1279 = vpop.permute.xlu0 %1278
      %v1282 = vunpack.c.l.b16 %v1269
      %v1283 = vunpack.c.l.b16 %v1270
      %v1284 = vpack.c.b16 %v1283, %v1282
      %1285 = vrot.lane.b32.xlu0 %v1284, 48
      %v1286 = vpop.permute.xlu0 %1285
      %v1288 = vsel %vm317, %v1279, 0
      %v1291 = vsel %vm317, %v1286, 0
      %1293 = vmatprep.subr.bf16.mxu0 0
      %1294 = vmatpush1.bf16.xpose.msra.mxu0 %v1291
      %1295 = vmatprep.subr.bf16.mxu0 0
      %1296 = vmatpush1.bf16.xpose.msra.mxu0 0
      %1297 = vmatprep.subr.bf16.mxu0 0
      %1298 = vmatpush1.bf16.xpose.msra.mxu0 0
      %1299 = vmatprep.subr.bf16.mxu0 0
      %1300 = vmatpush1.bf16.xpose.msra.mxu0 0
      %1301 = vmatprep.subr.bf16.mxu0 0
      %1302 = vmatpush1.bf16.xpose.msra.mxu0 0
      %1303 = vmatprep.subr.bf16.mxu0 0
      %1304 = vmatpush1.bf16.xpose.msra.mxu0 0
      %1305 = vmatprep.subr.bf16.mxu0 0
      %1306 = vmatpush1.bf16.xpose.msra.mxu0 0
      %1307 = vmatprep.subr.bf16.mxu0 0
      %1308 = vmatpush1.bf16.xpose.msra.mxu0 0
      %1309 = vmatprep.subr.bf16.mxu0 0
      %1310 = vmatpush1.bf16.xpose.msra.mxu0 0
      %1311 = vmatprep.subr.bf16.mxu0 0
      %1312 = vmatpush1.bf16.xpose.msra.mxu0 0
      %1313 = vmatprep.subr.bf16.mxu0 0
      %1314 = vmatpush1.bf16.xpose.msra.mxu0 0
      %1315 = vmatprep.subr.bf16.mxu0 0
      %1316 = vmatpush1.bf16.xpose.msra.mxu0 0
      %1317 = vmatprep.subr.bf16.mxu0 0
      %1318 = vmatpush1.bf16.xpose.msra.mxu0 0
      %1319 = vmatprep.subr.bf16.mxu0 0
      %1320 = vmatpush1.bf16.xpose.msra.mxu0 0
      %1321 = vmatprep.subr.bf16.mxu0 0
      %1322 = vmatpush1.bf16.xpose.msra.mxu0 0
      %1323 = vmatprep.subr.bf16.mxu0 0
      %1324 = vmatpush1.bf16.xpose.msra.mxu0 0
      %1325 = vmatprep.mubr.bf16.mxu0 0
      %1326 = vmatmul.mubr.bf16.gmra.mrb[0].mxu0 %v1288
      %v1327 = vpop.f32.mrb[0].mxu0
      %v1328 = vadd.f32 0.0, %v1327
      %v1329 = vpop.f32.mrb[0].mxu0
      %v1330 = vpop.f32.mrb[0].mxu0
      %v1331 = vadd.f32 0.0, %v1330
      %v1332 = vpop.f32.mrb[0].mxu0
      %1333 = vdwg.mxu0
      %v1334 = vld [vmem:[#allocation2] sm:$0xff]
      %v1335 = vld [vmem:[#allocation2 + $0x8] sm:$0xff]
      %v1336 = vsel %vm317, %v1328, -inf
      %1337 = vmax.xlane.f32.xlu0 %v1336
      %v1338 = vpop.xlane.xlu0 %1337
      %v1339 = vsel %vm317, %v1331, -inf
      %1340 = vmax.xlane.f32.xlu0 %v1339
      %v1341 = vpop.xlane.xlu0 %1340
      %v1342 = vmax.f32 %v1334, %v1338
      %v1343 = vmax.f32 %v1335, %v1341
      %v1344 = vsub.f32 %v1334, %v1342
      %v1345 = vsub.f32 %v1335, %v1343
      %v1346 = vmul.f32 %v1344, 1.442695
      %v1347 = vpow.pop %v1346
      %v1348 = vmul.f32 %v1345, 1.442695
      %v1349 = vpow.pop %v1348
      %1351 = vset.pattern.permute.xlu0 5
      %1352 = vperm.xlu0 %1351, %v1342
      %v1353 = vpop.permute.xlu0 %1352
      %1356 = vset.pattern.permute.xlu0 5
      %1357 = vperm.xlu0 %1356, %v1343
      %v1358 = vpop.permute.xlu0 %1357
      %v1360 = vsub.f32 %v1328, %v1353
      %v1361 = vsub.f32 %v1331, %v1358
      %v1362 = vmul.f32 %v1360, 1.442695
      %v1363 = vpow.pop %v1362
      %v1364 = vmul.f32 %v1361, 1.442695
      %v1365 = vpow.pop %v1364
      %v1366 = vld [vmem:[#allocation3] sm:$0xff]
      %v1367 = vld [vmem:[#allocation3 + $0x8] sm:$0xff]
      %v1368 = vmul.f32 %v1347, %v1366
      %v1369 = vmul.f32 %v1349, %v1367
      %v1370 = vsel %vm317, %v1363, 0.0
      %1371 = vadd.xlane.f32.xlu0 %v1370
      %v1372 = vpop.xlane.xlu0 %1371
      %v1373 = vsel %vm317, %v1365, 0.0
      %1374 = vadd.xlane.f32.xlu0 %v1373
      %v1375 = vpop.xlane.xlu0 %1374
      %v1376 = vadd.f32 %v1368, %v1372
      %v1377 = vadd.f32 %v1369, %v1375
      %vm1378 = vcmask 48168
      %1379 = vst.msk [vmem:[#allocation3] sm:$0xff] %vm1378, %v1376
      %1380 = vst.msk [vmem:[#allocation3 + $0x8] sm:$0xff] %vm1378, %v1377
      %v1381 = vld [vmem:[#allocation4] sm:$0xff]
      %v1382 = vld [vmem:[#allocation4 + $0x8] sm:$0xff]
      %1384 = vset.pattern.permute.xlu0 5
      %1385 = vperm.xlu0 %1384, %v1347
      %v1386 = vpop.permute.xlu0 %1385
      %1389 = vset.pattern.permute.xlu0 5
      %1390 = vperm.xlu0 %1389, %v1349
      %v1391 = vpop.permute.xlu0 %1390
      %v1393 = vmul.f32 %v1386, %v1381
      %v1394 = vmul.f32 %v1391, %v1382
      %v1395 = vpack.c.bf16 %v1365, %v1363
      %v1398 = vunpack.c.l.b16 %v1271
      %v1399 = vunpack.c.l.b16 %v1272
      %v1400 = vpack.c.b16 %v1399, %v1398
      %1401 = vrot.lane.b32.xlu0 %v1400, 48
      %v1402 = vpop.permute.xlu0 %1401
      %v1405 = vsel %vm317, %v1395, 0
      %1407 = vmatprep.subr.bf16.mxu0 0
      %1408 = vmatpush1.bf16.msra.mxu0 %v1402
      %1409 = vmatprep.subr.bf16.mxu0 0
      %1410 = vmatpush1.bf16.msra.mxu0 0
      %1411 = vmatprep.subr.bf16.mxu0 0
      %1412 = vmatpush1.bf16.msra.mxu0 0
      %1413 = vmatprep.subr.bf16.mxu0 0
      %1414 = vmatpush1.bf16.msra.mxu0 0
      %1415 = vmatprep.subr.bf16.mxu0 0
      %1416 = vmatpush1.bf16.msra.mxu0 0
      %1417 = vmatprep.subr.bf16.mxu0 0
      %1418 = vmatpush1.bf16.msra.mxu0 0
      %1419 = vmatprep.subr.bf16.mxu0 0
      %1420 = vmatpush1.bf16.msra.mxu0 0
      %1421 = vmatprep.subr.bf16.mxu0 0
      %1422 = vmatpush1.bf16.msra.mxu0 0
      %1423 = vmatprep.subr.bf16.mxu0 0
      %1424 = vmatpush1.bf16.msra.mxu0 0
      %1425 = vmatprep.subr.bf16.mxu0 0
      %1426 = vmatpush1.bf16.msra.mxu0 0
      %1427 = vmatprep.subr.bf16.mxu0 0
      %1428 = vmatpush1.bf16.msra.mxu0 0
      %1429 = vmatprep.subr.bf16.mxu0 0
      %1430 = vmatpush1.bf16.msra.mxu0 0
      %1431 = vmatprep.subr.bf16.mxu0 0
      %1432 = vmatpush1.bf16.msra.mxu0 0
      %1433 = vmatprep.subr.bf16.mxu0 0
      %1434 = vmatpush1.bf16.msra.mxu0 0
      %1435 = vmatprep.subr.bf16.mxu0 0
      %1436 = vmatpush1.bf16.msra.mxu0 0
      %1437 = vmatprep.subr.bf16.mxu0 0
      %1438 = vmatpush1.bf16.msra.mxu0 0
      %1439 = vmatprep.mubr.bf16.mxu0 0
      %1440 = vmatmul.mubr.bf16.gmra.mrb[0].mxu0 %v1405
      %v1441 = vpop.f32.mrb[0].mxu0
      %v1442 = vadd.f32 0.0, %v1441
      %v1443 = vpop.f32.mrb[0].mxu0
      %v1444 = vpop.f32.mrb[0].mxu0
      %v1445 = vadd.f32 0.0, %v1444
      %v1446 = vpop.f32.mrb[0].mxu0
      %1447 = vdwg.mxu0
      %1450 = vrot.lane.b32.xlu0 %v1442, 80
      %v1451 = vpop.permute.xlu0 %1450
      %1452 = vrot.lane.b32.xlu0 %v1445, 80
      %v1453 = vpop.permute.xlu0 %1452
      %v1456 = vadd.f32 %v1393, %v1451
      %v1457 = vadd.f32 %v1394, %v1453
      %vm1458 = vcmask 786048
      %1459 = vst.msk [vmem:[#allocation4] sm:$0xff] %vm1458, %v1456
      %1460 = vst.msk [vmem:[#allocation4 + $0x8] sm:$0xff] %vm1458, %v1457
      %1461 = vst.msk [vmem:[#allocation2] sm:$0xff] %vm1378, %v1342
      %1462 = vst.msk [vmem:[#allocation2 + $0x8] sm:$0xff] %vm1378, %v1343
      %v1463 = vld [vmem:[%s257] sm:$0xf]
      %v1464 = vld [vmem:[%s257 + $0x4] sm:$0xf]
      %v1465 = vld [vmem:[%s267] sm:$0xf]
      %v1466 = vld [vmem:[%s267 + $0x4] sm:$0xf]
      %v1467 = vld [vmem:[%s277] sm:$0xf]
      %v1468 = vld [vmem:[%s277 + $0x4] sm:$0xf]
      %v1471 = vunpack.c.l.b16 %v1463
      %v1472 = vunpack.c.l.b16 %v1464
      %v1473 = vpack.c.b16 %v1472, %v1471
      %1474 = vrot.lane.b32.xlu0 %v1473, 32
      %v1475 = vpop.permute.xlu0 %1474
      %v1478 = vunpack.c.l.b16 %v1465
      %v1479 = vunpack.c.l.b16 %v1466
      %v1480 = vpack.c.b16 %v1479, %v1478
      %1481 = vrot.lane.b32.xlu0 %v1480, 32
      %v1482 = vpop.permute.xlu0 %1481
      %v1484 = vsel %vm317, %v1475, 0
      %v1487 = vsel %vm317, %v1482, 0
      %1489 = vmatprep.subr.bf16.mxu0 0
      %1490 = vmatpush1.bf16.xpose.msra.mxu0 %v1487
      %1491 = vmatprep.subr.bf16.mxu0 0
      %1492 = vmatpush1.bf16.xpose.msra.mxu0 0
      %1493 = vmatprep.subr.bf16.mxu0 0
      %1494 = vmatpush1.bf16.xpose.msra.mxu0 0
      %1495 = vmatprep.subr.bf16.mxu0 0
      %1496 = vmatpush1.bf16.xpose.msra.mxu0 0
      %1497 = vmatprep.subr.bf16.mxu0 0
      %1498 = vmatpush1.bf16.xpose.msra.mxu0 0
      %1499 = vmatprep.subr.bf16.mxu0 0
      %1500 = vmatpush1.bf16.xpose.msra.mxu0 0
      %1501 = vmatprep.subr.bf16.mxu0 0
      %1502 = vmatpush1.bf16.xpose.msra.mxu0 0
      %1503 = vmatprep.subr.bf16.mxu0 0
      %1504 = vmatpush1.bf16.xpose.msra.mxu0 0
      %1505 = vmatprep.subr.bf16.mxu0 0
      %1506 = vmatpush1.bf16.xpose.msra.mxu0 0
      %1507 = vmatprep.subr.bf16.mxu0 0
      %1508 = vmatpush1.bf16.xpose.msra.mxu0 0
      %1509 = vmatprep.subr.bf16.mxu0 0
      %1510 = vmatpush1.bf16.xpose.msra.mxu0 0
      %1511 = vmatprep.subr.bf16.mxu0 0
      %1512 = vmatpush1.bf16.xpose.msra.mxu0 0
      %1513 = vmatprep.subr.bf16.mxu0 0
      %1514 = vmatpush1.bf16.xpose.msra.mxu0 0
      %1515 = vmatprep.subr.bf16.mxu0 0
      %1516 = vmatpush1.bf16.xpose.msra.mxu0 0
      %1517 = vmatprep.subr.bf16.mxu0 0
      %1518 = vmatpush1.bf16.xpose.msra.mxu0 0
      %1519 = vmatprep.subr.bf16.mxu0 0
      %1520 = vmatpush1.bf16.xpose.msra.mxu0 0
      %1521 = vmatprep.mubr.bf16.mxu0 0
      %1522 = vmatmul.mubr.bf16.gmra.mrb[0].mxu0 %v1484
      %v1523 = vpop.f32.mrb[0].mxu0
      %v1524 = vadd.f32 0.0, %v1523
      %v1525 = vpop.f32.mrb[0].mxu0
      %v1526 = vpop.f32.mrb[0].mxu0
      %v1527 = vadd.f32 0.0, %v1526
      %v1528 = vpop.f32.mrb[0].mxu0
      %1529 = vdwg.mxu0
      %v1530 = vld [vmem:[#allocation2] sm:$0xff]
      %v1531 = vld [vmem:[#allocation2 + $0x8] sm:$0xff]
      %v1532 = vsel %vm317, %v1524, -inf
      %1533 = vmax.xlane.f32.xlu0 %v1532
      %v1534 = vpop.xlane.xlu0 %1533
      %v1535 = vsel %vm317, %v1527, -inf
      %1536 = vmax.xlane.f32.xlu0 %v1535
      %v1537 = vpop.xlane.xlu0 %1536
      %v1538 = vmax.f32 %v1530, %v1534
      %v1539 = vmax.f32 %v1531, %v1537
      %v1540 = vsub.f32 %v1530, %v1538
      %v1541 = vsub.f32 %v1531, %v1539
      %v1542 = vmul.f32 %v1540, 1.442695
      %v1543 = vpow.pop %v1542
      %v1544 = vmul.f32 %v1541, 1.442695
      %v1545 = vpow.pop %v1544
      %1547 = vset.pattern.permute.xlu0 6
      %1548 = vperm.xlu0 %1547, %v1538
      %v1549 = vpop.permute.xlu0 %1548
      %1552 = vset.pattern.permute.xlu0 6
      %1553 = vperm.xlu0 %1552, %v1539
      %v1554 = vpop.permute.xlu0 %1553
      %v1556 = vsub.f32 %v1524, %v1549
      %v1557 = vsub.f32 %v1527, %v1554
      %v1558 = vmul.f32 %v1556, 1.442695
      %v1559 = vpow.pop %v1558
      %v1560 = vmul.f32 %v1557, 1.442695
      %v1561 = vpow.pop %v1560
      %v1562 = vld [vmem:[#allocation3] sm:$0xff]
      %v1563 = vld [vmem:[#allocation3 + $0x8] sm:$0xff]
      %v1564 = vmul.f32 %v1543, %v1562
      %v1565 = vmul.f32 %v1545, %v1563
      %v1566 = vsel %vm317, %v1559, 0.0
      %1567 = vadd.xlane.f32.xlu0 %v1566
      %v1568 = vpop.xlane.xlu0 %1567
      %v1569 = vsel %vm317, %v1561, 0.0
      %1570 = vadd.xlane.f32.xlu0 %v1569
      %v1571 = vpop.xlane.xlu0 %1570
      %v1572 = vadd.f32 %v1564, %v1568
      %v1573 = vadd.f32 %v1565, %v1571
      %vm1574 = vcmask 56368
      %1575 = vst.msk [vmem:[#allocation3] sm:$0xff] %vm1574, %v1572
      %1576 = vst.msk [vmem:[#allocation3 + $0x8] sm:$0xff] %vm1574, %v1573
      %v1577 = vld [vmem:[#allocation4] sm:$0xff]
      %v1578 = vld [vmem:[#allocation4 + $0x8] sm:$0xff]
      %1580 = vset.pattern.permute.xlu0 6
      %1581 = vperm.xlu0 %1580, %v1543
      %v1582 = vpop.permute.xlu0 %1581
      %1585 = vset.pattern.permute.xlu0 6
      %1586 = vperm.xlu0 %1585, %v1545
      %v1587 = vpop.permute.xlu0 %1586
      %v1589 = vmul.f32 %v1582, %v1577
      %v1590 = vmul.f32 %v1587, %v1578
      %v1591 = vpack.c.bf16 %v1561, %v1559
      %v1594 = vunpack.c.l.b16 %v1467
      %v1595 = vunpack.c.l.b16 %v1468
      %v1596 = vpack.c.b16 %v1595, %v1594
      %1597 = vrot.lane.b32.xlu0 %v1596, 32
      %v1598 = vpop.permute.xlu0 %1597
      %v1601 = vsel %vm317, %v1591, 0
      %1603 = vmatprep.subr.bf16.mxu0 0
      %1604 = vmatpush1.bf16.msra.mxu0 %v1598
      %1605 = vmatprep.subr.bf16.mxu0 0
      %1606 = vmatpush1.bf16.msra.mxu0 0
      %1607 = vmatprep.subr.bf16.mxu0 0
      %1608 = vmatpush1.bf16.msra.mxu0 0
      %1609 = vmatprep.subr.bf16.mxu0 0
      %1610 = vmatpush1.bf16.msra.mxu0 0
      %1611 = vmatprep.subr.bf16.mxu0 0
      %1612 = vmatpush1.bf16.msra.mxu0 0
      %1613 = vmatprep.subr.bf16.mxu0 0
      %1614 = vmatpush1.bf16.msra.mxu0 0
      %1615 = vmatprep.subr.bf16.mxu0 0
      %1616 = vmatpush1.bf16.msra.mxu0 0
      %1617 = vmatprep.subr.bf16.mxu0 0
      %1618 = vmatpush1.bf16.msra.mxu0 0
      %1619 = vmatprep.subr.bf16.mxu0 0
      %1620 = vmatpush1.bf16.msra.mxu0 0
      %1621 = vmatprep.subr.bf16.mxu0 0
      %1622 = vmatpush1.bf16.msra.mxu0 0
      %1623 = vmatprep.subr.bf16.mxu0 0
      %1624 = vmatpush1.bf16.msra.mxu0 0
      %1625 = vmatprep.subr.bf16.mxu0 0
      %1626 = vmatpush1.bf16.msra.mxu0 0
      %1627 = vmatprep.subr.bf16.mxu0 0
      %1628 = vmatpush1.bf16.msra.mxu0 0
      %1629 = vmatprep.subr.bf16.mxu0 0
      %1630 = vmatpush1.bf16.msra.mxu0 0
      %1631 = vmatprep.subr.bf16.mxu0 0
      %1632 = vmatpush1.bf16.msra.mxu0 0
      %1633 = vmatprep.subr.bf16.mxu0 0
      %1634 = vmatpush1.bf16.msra.mxu0 0
      %1635 = vmatprep.mubr.bf16.mxu0 0
      %1636 = vmatmul.mubr.bf16.gmra.mrb[0].mxu0 %v1601
      %v1637 = vpop.f32.mrb[0].mxu0
      %v1638 = vadd.f32 0.0, %v1637
      %v1639 = vpop.f32.mrb[0].mxu0
      %v1640 = vpop.f32.mrb[0].mxu0
      %v1641 = vadd.f32 0.0, %v1640
      %v1642 = vpop.f32.mrb[0].mxu0
      %1643 = vdwg.mxu0
      %1646 = vrot.lane.b32.xlu0 %v1638, 96
      %v1647 = vpop.permute.xlu0 %1646
      %1648 = vrot.lane.b32.xlu0 %v1641, 96
      %v1649 = vpop.permute.xlu0 %1648
      %v1652 = vadd.f32 %v1589, %v1647
      %v1653 = vadd.f32 %v1590, %v1649
      %vm1654 = vcmask 917248
      %1655 = vst.msk [vmem:[#allocation4] sm:$0xff] %vm1654, %v1652
      %1656 = vst.msk [vmem:[#allocation4 + $0x8] sm:$0xff] %vm1654, %v1653
      %1657 = vst.msk [vmem:[#allocation2] sm:$0xff] %vm1574, %v1538
      %1658 = vst.msk [vmem:[#allocation2 + $0x8] sm:$0xff] %vm1574, %v1539
      %v1659 = vld [vmem:[%s257] sm:$0xf]
      %v1660 = vld [vmem:[%s257 + $0x4] sm:$0xf]
      %v1661 = vld [vmem:[%s267] sm:$0xf]
      %v1662 = vld [vmem:[%s267 + $0x4] sm:$0xf]
      %v1663 = vld [vmem:[%s277] sm:$0xf]
      %v1664 = vld [vmem:[%s277 + $0x4] sm:$0xf]
      %v1667 = vunpack.c.l.b16 %v1659
      %v1668 = vunpack.c.l.b16 %v1660
      %v1669 = vpack.c.b16 %v1668, %v1667
      %1670 = vrot.lane.b32.xlu0 %v1669, 16
      %v1671 = vpop.permute.xlu0 %1670
      %v1674 = vunpack.c.l.b16 %v1661
      %v1675 = vunpack.c.l.b16 %v1662
      %v1676 = vpack.c.b16 %v1675, %v1674
      %1677 = vrot.lane.b32.xlu0 %v1676, 16
      %v1678 = vpop.permute.xlu0 %1677
      %v1680 = vsel %vm317, %v1671, 0
      %v1683 = vsel %vm317, %v1678, 0
      %1685 = vmatprep.subr.bf16.mxu0 0
      %1686 = vmatpush1.bf16.xpose.msra.mxu0 %v1683
      %1687 = vmatprep.subr.bf16.mxu0 0
      %1688 = vmatpush1.bf16.xpose.msra.mxu0 0
      %1689 = vmatprep.subr.bf16.mxu0 0
      %1690 = vmatpush1.bf16.xpose.msra.mxu0 0
      %1691 = vmatprep.subr.bf16.mxu0 0
      %1692 = vmatpush1.bf16.xpose.msra.mxu0 0
      %1693 = vmatprep.subr.bf16.mxu0 0
      %1694 = vmatpush1.bf16.xpose.msra.mxu0 0
      %1695 = vmatprep.subr.bf16.mxu0 0
      %1696 = vmatpush1.bf16.xpose.msra.mxu0 0
      %1697 = vmatprep.subr.bf16.mxu0 0
      %1698 = vmatpush1.bf16.xpose.msra.mxu0 0
      %1699 = vmatprep.subr.bf16.mxu0 0
      %1700 = vmatpush1.bf16.xpose.msra.mxu0 0
      %1701 = vmatprep.subr.bf16.mxu0 0
      %1702 = vmatpush1.bf16.xpose.msra.mxu0 0
      %1703 = vmatprep.subr.bf16.mxu0 0
      %1704 = vmatpush1.bf16.xpose.msra.mxu0 0
      %1705 = vmatprep.subr.bf16.mxu0 0
      %1706 = vmatpush1.bf16.xpose.msra.mxu0 0
      %1707 = vmatprep.subr.bf16.mxu0 0
      %1708 = vmatpush1.bf16.xpose.msra.mxu0 0
      %1709 = vmatprep.subr.bf16.mxu0 0
      %1710 = vmatpush1.bf16.xpose.msra.mxu0 0
      %1711 = vmatprep.subr.bf16.mxu0 0
      %1712 = vmatpush1.bf16.xpose.msra.mxu0 0
      %1713 = vmatprep.subr.bf16.mxu0 0
      %1714 = vmatpush1.bf16.xpose.msra.mxu0 0
      %1715 = vmatprep.subr.bf16.mxu0 0
      %1716 = vmatpush1.bf16.xpose.msra.mxu0 0
      %1717 = vmatprep.mubr.bf16.mxu0 0
      %1718 = vmatmul.mubr.bf16.gmra.mrb[0].mxu0 %v1680
      %v1719 = vpop.f32.mrb[0].mxu0
      %v1720 = vadd.f32 0.0, %v1719
      %v1721 = vpop.f32.mrb[0].mxu0
      %v1722 = vpop.f32.mrb[0].mxu0
      %v1723 = vadd.f32 0.0, %v1722
      %v1724 = vpop.f32.mrb[0].mxu0
      %1725 = vdwg.mxu0
      %v1726 = vld [vmem:[#allocation2] sm:$0xff]
      %v1727 = vld [vmem:[#allocation2 + $0x8] sm:$0xff]
      %v1728 = vsel %vm317, %v1720, -inf
      %1729 = vmax.xlane.f32.xlu0 %v1728
      %v1730 = vpop.xlane.xlu0 %1729
      %v1731 = vsel %vm317, %v1723, -inf
      %1732 = vmax.xlane.f32.xlu0 %v1731
      %v1733 = vpop.xlane.xlu0 %1732
      %v1734 = vmax.f32 %v1726, %v1730
      %v1735 = vmax.f32 %v1727, %v1733
      %v1736 = vsub.f32 %v1726, %v1734
      %v1737 = vsub.f32 %v1727, %v1735
      %v1738 = vmul.f32 %v1736, 1.442695
      %v1739 = vpow.pop %v1738
      %v1740 = vmul.f32 %v1737, 1.442695
      %v1741 = vpow.pop %v1740
      %1743 = vset.pattern.permute.xlu0 7
      %1744 = vperm.xlu0 %1743, %v1734
      %v1745 = vpop.permute.xlu0 %1744
      %1748 = vset.pattern.permute.xlu0 7
      %1749 = vperm.xlu0 %1748, %v1735
      %v1750 = vpop.permute.xlu0 %1749
      %v1752 = vsub.f32 %v1720, %v1745
      %v1753 = vsub.f32 %v1723, %v1750
      %v1754 = vmul.f32 %v1752, 1.442695
      %v1755 = vpow.pop %v1754
      %v1756 = vmul.f32 %v1753, 1.442695
      %v1757 = vpow.pop %v1756
      %v1758 = vld [vmem:[#allocation3] sm:$0xff]
      %v1759 = vld [vmem:[#allocation3 + $0x8] sm:$0xff]
      %v1760 = vmul.f32 %v1739, %v1758
      %v1761 = vmul.f32 %v1741, %v1759
      %v1762 = vsel %vm317, %v1755, 0.0
      %1763 = vadd.xlane.f32.xlu0 %v1762
      %v1764 = vpop.xlane.xlu0 %1763
      %v1765 = vsel %vm317, %v1757, 0.0
      %1766 = vadd.xlane.f32.xlu0 %v1765
      %v1767 = vpop.xlane.xlu0 %1766
      %v1768 = vadd.f32 %v1760, %v1764
      %v1769 = vadd.f32 %v1761, %v1767
      %vm1770 = vcmask 64568
      %1771 = vst.msk [vmem:[#allocation3] sm:$0xff] %vm1770, %v1768
      %1772 = vst.msk [vmem:[#allocation3 + $0x8] sm:$0xff] %vm1770, %v1769
      %v1773 = vld [vmem:[#allocation4] sm:$0xff]
      %v1774 = vld [vmem:[#allocation4 + $0x8] sm:$0xff]
      %1776 = vset.pattern.permute.xlu0 7
      %1777 = vperm.xlu0 %1776, %v1739
      %v1778 = vpop.permute.xlu0 %1777
      %1781 = vset.pattern.permute.xlu0 7
      %1782 = vperm.xlu0 %1781, %v1741
      %v1783 = vpop.permute.xlu0 %1782
      %v1785 = vmul.f32 %v1778, %v1773
      %v1786 = vmul.f32 %v1783, %v1774
      %v1787 = vpack.c.bf16 %v1757, %v1755
      %v1790 = vunpack.c.l.b16 %v1663
      %v1791 = vunpack.c.l.b16 %v1664
      %v1792 = vpack.c.b16 %v1791, %v1790
      %1793 = vrot.lane.b32.xlu0 %v1792, 16
      %v1794 = vpop.permute.xlu0 %1793
      %v1797 = vsel %vm317, %v1787, 0
      %1799 = vmatprep.subr.bf16.mxu0 0
      %1800 = vmatpush1.bf16.msra.mxu0 %v1794
      %1801 = vmatprep.subr.bf16.mxu0 0
      %1802 = vmatpush1.bf16.msra.mxu0 0
      %1803 = vmatprep.subr.bf16.mxu0 0
      %1804 = vmatpush1.bf16.msra.mxu0 0
      %1805 = vmatprep.subr.bf16.mxu0 0
      %1806 = vmatpush1.bf16.msra.mxu0 0
      %1807 = vmatprep.subr.bf16.mxu0 0
      %1808 = vmatpush1.bf16.msra.mxu0 0
      %1809 = vmatprep.subr.bf16.mxu0 0
      %1810 = vmatpush1.bf16.msra.mxu0 0
      %1811 = vmatprep.subr.bf16.mxu0 0
      %1812 = vmatpush1.bf16.msra.mxu0 0
      %1813 = vmatprep.subr.bf16.mxu0 0
      %1814 = vmatpush1.bf16.msra.mxu0 0
      %1815 = vmatprep.subr.bf16.mxu0 0
      %1816 = vmatpush1.bf16.msra.mxu0 0
      %1817 = vmatprep.subr.bf16.mxu0 0
      %1818 = vmatpush1.bf16.msra.mxu0 0
      %1819 = vmatprep.subr.bf16.mxu0 0
      %1820 = vmatpush1.bf16.msra.mxu0 0
      %1821 = vmatprep.subr.bf16.mxu0 0
      %1822 = vmatpush1.bf16.msra.mxu0 0
      %1823 = vmatprep.subr.bf16.mxu0 0
      %1824 = vmatpush1.bf16.msra.mxu0 0
      %1825 = vmatprep.subr.bf16.mxu0 0
      %1826 = vmatpush1.bf16.msra.mxu0 0
      %1827 = vmatprep.subr.bf16.mxu0 0
      %1828 = vmatpush1.bf16.msra.mxu0 0
      %1829 = vmatprep.subr.bf16.mxu0 0
      %1830 = vmatpush1.bf16.msra.mxu0 0
      %1831 = vmatprep.mubr.bf16.mxu0 0
      %1832 = vmatmul.mubr.bf16.gmra.mrb[0].mxu0 %v1797
      %v1833 = vpop.f32.mrb[0].mxu0
      %v1834 = vadd.f32 0.0, %v1833
      %v1835 = vpop.f32.mrb[0].mxu0
      %v1836 = vpop.f32.mrb[0].mxu0
      %v1837 = vadd.f32 0.0, %v1836
      %v1838 = vpop.f32.mrb[0].mxu0
      %1839 = vdwg.mxu0
      %1842 = vrot.lane.b32.xlu0 %v1834, 112
      %v1843 = vpop.permute.xlu0 %1842
      %1844 = vrot.lane.b32.xlu0 %v1837, 112
      %v1845 = vpop.permute.xlu0 %1844
      %v1848 = vadd.f32 %v1785, %v1843
      %v1849 = vadd.f32 %v1786, %v1845
      %vm1850 = vcmask 1048448
      %1851 = vst.msk [vmem:[#allocation4] sm:$0xff] %vm1850, %v1848
      %1852 = vst.msk [vmem:[#allocation4 + $0x8] sm:$0xff] %vm1850, %v1849
      %1853 = vst.msk [vmem:[#allocation2] sm:$0xff] %vm1770, %v1734
      %1854 = vst.msk [vmem:[#allocation2 + $0x8] sm:$0xff] %vm1770, %v1735
      // Predicated region
      $region37: #{attention_forward.4} parent=31 // pred_check
        %p1855 = pneg %p290
      $region38: #{attention_forward.4} parent=31 // pred_check_branch
        %1857 = sbr.rel (%p1855) target = $region40
      $region39: #{attention_forward.4} parent=31 // pred_region
        %v1858 = vld [vmem:[#allocation3] sm:$0xff]
        %v1859 = vld [vmem:[#allocation3 + $0x8] sm:$0xff]
        %v1860 = vrcp.pop %v1858
        %v1861 = vrcp.pop %v1859
        %v1862 = vld [vmem:[#allocation4] sm:$0xff]
        %v1863 = vld [vmem:[#allocation4 + $0x8] sm:$0xff]
        %1865 = vset.pattern.permute.xlu0 0
        %1866 = vperm.xlu0 %1865, %v1860
        %v1867 = vpop.permute.xlu0 %1866
        %1870 = vset.pattern.permute.xlu0 0
        %1871 = vperm.xlu0 %1870, %v1861
        %v1872 = vpop.permute.xlu0 %1871
        %v1874 = vmul.f32 %v1862, %v1867
        %v1875 = vmul.f32 %v1863, %v1872
        %v1876 = vpack.c.bf16 %v1875, %v1874
        %v1878 = vunpack.c.l.b16 %v1876
        %v1879 = vunpack.c.h.b16 %v1876
        %v1880 = vpack.c.b16 %v1878, %v1878
        %v1881 = vpack.c.b16 %v1879, %v1879
        %vm1884 = vcmask 125952
        %1885 = vst.msk [vmem:[%s287] sm:$0xf] %vm1884, %v1880
        %1886 = vst.msk [vmem:[%s287 + $0x4] sm:$0xf] %vm1884, %v1881
        %v1887 = vld [vmem:[#allocation3] sm:$0xff]
        %v1888 = vld [vmem:[#allocation3 + $0x8] sm:$0xff]
        %v1889 = vrcp.pop %v1887
        %v1890 = vrcp.pop %v1888
        %v1891 = vld [vmem:[#allocation4] sm:$0xff]
        %v1892 = vld [vmem:[#allocation4 + $0x8] sm:$0xff]
        %1894 = vset.pattern.permute.xlu0 1
        %1895 = vperm.xlu0 %1894, %v1889
        %v1896 = vpop.permute.xlu0 %1895
        %1899 = vset.pattern.permute.xlu0 1
        %1900 = vperm.xlu0 %1899, %v1890
        %v1901 = vpop.permute.xlu0 %1900
        %v1903 = vmul.f32 %v1891, %v1896
        %v1904 = vmul.f32 %v1892, %v1901
        %v1905 = vpack.c.bf16 %v1904, %v1903
        %v1907 = vunpack.c.l.b16 %v1905
        %v1908 = vunpack.c.h.b16 %v1905
        %v1909 = vpack.c.b16 %v1907, %v1907
        %v1910 = vpack.c.b16 %v1908, %v1908
        %vm1913 = vcmask 257152
        %1914 = vst.msk [vmem:[%s287] sm:$0xf] %vm1913, %v1909
        %1915 = vst.msk [vmem:[%s287 + $0x4] sm:$0xf] %vm1913, %v1910
        %v1916 = vld [vmem:[#allocation3] sm:$0xff]
        %v1917 = vld [vmem:[#allocation3 + $0x8] sm:$0xff]
        %v1918 = vrcp.pop %v1916
        %v1919 = vrcp.pop %v1917
        %v1920 = vld [vmem:[#allocation4] sm:$0xff]
        %v1921 = vld [vmem:[#allocation4 + $0x8] sm:$0xff]
        %1923 = vset.pattern.permute.xlu0 2
        %1924 = vperm.xlu0 %1923, %v1918
        %v1925 = vpop.permute.xlu0 %1924
        %1928 = vset.pattern.permute.xlu0 2
        %1929 = vperm.xlu0 %1928, %v1919
        %v1930 = vpop.permute.xlu0 %1929
        %v1932 = vmul.f32 %v1920, %v1925
        %v1933 = vmul.f32 %v1921, %v1930
        %v1934 = vpack.c.bf16 %v1933, %v1932
        %v1936 = vunpack.c.l.b16 %v1934
        %v1937 = vunpack.c.h.b16 %v1934
        %v1938 = vpack.c.b16 %v1936, %v1936
        %v1939 = vpack.c.b16 %v1937, %v1937
        %vm1942 = vcmask 388352
        %1943 = vst.msk [vmem:[%s287] sm:$0xf] %vm1942, %v1938
        %1944 = vst.msk [vmem:[%s287 + $0x4] sm:$0xf] %vm1942, %v1939
        %v1945 = vld [vmem:[#allocation3] sm:$0xff]
        %v1946 = vld [vmem:[#allocation3 + $0x8] sm:$0xff]
        %v1947 = vrcp.pop %v1945
        %v1948 = vrcp.pop %v1946
        %v1949 = vld [vmem:[#allocation4] sm:$0xff]
        %v1950 = vld [vmem:[#allocation4 + $0x8] sm:$0xff]
        %1952 = vset.pattern.permute.xlu0 3
        %1953 = vperm.xlu0 %1952, %v1947
        %v1954 = vpop.permute.xlu0 %1953
        %1957 = vset.pattern.permute.xlu0 3
        %1958 = vperm.xlu0 %1957, %v1948
        %v1959 = vpop.permute.xlu0 %1958
        %v1961 = vmul.f32 %v1949, %v1954
        %v1962 = vmul.f32 %v1950, %v1959
        %v1963 = vpack.c.bf16 %v1962, %v1961
        %v1965 = vunpack.c.l.b16 %v1963
        %v1966 = vunpack.c.h.b16 %v1963
        %v1967 = vpack.c.b16 %v1965, %v1965
        %v1968 = vpack.c.b16 %v1966, %v1966
        %vm1971 = vcmask 519552
        %1972 = vst.msk [vmem:[%s287] sm:$0xf] %vm1971, %v1967
        %1973 = vst.msk [vmem:[%s287 + $0x4] sm:$0xf] %vm1971, %v1968
        %v1974 = vld [vmem:[#allocation3] sm:$0xff]
        %v1975 = vld [vmem:[#allocation3 + $0x8] sm:$0xff]
        %v1976 = vrcp.pop %v1974
        %v1977 = vrcp.pop %v1975
        %v1978 = vld [vmem:[#allocation4] sm:$0xff]
        %v1979 = vld [vmem:[#allocation4 + $0x8] sm:$0xff]
        %1981 = vset.pattern.permute.xlu0 4
        %1982 = vperm.xlu0 %1981, %v1976
        %v1983 = vpop.permute.xlu0 %1982
        %1986 = vset.pattern.permute.xlu0 4
        %1987 = vperm.xlu0 %1986, %v1977
        %v1988 = vpop.permute.xlu0 %1987
        %v1990 = vmul.f32 %v1978, %v1983
        %v1991 = vmul.f32 %v1979, %v1988
        %v1992 = vpack.c.bf16 %v1991, %v1990
        %v1994 = vunpack.c.l.b16 %v1992
        %v1995 = vunpack.c.h.b16 %v1992
        %v1996 = vpack.c.b16 %v1994, %v1994
        %v1997 = vpack.c.b16 %v1995, %v1995
        %vm2000 = vcmask 650752
        %2001 = vst.msk [vmem:[%s287] sm:$0xf] %vm2000, %v1996
        %2002 = vst.msk [vmem:[%s287 + $0x4] sm:$0xf] %vm2000, %v1997
        %v2003 = vld [vmem:[#allocation3] sm:$0xff]
        %v2004 = vld [vmem:[#allocation3 + $0x8] sm:$0xff]
        %v2005 = vrcp.pop %v2003
        %v2006 = vrcp.pop %v2004
        %v2007 = vld [vmem:[#allocation4] sm:$0xff]
        %v2008 = vld [vmem:[#allocation4 + $0x8] sm:$0xff]
        %2010 = vset.pattern.permute.xlu0 5
        %2011 = vperm.xlu0 %2010, %v2005
        %v2012 = vpop.permute.xlu0 %2011
        %2015 = vset.pattern.permute.xlu0 5
        %2016 = vperm.xlu0 %2015, %v2006
        %v2017 = vpop.permute.xlu0 %2016
        %v2019 = vmul.f32 %v2007, %v2012
        %v2020 = vmul.f32 %v2008, %v2017
        %v2021 = vpack.c.bf16 %v2020, %v2019
        %v2023 = vunpack.c.l.b16 %v2021
        %v2024 = vunpack.c.h.b16 %v2021
        %v2025 = vpack.c.b16 %v2023, %v2023
        %v2026 = vpack.c.b16 %v2024, %v2024
        %vm2029 = vcmask 781952
        %2030 = vst.msk [vmem:[%s287] sm:$0xf] %vm2029, %v2025
        %2031 = vst.msk [vmem:[%s287 + $0x4] sm:$0xf] %vm2029, %v2026
        %v2032 = vld [vmem:[#allocation3] sm:$0xff]
        %v2033 = vld [vmem:[#allocation3 + $0x8] sm:$0xff]
        %v2034 = vrcp.pop %v2032
        %v2035 = vrcp.pop %v2033
        %v2036 = vld [vmem:[#allocation4] sm:$0xff]
        %v2037 = vld [vmem:[#allocation4 + $0x8] sm:$0xff]
        %2039 = vset.pattern.permute.xlu0 6
        %2040 = vperm.xlu0 %2039, %v2034
        %v2041 = vpop.permute.xlu0 %2040
        %2044 = vset.pattern.permute.xlu0 6
        %2045 = vperm.xlu0 %2044, %v2035
        %v2046 = vpop.permute.xlu0 %2045
        %v2048 = vmul.f32 %v2036, %v2041
        %v2049 = vmul.f32 %v2037, %v2046
        %v2050 = vpack.c.bf16 %v2049, %v2048
        %v2052 = vunpack.c.l.b16 %v2050
        %v2053 = vunpack.c.h.b16 %v2050
        %v2054 = vpack.c.b16 %v2052, %v2052
        %v2055 = vpack.c.b16 %v2053, %v2053
        %vm2058 = vcmask 913152
        %2059 = vst.msk [vmem:[%s287] sm:$0xf] %vm2058, %v2054
        %2060 = vst.msk [vmem:[%s287 + $0x4] sm:$0xf] %vm2058, %v2055
        %v2061 = vld [vmem:[#allocation3] sm:$0xff]
        %v2062 = vld [vmem:[#allocation3 + $0x8] sm:$0xff]
        %v2063 = vrcp.pop %v2061
        %v2064 = vrcp.pop %v2062
        %v2065 = vld [vmem:[#allocation4] sm:$0xff]
        %v2066 = vld [vmem:[#allocation4 + $0x8] sm:$0xff]
        %2068 = vset.pattern.permute.xlu0 7
        %2069 = vperm.xlu0 %2068, %v2063
        %v2070 = vpop.permute.xlu0 %2069
        %2073 = vset.pattern.permute.xlu0 7
        %2074 = vperm.xlu0 %2073, %v2064
        %v2075 = vpop.permute.xlu0 %2074
        %v2077 = vmul.f32 %v2065, %v2070
        %v2078 = vmul.f32 %v2066, %v2075
        %v2079 = vpack.c.bf16 %v2078, %v2077
        %v2081 = vunpack.c.l.b16 %v2079
        %v2082 = vunpack.c.h.b16 %v2079
        %v2083 = vpack.c.b16 %v2081, %v2081
        %v2084 = vpack.c.b16 %v2082, %v2082
        %vm2087 = vcmask 1044352
        %2088 = vst.msk [vmem:[%s287] sm:$0xf] %vm2087, %v2083
        %2089 = vst.msk [vmem:[%s287 + $0x4] sm:$0xf] %vm2087, %v2084
      $region40: #{attention_forward.4} parent=31 // pred_fallthru
        _
      %s2090 = smul.u32 2, %s20
      %p2091 = scmp.lt.s32.totalorder %s19, 1
      %s2092 = scalar_select %p2091, %s19, 1
      %p2093 = scmp.lt.s32.totalorder %s2090, 1
      %s2094 = scalar_select %p2093, %s2090, 1
      %s2095 = smul.addr %s2092, 2
      %s2096 = sadd.s32 %s2094, %s2095
      %s2097 = smul.addr %s2096, 4
      %s2098 = scalar_lea.vmem %s3, %s2097
      // Predicated region
      $region41: #{attention_forward.4} parent=31 // pred_check
        %p2099 = pneg %p137
      $region42: #{attention_forward.4} parent=31 // pred_check_branch
        %2101 = sbr.rel (%p2099) target = $region44
      $region43: #{attention_forward.4} parent=31 // pred_region
        %s2102 = smul.u32 2, %s20
      $region44: #{attention_forward.4} parent=31 // pred_fallthru
        _
    $region32: #{attention_forward.4} parent=5 // pred_fallthru
      _
    %p2103 = scmp.le.s32.totalorder 2, %s9
    // Predicated region
    $region45: #{attention_forward.4} parent=5 // pred_check
      %p2104 = pneg %p2103
    $region46: #{attention_forward.4} parent=5 // pred_check_branch
      %2106 = sbr.rel (%p2104) target = $region48
    $region47: #{attention_forward.4} parent=5 // pred_region
      %s2107 = ssub.s32 %s9, 2
      // Predicated region
      $region49: #{attention_forward.4} parent=47 // pred_check
        %p2108 = pneg %p143
      $region50: #{attention_forward.4} parent=47 // pred_check_branch
        %2110 = sbr.rel (%p2108) target = $region52
      $region51: #{attention_forward.4} parent=47 // pred_region
        %s2111 = smul.u32 2, %s23
        %p2112 = scmp.lt.s32.totalorder %s22, 1
        %s2113 = scalar_select %p2112, %s22, 1
        %p2114 = scmp.lt.s32.totalorder %s2111, 1
        %s2115 = scalar_select %p2114, %s2111, 1
        %s2116 = smul.addr %s2113, 2
        %s2117 = sadd.s32 %s2115, %s2116
        %s2118 = smul.addr %s2117, 4
        %s2119 = scalar_lea.vmem %s3, %s2118
      $region52: #{attention_forward.4} parent=47 // pred_fallthru
        _
    $region48: #{attention_forward.4} parent=5 // pred_fallthru
      _
  $region6: #{attention_forward.4} parent=0 // loop_footer
    %s13 = sadd.s32 1, %s9
  $region7: #{attention_forward.4} parent=0 // loop_footer_branch
    %8 = sbr.rel target = $region3
  $region8: #{attention_forward.4} parent=0 // loop_exit
    _

</llo_original>
